<compile_context>
chip_gen: v6e
topology: v6e:2x2x1
jax: 0.10.0
libtpu: 0.0.40
codegen_flags: <defaults>
</compile_context>

<pallas_src>
import functools
import numpy as np
import jax
import jax.numpy as jnp
from jax import lax
from jax.experimental import pallas as pl
from jax.experimental.pallas import tpu as pltpu


# -----------------------------------------------------------------------------
# Host-side separable interpolation weights (shapes are static -> plain numpy).
# -----------------------------------------------------------------------------
def _area_weights(src: int, dst: int) -> np.ndarray:
    """cv2.INTER_AREA-style area-overlap weights for a 1-D resize src -> dst."""
    scale = src / dst
    w = np.zeros((dst, src), dtype=np.float64)
    for i in range(dst):
        lo, hi = i * scale, (i + 1) * scale
        j0, j1 = int(np.floor(lo)), min(int(np.ceil(hi)), src)
        for j in range(j0, j1):
            w[i, j] = max(0.0, min(hi, j + 1.0) - max(lo, float(j)))
        w[i] /= w[i].sum()
    return w


def _lanczos4_weights(src: int, dst: int) -> np.ndarray:
    """cv2.INTER_LANCZOS4-style (a=4) weights for a 1-D resize src -> dst."""
    a = 4
    scale = src / dst
    w = np.zeros((dst, src), dtype=np.float64)
    for i in range(dst):
        x = (i + 0.5) * scale - 0.5
        j0 = int(np.floor(x)) - a + 1
        taps = np.arange(j0, j0 + 2 * a)
        lz = np.sinc(x - taps) * np.sinc((x - taps) / a)
        lz = lz / lz.sum()
        for j, wt in zip(taps, lz):
            w[i, int(np.clip(j, 0, src - 1))] += wt  # replicate border
    return w


def _resize_weights(src: int, dst: int) -> np.ndarray:
    # cv2 path selection: INTER_AREA if max_len > size else INTER_LANCZOS4.
    # TODO(synk): OpenCV uses fixed-point tap rounding + uint8 saturation; this
    # float path can differ in the last bits / overshoot range.
    return _area_weights(src, dst) if src > dst else _lanczos4_weights(src, dst)


def _physical_vmem_bytes() -> int:
    try:
        return int(pltpu.get_tpu_info().vmem_capacity_bytes)
    except Exception:
        return 64 << 20  # conservative (v7x per-core)


def _default_th_max() -> int:
    # Larger source-row tiles on 128 MiB VMEM parts (v5e/v6e), smaller on v7x.
    return 512 if _physical_vmem_bytes() >= (128 << 20) else 256


# -----------------------------------------------------------------------------
# Pallas kernel: per (channel, output-row half), tiled over the source rows.
# -----------------------------------------------------------------------------
def _pad_resize_kernel(wy_ref, img_ref, wxt_ref, kc_ref, out_ref, acc_ref):
    # wy_ref : (S_half, TH)     row-resample weights for this output-row half / H tile
    # img_ref: (1, TH, W) uint8 one BGR channel, one H tile of the source image
    # wxt_ref: (W, S)           column-resample weights (transposed), resident
    # kc_ref : (S_half, S)      folded white-padding constant
    # out_ref: (1, S_half, S)   one output channel half
    # acc_ref: (S_half, S) f32  accumulator
    k = pl.program_id(2)

    @pl.when(k == 0)
    def _():
        acc_ref[...] = jnp.zeros_like(acc_ref)

    img_f32 = img_ref[0].astype(jnp.float32)                      # (TH, W)
    tmp = jnp.dot(img_f32, wxt_ref[...],
                  preferred_element_type=jnp.float32,
                  precision=lax.Precision.HIGHEST)                # (TH, S)
    acc_ref[...] += jnp.dot(wy_ref[...], tmp,
                            preferred_element_type=jnp.float32,
                            precision=lax.Precision.HIGHEST)      # (S_half, S)

    @pl.when(k == pl.num_programs(2) - 1)
    def _():
        out_ref[0] = (acc_ref[...] + kc_ref[...]).astype(out_ref.dtype)


@functools.partial(jax.jit, static_argnums=(1, 2))
def _opencv_pad_resize_impl(img_hwc: jax.Array, size: int, th_max) -> jax.Array:
    img = jnp.asarray(img_hwc)
    assert img.ndim == 3 and img.shape[-1] == 3, f"expected (H, W, 3), got {img.shape}"
    if img.dtype != jnp.uint8:
        img = img.astype(jnp.float32)
    h, w, _ = img.shape
    s = int(size)
    max_len = max(h, w)
    pad_y, pad_x = max_len - h, max_len - w
    y0, x0 = pad_y // 2, pad_x // 2

    # Separable weights for (max_len x max_len) padded square -> (s x s).
    w_full = _resize_weights(max_len, s)          # (s, max_len), rows sum to 1
    wy = w_full[:, y0:y0 + h]                     # (s, h): real image rows only
    wx = w_full[:, x0:x0 + w]                     # (s, w): real image cols only
    ry = wy.sum(axis=1)
    rx = wx.sum(axis=1)
    k_const = 255.0 * (1.0 - np.outer(ry, rx))    # white padding, folded in

    # RGB -> BGR, HWC -> CHW at the native dtype (uint8 stays 1 byte/px).
    x = jnp.transpose(img[..., ::-1], (2, 0, 1))  # (3, h, w)

    # Tile the source-row contraction so per-step VMEM stays bounded.
    th_cap = int(th_max) if th_max is not None else _default_th_max()
    if h <= th_cap:
        th, hp = h, h
    else:
        th = th_cap                               # multiple of 128
        hp = ((h + th - 1) // th) * th
    if hp != h:  # zero image rows are matched by zero Wy columns -> contribute 0
        x = jnp.pad(x, ((0, 0), (0, hp - h), (0, 0)))
        wy = np.pad(wy, ((0, 0), (0, hp - h)))
    num_k = hp // th

    # Split output rows in two when layout allows -> 6 parallel units (even
    # megacore split on v7x); harmless elsewhere.
    n_si = 2 if (s % 2 == 0 and (s // 2) % 8 == 0) else 1
    s_half = s // n_si

    wy_d = jnp.asarray(wy, dtype=jnp.float32)       # (s, hp)
    wxt_d = jnp.asarray(wx.T, dtype=jnp.float32)    # (w, s)
    kc_d = jnp.asarray(k_const, dtype=jnp.float32)  # (s, s)

    # Per-step VMEM footprint (bytes) -> explicit scoped limit with margin.
    itemsize = np.dtype(x.dtype).itemsize
    est_vmem = (2 * s_half * th * 4      # Wy tile (double buffered)
                + 2 * th * w * itemsize  # image tile (double buffered, uint8)
                + 1 * w * s * 4          # Wx^T (single buffered, resident)
                + 2 * s_half * s * 4     # pad constant
                + 2 * s_half * s * 4     # output tile
                + s_half * s * 4)        # accumulator scratch
    vmem_limit = int(min(int(_physical_vmem_bytes() * 0.9),
                         max(16 << 20, 2 * est_vmem + (4 << 20))))

    return pl.pallas_call(
        _pad_resize_kernel,
        out_shape=jax.ShapeDtypeStruct((3, s, s), jnp.float32),
        grid=(3, n_si, num_k),
        in_specs=[
            pl.BlockSpec((s_half, th), lambda c, si, k: (si, k)),      # Wy tile
            pl.BlockSpec((1, th, w), lambda c, si, k: (c, k, 0)),      # uint8 image tile
            pl.BlockSpec((w, s), lambda c, si, k: (0, 0),
                         pipeline_mode=pl.Buffered(1)),                # Wx^T resident
            pl.BlockSpec((s_half, s), lambda c, si, k: (si, 0)),       # pad constant
        ],
        out_specs=pl.BlockSpec((1, s_half, s), lambda c, si, k: (c, si, 0)),
        scratch_shapes=[pltpu.VMEM((s_half, s), jnp.float32)],
        compiler_params=pltpu.CompilerParams(
            dimension_semantics=("parallel", "parallel", "arbitrary"),
            vmem_limit_bytes=vmem_limit),
    )(wy_d, x, wxt_d, kc_d)


def opencv_pad_resize(img_hwc, size: int, th_max=None) -> jax.Array:
    """JAX/Pallas equivalent of OpenCVPadResize.forward.

    img_hwc: (H, W, 3) RGB image (uint8 preferred; floats also accepted).
    Returns: (3, size, size) float32 in BGR channel order (as cv2 produces).
    """
    # TODO(synk): cv2.resize on uint8 rounds+saturates to [0,255] before the
    # float cast; this kernel keeps the unclipped float result.
    return _opencv_pad_resize_impl(img_hwc, int(size), th_max)


# -----------------------------------------------------------------------------
# Pure numpy (float64) reference: explicit pad-to-square + separable resize.
# -----------------------------------------------------------------------------
def _reference(img_hwc: np.ndarray, size: int) -> np.ndarray:
    img = np.asarray(img_hwc, dtype=np.float64)[..., ::-1]  # RGB -> BGR
    h, w, _ = img.shape
    max_len = max(h, w)
    pad_y, pad_x = max_len - h, max_len - w
    padded = np.pad(
        img,
        ((pad_y // 2, pad_y - pad_y // 2), (pad_x // 2, pad_x - pad_x // 2), (0, 0)),
        mode="constant", constant_values=255.0)
    wgt = _resize_weights(max_len, size)
    out = np.einsum("si,ijc,tj->cst", wgt, padded, wgt)
    return out.astype(np.float32)


if __name__ == "__main__":
    key = jax.random.PRNGKey(0)
    k1, k2, k3 = jax.random.split(key, 3)
    size = 128

    def rand_u8(k, shape):
        return jax.random.randint(k, shape, 0, 256, dtype=jnp.int32).astype(jnp.uint8)

    # Downscale path: max_len (192) > size -> INTER_AREA-style weights.
    img_dn = rand_u8(k1, (160, 192, 3))
    out_dn = jax.block_until_ready(opencv_pad_resize(img_dn, size))
    ref_dn = _reference(np.asarray(img_dn), size)
    assert out_dn.shape == (3, size, size)
    err_dn = np.abs(np.asarray(out_dn) - ref_dn).max()
    assert np.allclose(np.asarray(out_dn), ref_dn, rtol=1e-2, atol=1.0), \
        f"downscale mismatch, max err {err_dn}"

    # Upscale path: max_len (64) <= size -> LANCZOS4-style weights.
    img_up = rand_u8(k2, (48, 64, 3))
    out_up = jax.block_until_ready(opencv_pad_resize(img_up, size))
    ref_up = _reference(np.asarray(img_up), size)
    assert out_up.shape == (3, size, size)
    err_up = np.abs(np.asarray(out_up) - ref_up).max()
    assert np.allclose(np.asarray(out_up), ref_up, rtol=1e-2, atol=1.0), \
        f"upscale mismatch, max err {err_up}"

    # Tiled source-row contraction path: force th=128 -> num_k=3 (with row pad).
    img_tl = rand_u8(k3, (320, 200, 3))
    out_tl = jax.block_until_ready(opencv_pad_resize(img_tl, size, 128))
    ref_tl = _reference(np.asarray(img_tl), size)
    assert out_tl.shape == (3, size, size)
    err_tl = np.abs(np.asarray(out_tl) - ref_tl).max()
    assert np.allclose(np.asarray(out_tl), ref_tl, rtol=1e-2, atol=1.0), \
        f"tiled mismatch, max err {err_tl}"

    print("KERNEL_OK")
</pallas_src>

<mosaic_0001>
module attributes {stable_mosaic.version = 11 : i64} {
  func.func @_pad_resize_kernel(%arg0: i32, %arg1: i32, %arg2: i32, %arg3: memref<64x160xf32, #tpu.memory_space<vmem>>, %arg4: memref<1x160x192xi8, #tpu.memory_space<vmem>>, %arg5: memref<192x128xf32, #tpu.memory_space<vmem>>, %arg6: memref<64x128xf32, #tpu.memory_space<vmem>>, %arg7: memref<1x64x128xf32, #tpu.memory_space<vmem>>, %arg8: memref<64x128xf32, #tpu.memory_space<vmem>>) attributes {dimension_semantics = [#tpu.dimension_semantics<parallel>, #tpu.dimension_semantics<parallel>, #tpu.dimension_semantics<arbitrary>], iteration_bounds = array<i64: 3, 2, 1>, scalar_prefetch = 0 : i64, scratch_operands = 1 : i64, tpu.core_type = #tpu.core_type<tc>, window_params = [{transform_indices = @transform_0, window_bounds = array<i64: 64, 160>}, {transform_indices = @transform_1, window_bounds = array<i64: 1, 160, 192>}, {pipeline_mode = #tpu.pipeline_mode<synchronous>, transform_indices = @transform_2, window_bounds = array<i64: 192, 128>}, {transform_indices = @transform_3, window_bounds = array<i64: 64, 128>}, {transform_indices = @transform_4, window_bounds = array<i64: 1, 64, 128>}]} {
    %c0_i32 = arith.constant 0 : i32
    %0 = arith.cmpi eq, %arg2, %c0_i32 : i32
    %1 = arith.extui %0 : i1 to i32
    %c0_i32_0 = arith.constant 0 : i32
    %2 = arith.cmpi ne, %1, %c0_i32_0 : i32
    scf.if %2 {
      %cst_14 = arith.constant 0.000000e+00 : f32
      %16 = vector.broadcast %cst_14 : f32 to vector<64x128xf32>
      %c0_15 = arith.constant 0 : index
      %c0_16 = arith.constant 0 : index
      %17 = vector.load %arg8[%c0_15, %c0_16] : memref<64x128xf32, #tpu.memory_space<vmem>>, vector<64x128xf32>
      tpu.vector_store %arg8[%c0_15, %c0_16], %16 {strides = array<i32>} : memref<64x128xf32, #tpu.memory_space<vmem>>, vector<64x128xf32>,
    } else {
    }
    %c0 = arith.constant 0 : index
    %c0_1 = arith.constant 0 : index
    %c0_2 = arith.constant 0 : index
    %3 = vector.load %arg4[%c0, %c0_1, %c0_2] : memref<1x160x192xi8, #tpu.memory_space<vmem>>, vector<1x160x192xi8>
    %4 = vector.shape_cast %3 : vector<1x160x192xi8> to vector<160x192xi8>
    %5 = arith.uitofp %4 : vector<160x192xi8> to vector<160x192xf32>
    %c0_3 = arith.constant 0 : index
    %c0_4 = arith.constant 0 : index
    %6 = vector.load %arg5[%c0_3, %c0_4] : memref<192x128xf32, #tpu.memory_space<vmem>>, vector<192x128xf32>
    %cst = arith.constant dense<0.000000e+00> : vector<160x128xf32>
    %7 = tpu.matmul %5, %6, %cst {dimension_numbers = #tpu.dot_dimension_numbers<[1], [0], [0], [1], [0, 0, 1, 1], [], []>, precision = #tpu.contract_precision<fp32>} : vector<160x192xf32>, vector<192x128xf32>, vector<160x128xf32> -> vector<160x128xf32>
    %c0_5 = arith.constant 0 : index
    %c0_6 = arith.constant 0 : index
    %8 = vector.load %arg8[%c0_5, %c0_6] : memref<64x128xf32, #tpu.memory_space<vmem>>, vector<64x128xf32>
    %c0_7 = arith.constant 0 : index
    %c0_8 = arith.constant 0 : index
    %9 = vector.load %arg3[%c0_7, %c0_8] : memref<64x160xf32, #tpu.memory_space<vmem>>, vector<64x160xf32>
    %cst_9 = arith.constant dense<0.000000e+00> : vector<64x128xf32>
    %10 = tpu.matmul %9, %7, %cst_9 {dimension_numbers = #tpu.dot_dimension_numbers<[1], [0], [0], [1], [0, 0, 1, 1], [], []>, precision = #tpu.contract_precision<fp32>} : vector<64x160xf32>, vector<160x128xf32>, vector<64x128xf32> -> vector<64x128xf32>
    %11 = arith.addf %8, %10 : vector<64x128xf32>
    %c0_10 = arith.constant 0 : index
    %c0_11 = arith.constant 0 : index
    %12 = vector.load %arg8[%c0_10, %c0_11] : memref<64x128xf32, #tpu.memory_space<vmem>>, vector<64x128xf32>
    tpu.vector_store %arg8[%c0_10, %c0_11], %11 {strides = array<i32>} : memref<64x128xf32, #tpu.memory_space<vmem>>, vector<64x128xf32>,
    %c0_i32_12 = arith.constant 0 : i32
    %13 = arith.cmpi eq, %arg2, %c0_i32_12 : i32
    %14 = arith.extui %13 : i1 to i32
    %c0_i32_13 = arith.constant 0 : i32
    %15 = arith.cmpi ne, %14, %c0_i32_13 : i32
    scf.if %15 {
      %c0_14 = arith.constant 0 : index
      %c0_15 = arith.constant 0 : index
      %16 = vector.load %arg8[%c0_14, %c0_15] : memref<64x128xf32, #tpu.memory_space<vmem>>, vector<64x128xf32>
      %c0_16 = arith.constant 0 : index
      %c0_17 = arith.constant 0 : index
      %17 = vector.load %arg6[%c0_16, %c0_17] : memref<64x128xf32, #tpu.memory_space<vmem>>, vector<64x128xf32>
      %18 = arith.addf %16, %17 : vector<64x128xf32>
      %c0_18 = arith.constant 0 : index
      %c0_19 = arith.constant 0 : index
      %c0_20 = arith.constant 0 : index
      %19 = vector.load %arg7[%c0_18, %c0_19, %c0_20] : memref<1x64x128xf32, #tpu.memory_space<vmem>>, vector<1x64x128xf32>
      %20 = vector.shape_cast %19 : vector<1x64x128xf32> to vector<64x128xf32>
      %21 = vector.shape_cast %18 : vector<64x128xf32> to vector<1x64x128xf32>
      tpu.vector_store %arg7[%c0_18, %c0_19, %c0_20], %21 {strides = array<i32>} : memref<1x64x128xf32, #tpu.memory_space<vmem>>, vector<1x64x128xf32>,
    } else {
    }
    return
  }
  func.func @transform_0(%arg0: i32, %arg1: i32, %arg2: i32) -> (i32, i32) {
    %c0_i32 = arith.constant 0 : i32
    return %arg1, %arg2 : i32, i32
  }
  func.func @transform_1(%arg0: i32, %arg1: i32, %arg2: i32) -> (i32, i32, i32) {
    %c0_i32 = arith.constant 0 : i32
    %c0_i32_0 = arith.constant 0 : i32
    return %arg0, %arg2, %c0_i32 : i32, i32, i32
  }
  func.func @transform_2(%arg0: i32, %arg1: i32, %arg2: i32) -> (i32, i32) {
    %c0_i32 = arith.constant 0 : i32
    %c0_i32_0 = arith.constant 0 : i32
    %c0_i32_1 = arith.constant 0 : i32
    return %c0_i32, %c0_i32_0 : i32, i32
  }
  func.func @transform_3(%arg0: i32, %arg1: i32, %arg2: i32) -> (i32, i32) {
    %c0_i32 = arith.constant 0 : i32
    %c0_i32_0 = arith.constant 0 : i32
    return %arg1, %c0_i32 : i32, i32
  }
  func.func @transform_4(%arg0: i32, %arg1: i32, %arg2: i32) -> (i32, i32, i32) {
    %c0_i32 = arith.constant 0 : i32
    %c0_i32_0 = arith.constant 0 : i32
    return %arg0, %arg1, %c0_i32 : i32, i32, i32
  }
}

</mosaic_0001>

<llo_original>
// kernel: _opencv_pad_resize_impl.1
$region0: #{_opencv_pad_resize_impl.1}
  #allocation0 [shape = 'u32[]', space=smem, size = 0x4, offset = 0x4, fixed_abs, tag = 'smem constant byte address 0x4 - core index']
  #allocation1 [shape = 'u32[144,128]{1,0:T(1,128)}', space=vmem, size = 0x12000, scoped, tag = 'internal scratch']
  #allocation2 [shape = 'f32[64,128]{1,0:T(8,128)}', space=vmem, size = 0x8000, scoped, tag = 'scratch operand']
  %s0 = inlined_call_operand.vmem [shape: f32[128,160], index: 0, kind: input, shape index: {}]
  %s1 = inlined_call_operand.vmem [shape: u8[3,160,192], index: 1, kind: input, shape index: {}]
  %s2 = inlined_call_operand.vmem [shape: f32[192,128], index: 2, kind: input, shape index: {}]
  %s3 = inlined_call_operand.hbm [shape: f32[128,128], index: 3, kind: input, shape index: {}]
  %s4 = inlined_call_operand.hbm [shape: f32[3,128,128], index: 4, kind: output, shape index: {}]
  %s5 = sld [smem:[#allocation0]]
  $region61: #{_opencv_pad_resize_impl.1} parent=0
    _
  %s7 = ssub.s32 1, %s5
  %s8 = scalar_select 0, %s7, %s5
  $region1: #{_opencv_pad_resize_impl.1} parent=0
    #allocation3 [shape = 'u8[65536]{0}', space=vmem, size = 0x10000, scoped, tag = 'input window, operand 3']
    #allocation4 [shape = 's32[2]{0}', space=sflag, size = 0x8, scoped, tag = 'scoped memory for _opencv_pad_resize_impl.1']
    #allocation5 [shape = 's32[2]{0}', space=sflag, size = 0x8, scoped, tag = 'scoped memory for _opencv_pad_resize_impl.1']
    #allocation6 [shape = 'u8[65536]{0}', space=vmem, size = 0x10000, scoped, tag = 'output window, operand 0']
    %9 = vsyncpa [#allocation4], 0
    %s10 = scalar_lea.sflag [#allocation4], 1
    %11 = vsyncpa %s10, 0
    %12 = vsyncpa [#allocation5], 0
    %s13 = scalar_lea.sflag [#allocation5], 1
    %14 = vsyncpa %s13, 0
    loop: start=0, step=1, limit=8
    $region2: #{_opencv_pad_resize_impl.1} parent=1 // loop_pre_header
      _
    $region3: #{_opencv_pad_resize_impl.1} parent=1 // loop_header
      %s16 = sphi 0, %s20
      %p17 = scmp.ge.s32.totalorder %s16, 8
      %s23 = sphi 0, %s42
      %s24 = sphi 0, %s38
      %s25 = sphi 0, %s34
      %s26 = sphi 0, %s23
      %s27 = sphi 0, %s24
      %s28 = sphi 0, %s25
      %s29 = sphi 0, %s26
      %s30 = sphi 0, %s27
      %s31 = sphi 0, %s28
      %s47 = sphi 0, %s49
      %s50 = sphi 0, %s47
      %s51 = sphi 0, %s50
      %s67 = sphi 0, %s51
      %s75 = sphi 0, %s77
      %s78 = sphi 0, %s75
      %s79 = sphi 0, %s78
      %s95 = sphi 0, %s79
      %s99 = sphi 0, %s99
      %s101 = sphi 0, %s99
      %s102 = sphi 0, %s101
      %s116 = sphi 0, %s102
      %s122 = sphi 0, %s124
      %s125 = sphi 0, %s122
      %s126 = sphi 0, %s125
      %s142 = sphi 0, %s126
      %s150 = sphi 0, %s152
      %s153 = sphi 0, %s150
      %s154 = sphi 0, %s153
      %s170 = sphi 0, %s154
    $region4: #{_opencv_pad_resize_impl.1} parent=1 // loop_header_branch
      %19 = sbr.rel (%p17) target = $region8
    $region5: #{_opencv_pad_resize_impl.1} parent=1 // loop_body
      %s21 = ssub.s32 %s16, 1
      %s22 = ssub.s32 %s16, 2
      %s32 = sadd.s32 1, %s25
      %p33 = scmp.ge.s32.totalorder %s32, 1
      %s34 = scalar_select %p33, 0, %s32
      %s35 = sadd.s32 1, %s24
      %s36 = scalar_select %p33, %s35, %s24
      %p37 = scmp.ge.s32.totalorder %s36, 2
      %s38 = scalar_select %p37, 0, %s36
      %s39 = sadd.s32 1, %s23
      %s40 = scalar_select %p37, %s39, %s23
      %p41 = scmp.ge.s32.totalorder %s40, 3
      %s42 = scalar_select %p41, 0, %s40
      %s43 = ssub.s32 %s24, %s38
      %s44 = ssub.s32 %s25, %s34
      %s45 = sor.u32 %s43, %s44
      %p46 = scmp.eq.s32.totalorder %s45, 0
      %s48 = sadd.s32 %s47, 1
      %s49 = scalar_select %p46, %s47, %s48
      %p52 = pneg %p46
      %p53 = scmp.eq.s32.totalorder %s16, 5
      %p54 = por %p52, %p53
      %p55 = scmp.ne.s32.totalorder %s47, %s50
      %p56 = scmp.eq.s32.totalorder %s16, 0
      %p57 = por %p55, %p56
      %p58 = scmp.ne.s32.totalorder %s47, %s50
      %p59 = scmp.eq.s32.totalorder %s21, 5
      %p60 = por %p58, %p59
      %p61 = scmp.ne.s32.totalorder %s50, %s51
      %p62 = scmp.eq.s32.totalorder %s21, 0
      %p63 = por %p61, %p62
      %p64 = scmp.ne.s32.totalorder %s50, %s51
      %p65 = scmp.eq.s32.totalorder %s22, 5
      %p66 = por %p64, %p65
      %p68 = scmp.ne.s32.totalorder %s51, %s67
      %p69 = scmp.eq.s32.totalorder %s22, 0
      %p70 = por %p68, %p69
      %s71 = ssub.s32 %s23, %s42
      %s72 = ssub.s32 %s25, %s34
      %s73 = sor.u32 %s71, %s72
      %p74 = scmp.eq.s32.totalorder %s73, 0
      %s76 = sadd.s32 %s75, 1
      %s77 = scalar_select %p74, %s75, %s76
      %p80 = pneg %p74
      %p81 = scmp.eq.s32.totalorder %s16, 5
      %p82 = por %p80, %p81
      %p83 = scmp.ne.s32.totalorder %s75, %s78
      %p84 = scmp.eq.s32.totalorder %s16, 0
      %p85 = por %p83, %p84
      %p86 = scmp.ne.s32.totalorder %s75, %s78
      %p87 = scmp.eq.s32.totalorder %s21, 5
      %p88 = por %p86, %p87
      %p89 = scmp.ne.s32.totalorder %s78, %s79
      %p90 = scmp.eq.s32.totalorder %s21, 0
      %p91 = por %p89, %p90
      %p92 = scmp.ne.s32.totalorder %s78, %s79
      %p93 = scmp.eq.s32.totalorder %s22, 5
      %p94 = por %p92, %p93
      %p96 = scmp.ne.s32.totalorder %s79, %s95
      %p97 = scmp.eq.s32.totalorder %s22, 0
      %p98 = por %p96, %p97
      %s100 = sadd.s32 %s99, 1
      %p103 = scmp.eq.s32.totalorder %s16, 5
      %p104 = scmp.ne.s32.totalorder %s99, %s101
      %p105 = scmp.eq.s32.totalorder %s16, 0
      %p106 = por %p104, %p105
      %p107 = scmp.ne.s32.totalorder %s99, %s101
      %p108 = scmp.eq.s32.totalorder %s21, 5
      %p109 = por %p107, %p108
      %p110 = scmp.ne.s32.totalorder %s101, %s102
      %p111 = scmp.eq.s32.totalorder %s21, 0
      %p112 = por %p110, %p111
      %p113 = scmp.ne.s32.totalorder %s101, %s102
      %p114 = scmp.eq.s32.totalorder %s22, 5
      %p115 = por %p113, %p114
      %p117 = scmp.ne.s32.totalorder %s102, %s116
      %p118 = scmp.eq.s32.totalorder %s22, 0
      %p119 = por %p117, %p118
      %s120 = ssub.s32 %s24, %s38
      %p121 = scmp.eq.s32.totalorder %s120, 0
      %s123 = sadd.s32 %s122, 1
      %s124 = scalar_select %p121, %s122, %s123
      %p127 = pneg %p121
      %p128 = scmp.eq.s32.totalorder %s16, 5
      %p129 = por %p127, %p128
      %p130 = scmp.ne.s32.totalorder %s122, %s125
      %p131 = scmp.eq.s32.totalorder %s16, 0
      %p132 = por %p130, %p131
      %p133 = scmp.ne.s32.totalorder %s122, %s125
      %p134 = scmp.eq.s32.totalorder %s21, 5
      %p135 = por %p133, %p134
      %p136 = scmp.ne.s32.totalorder %s125, %s126
      %p137 = scmp.eq.s32.totalorder %s21, 0
      %p138 = por %p136, %p137
      %p139 = scmp.ne.s32.totalorder %s125, %s126
      %p140 = scmp.eq.s32.totalorder %s22, 5
      %p141 = por %p139, %p140
      %p143 = scmp.ne.s32.totalorder %s126, %s142
      %p144 = scmp.eq.s32.totalorder %s22, 0
      %p145 = por %p143, %p144
      %s146 = ssub.s32 %s23, %s42
      %s147 = ssub.s32 %s24, %s38
      %s148 = sor.u32 %s146, %s147
      %p149 = scmp.eq.s32.totalorder %s148, 0
      %s151 = sadd.s32 %s150, 1
      %s152 = scalar_select %p149, %s150, %s151
      %p155 = pneg %p149
      %p156 = scmp.eq.s32.totalorder %s16, 5
      %p157 = por %p155, %p156
      %p158 = scmp.ne.s32.totalorder %s150, %s153
      %p159 = scmp.eq.s32.totalorder %s16, 0
      %p160 = por %p158, %p159
      %p161 = scmp.ne.s32.totalorder %s150, %s153
      %p162 = scmp.eq.s32.totalorder %s21, 5
      %p163 = por %p161, %p162
      %p164 = scmp.ne.s32.totalorder %s153, %s154
      %p165 = scmp.eq.s32.totalorder %s21, 0
      %p166 = por %p164, %p165
      %p167 = scmp.ne.s32.totalorder %s153, %s154
      %p168 = scmp.eq.s32.totalorder %s22, 5
      %p169 = por %p167, %p168
      %p171 = scmp.ne.s32.totalorder %s154, %s170
      %p172 = scmp.eq.s32.totalorder %s22, 0
      %p173 = por %p171, %p172
      %p174 = scmp.le.s32.totalorder 1, %s16
      %p175 = scmp.lt.s32.totalorder %s16, 7
      %p176 = pnand %p174, %p175
      %p177 = pneg %p176
      // Predicated region
      $region9: #{_opencv_pad_resize_impl.1} parent=5 // pred_check
        _
      $region10: #{_opencv_pad_resize_impl.1} parent=5 // pred_check_branch
        %179 = sbr.rel (%p176) target = $region12
      $region11: #{_opencv_pad_resize_impl.1} parent=5 // pred_region
        %s180 = ssub.s32 %s16, 1
        // Predicated region
        $region13: #{_opencv_pad_resize_impl.1} parent=11 // pred_check
          %p181 = pneg %p112
        $region14: #{_opencv_pad_resize_impl.1} parent=11 // pred_check_branch
          %183 = sbr.rel (%p181) target = $region16
        $region15: #{_opencv_pad_resize_impl.1} parent=11 // pred_region
          _
        $region16: #{_opencv_pad_resize_impl.1} parent=11 // pred_fallthru
          _
      $region12: #{_opencv_pad_resize_impl.1} parent=5 // pred_fallthru
        _
      %p184 = scmp.lt.s32.totalorder %s16, 6
      // Predicated region
      $region17: #{_opencv_pad_resize_impl.1} parent=5 // pred_check
        %p185 = pneg %p184
      $region18: #{_opencv_pad_resize_impl.1} parent=5 // pred_check_branch
        %187 = sbr.rel (%p185) target = $region20
      $region19: #{_opencv_pad_resize_impl.1} parent=5 // pred_region
        // Predicated region
        $region21: #{_opencv_pad_resize_impl.1} parent=19 // pred_check
          %p188 = pneg %p57
        $region22: #{_opencv_pad_resize_impl.1} parent=19 // pred_check_branch
          %190 = sbr.rel (%p188) target = $region24
        $region23: #{_opencv_pad_resize_impl.1} parent=19 // pred_region
          %s191 = smul.u32 8, %s24
          %s192 = smul.u32 2, %s25
          %p193 = scmp.lt.s32.totalorder %s191, 15
          %s194 = scalar_select %p193, %s191, 15
          %p195 = scmp.lt.s32.totalorder %s192, 1
          %s196 = scalar_select %p195, %s192, 1
          %s197 = smul.addr %s194, 2
          %s198 = sadd.s32 %s196, %s197
          %s199 = smul.addr %s198, 8
          %s200 = scalar_lea.vmem %s0, %s199
          %s201 = smul.u32 8, %s24
          %s202 = smul.u32 2, %s25
        $region24: #{_opencv_pad_resize_impl.1} parent=19 // pred_fallthru
          _
        // Predicated region
        $region25: #{_opencv_pad_resize_impl.1} parent=19 // pred_check
          %p203 = pneg %p85
        $region26: #{_opencv_pad_resize_impl.1} parent=19 // pred_check_branch
          %205 = sbr.rel (%p203) target = $region28
        $region27: #{_opencv_pad_resize_impl.1} parent=19 // pred_region
          %s206 = smul.u32 5, %s25
          %p207 = scmp.lt.s32.totalorder %s23, 2
          %s208 = scalar_select %p207, %s23, 2
          %p209 = scmp.lt.s32.totalorder %s206, 4
          %s210 = scalar_select %p209, %s206, 4
          %s211 = smul.addr %s210, 2
          %s212 = smul.addr %s208, 10
          %s213 = sadd.s32 %s211, %s212
          %s214 = smul.addr %s213, 8
          %s215 = scalar_lea.vmem %s1, %s214
          %s216 = smul.u32 5, %s25
        $region28: #{_opencv_pad_resize_impl.1} parent=19 // pred_fallthru
          _
        // Predicated region
        $region29: #{_opencv_pad_resize_impl.1} parent=19 // pred_check
          %p217 = pneg %p132
        $region30: #{_opencv_pad_resize_impl.1} parent=19 // pred_check_branch
          %219 = sbr.rel (%p217) target = $region32
        $region31: #{_opencv_pad_resize_impl.1} parent=19 // pred_region
          %s220 = sand.u32 %s122, 1
          %s221 = scalar_lea.sflag [#allocation4], %s220
          %s222 = sand.u32 %s122, 1
          %s223 = smul.addr %s222, 64
          %s224 = scalar_lea.vmem [#allocation3], %s223
          %s225 = smul.u32 8, %s24
          %s227 = ssub.s32 1024, 1024
          %228 = vsyncadd %s221, %s227
          %s229 = smul.addr %s225, 128
          %s230 = scalar_lea.hbm %s3, %s229
          %s231 = sshll.u32 %s224, 4
          %s232 = int_to_ptr.vmem [resolvable:$true] %s231
          %237 = dma.hbm_to_vmem [thread:$0]  %s230, 1024, %s232, %s221, 128, 128, 8
        $region32: #{_opencv_pad_resize_impl.1} parent=19 // pred_fallthru
          _
      $region20: #{_opencv_pad_resize_impl.1} parent=5 // pred_fallthru
        _
      %p238 = scmp.le.s32.totalorder 1, %s16
      %p239 = scmp.lt.s32.totalorder %s16, 7
      %p240 = pnand %p238, %p239
      %p241 = pneg %p240
      // Predicated region
      $region33: #{_opencv_pad_resize_impl.1} parent=5 // pred_check
        _
      $region34: #{_opencv_pad_resize_impl.1} parent=5 // pred_check_branch
        %243 = sbr.rel (%p240) target = $region36
      $region35: #{_opencv_pad_resize_impl.1} parent=5 // pred_region
        %s244 = ssub.s32 %s16, 1
        %s245 = sand.u32 %s125, 1
        %s246 = scalar_lea.sflag [#allocation4], %s245
        %s247 = sand.u32 %s125, 1
        %s248 = smul.addr %s247, 64
        %s249 = scalar_lea.vmem [#allocation3], %s248
        // Predicated region
        $region37: #{_opencv_pad_resize_impl.1} parent=35 // pred_check
          %p250 = pneg %p138
        $region38: #{_opencv_pad_resize_impl.1} parent=35 // pred_check_branch
          %252 = sbr.rel (%p250) target = $region40
        $region39: #{_opencv_pad_resize_impl.1} parent=35 // pred_region
          %253 = dma.done %s246, 1024
        $region40: #{_opencv_pad_resize_impl.1} parent=35 // pred_fallthru
          _
        %s254 = smul.u32 8, %s27
        %s255 = smul.u32 2, %s28
        %p256 = scmp.lt.s32.totalorder %s254, 15
        %s257 = scalar_select %p256, %s254, 15
        %p258 = scmp.lt.s32.totalorder %s255, 1
        %s259 = scalar_select %p258, %s255, 1
        %s260 = smul.addr %s257, 2
        %s261 = sadd.s32 %s259, %s260
        %s262 = smul.addr %s261, 8
        %s263 = scalar_lea.vmem %s0, %s262
        %p264 = pneg %p63
        %p265 = pneg %p60
        %s266 = smul.u32 5, %s28
        %p267 = scmp.lt.s32.totalorder %s26, 2
        %s268 = scalar_select %p267, %s26, 2
        %p269 = scmp.lt.s32.totalorder %s266, 4
        %s270 = scalar_select %p269, %s266, 4
        %s271 = smul.addr %s270, 2
        %s272 = smul.addr %s268, 10
        %s273 = sadd.s32 %s271, %s272
        %s274 = smul.addr %s273, 8
        %s275 = scalar_lea.vmem %s1, %s274
        %p276 = pneg %p91
        %p277 = pneg %p88
        %p278 = pneg %p112
        %p279 = pneg %p109
        %s280 = sand.u32 %s125, 1
        %s281 = scalar_lea.sflag [#allocation4], %s280
        %s282 = sand.u32 %s125, 1
        %s283 = smul.addr %s282, 64
        %s284 = scalar_lea.vmem [#allocation3], %s283
        %p285 = pneg %p138
        %p286 = pneg %p135
        %p287 = pneg %p166
        %p288 = pneg %p163
        %s289 = sand.u32 %s153, 1
        %s290 = scalar_lea.sflag [#allocation5], %s289
        %s291 = sand.u32 %s153, 1
        %s292 = smul.addr %s291, 64
        %s293 = scalar_lea.vmem [#allocation6], %s292
        %s294 = smul.u32 8, %s27
        %s295 = smul.u32 2, %s28
        %p296 = scmp.lt.s32.totalorder %s294, 15
        %s297 = scalar_select %p296, %s294, 15
        %p298 = scmp.lt.s32.totalorder %s295, 1
        %s299 = scalar_select %p298, %s295, 1
        %s300 = smul.addr %s297, 2
        %s301 = sadd.s32 %s299, %s300
        %s302 = smul.addr %s301, 8
        %s303 = scalar_lea.vmem %s0, %s302
        %s304 = smul.u32 8, %s27
        %s305 = smul.u32 2, %s28
        %s306 = smul.u32 5, %s28
        %p307 = scmp.lt.s32.totalorder %s26, 2
        %s308 = scalar_select %p307, %s26, 2
        %p309 = scmp.lt.s32.totalorder %s306, 4
        %s310 = scalar_select %p309, %s306, 4
        %s311 = smul.addr %s310, 2
        %s312 = smul.addr %s308, 10
        %s313 = sadd.s32 %s311, %s312
        %s314 = smul.addr %s313, 8
        %s315 = scalar_lea.vmem %s1, %s314
        %s316 = smul.u32 5, %s28
        %s317 = smul.u32 8, %s27
        %s318 = smul.u32 8, %s27
        %p319 = scmp.eq.s32.totalorder %s28, 0
        // Predicated region
        $region41: #{_opencv_pad_resize_impl.1} parent=35 // pred_check
          %p320 = pneg %p319
        $region42: #{_opencv_pad_resize_impl.1} parent=35 // pred_check_branch
          %322 = sbr.rel (%p320) target = $region44
        $region43: #{_opencv_pad_resize_impl.1} parent=35 // pred_region
          %323 = vst [vmem:[#allocation2] sm:$0xff] 0.0
          %324 = vst [vmem:[#allocation2 + $0x8] sm:$0xff] 0.0
          %325 = vst [vmem:[#allocation2 + $0x10] sm:$0xff] 0.0
          %326 = vst [vmem:[#allocation2 + $0x18] sm:$0xff] 0.0
          %327 = vst [vmem:[#allocation2 + $0x20] sm:$0xff] 0.0
          %328 = vst [vmem:[#allocation2 + $0x28] sm:$0xff] 0.0
          %329 = vst [vmem:[#allocation2 + $0x30] sm:$0xff] 0.0
          %330 = vst [vmem:[#allocation2 + $0x38] sm:$0xff] 0.0
        $region44: #{_opencv_pad_resize_impl.1} parent=35 // pred_fallthru
          _
        %v331 = vld [vmem:[%s315] sm:$0xff]
        %v332 = vld [vmem:[%s315 + $0x8] sm:$0xff]
        %v333 = vld [vmem:[%s315 + $0x10] sm:$0xff]
        %v334 = vld [vmem:[%s315 + $0x18] sm:$0xff]
        %v335 = vld [vmem:[%s315 + $0x20] sm:$0xff]
        %v336 = vld [vmem:[%s315 + $0x28] sm:$0xff]
        %v337 = vld [vmem:[%s315 + $0x30] sm:$0xff]
        %v338 = vld [vmem:[%s315 + $0x38] sm:$0xff]
        %v339 = vld [vmem:[%s315 + $0x40] sm:$0xff]
        %v340 = vld [vmem:[%s315 + $0x48] sm:$0xff]
        %v341 = vunpack.c.0.s8 %v331
        %v342 = vunpack.c.0.s8 %v332
        %v343 = vunpack.c.1.s8 %v331
        %v344 = vunpack.c.1.s8 %v332
        %v345 = vunpack.c.2.s8 %v331
        %v346 = vunpack.c.2.s8 %v332
        %v347 = vunpack.c.3.s8 %v331
        %v348 = vunpack.c.3.s8 %v332
        %v349 = vunpack.c.0.s8 %v333
        %v350 = vunpack.c.0.s8 %v334
        %v351 = vunpack.c.1.s8 %v333
        %v352 = vunpack.c.1.s8 %v334
        %v353 = vunpack.c.2.s8 %v333
        %v354 = vunpack.c.2.s8 %v334
        %v355 = vunpack.c.3.s8 %v333
        %v356 = vunpack.c.3.s8 %v334
        %v357 = vunpack.c.0.s8 %v335
        %v358 = vunpack.c.0.s8 %v336
        %v359 = vunpack.c.1.s8 %v335
        %v360 = vunpack.c.1.s8 %v336
        %v361 = vunpack.c.2.s8 %v335
        %v362 = vunpack.c.2.s8 %v336
        %v363 = vunpack.c.3.s8 %v335
        %v364 = vunpack.c.3.s8 %v336
        %v365 = vunpack.c.0.s8 %v337
        %v366 = vunpack.c.0.s8 %v338
        %v367 = vunpack.c.1.s8 %v337
        %v368 = vunpack.c.1.s8 %v338
        %v369 = vunpack.c.2.s8 %v337
        %v370 = vunpack.c.2.s8 %v338
        %v371 = vunpack.c.3.s8 %v337
        %v372 = vunpack.c.3.s8 %v338
        %v373 = vunpack.c.0.s8 %v339
        %v374 = vunpack.c.0.s8 %v340
        %v375 = vunpack.c.1.s8 %v339
        %v376 = vunpack.c.1.s8 %v340
        %v377 = vunpack.c.2.s8 %v339
        %v378 = vunpack.c.2.s8 %v340
        %v379 = vunpack.c.3.s8 %v339
        %v380 = vunpack.c.3.s8 %v340
        %v381 = vand.u32 %v341, 255
        %v382 = vand.u32 %v342, 255
        %v383 = vand.u32 %v343, 255
        %v384 = vand.u32 %v344, 255
        %v385 = vand.u32 %v345, 255
        %v386 = vand.u32 %v346, 255
        %v387 = vand.u32 %v347, 255
        %v388 = vand.u32 %v348, 255
        %v389 = vand.u32 %v349, 255
        %v390 = vand.u32 %v350, 255
        %v391 = vand.u32 %v351, 255
        %v392 = vand.u32 %v352, 255
        %v393 = vand.u32 %v353, 255
        %v394 = vand.u32 %v354, 255
        %v395 = vand.u32 %v355, 255
        %v396 = vand.u32 %v356, 255
        %v397 = vand.u32 %v357, 255
        %v398 = vand.u32 %v358, 255
        %v399 = vand.u32 %v359, 255
        %v400 = vand.u32 %v360, 255
        %v401 = vand.u32 %v361, 255
        %v402 = vand.u32 %v362, 255
        %v403 = vand.u32 %v363, 255
        %v404 = vand.u32 %v364, 255
        %v405 = vand.u32 %v365, 255
        %v406 = vand.u32 %v366, 255
        %v407 = vand.u32 %v367, 255
        %v408 = vand.u32 %v368, 255
        %v409 = vand.u32 %v369, 255
        %v410 = vand.u32 %v370, 255
        %v411 = vand.u32 %v371, 255
        %v412 = vand.u32 %v372, 255
        %v413 = vand.u32 %v373, 255
        %v414 = vand.u32 %v374, 255
        %v415 = vand.u32 %v375, 255
        %v416 = vand.u32 %v376, 255
        %v417 = vand.u32 %v377, 255
        %v418 = vand.u32 %v378, 255
        %v419 = vand.u32 %v379, 255
        %v420 = vand.u32 %v380, 255
        %v421 = vcvt.s32.f32 %v381
        %v422 = vcvt.s32.f32 %v382
        %v423 = vcvt.s32.f32 %v383
        %v424 = vcvt.s32.f32 %v384
        %v425 = vcvt.s32.f32 %v385
        %v426 = vcvt.s32.f32 %v386
        %v427 = vcvt.s32.f32 %v387
        %v428 = vcvt.s32.f32 %v388
        %v429 = vcvt.s32.f32 %v389
        %v430 = vcvt.s32.f32 %v390
        %v431 = vcvt.s32.f32 %v391
        %v432 = vcvt.s32.f32 %v392
        %v433 = vcvt.s32.f32 %v393
        %v434 = vcvt.s32.f32 %v394
        %v435 = vcvt.s32.f32 %v395
        %v436 = vcvt.s32.f32 %v396
        %v437 = vcvt.s32.f32 %v397
        %v438 = vcvt.s32.f32 %v398
        %v439 = vcvt.s32.f32 %v399
        %v440 = vcvt.s32.f32 %v400
        %v441 = vcvt.s32.f32 %v401
        %v442 = vcvt.s32.f32 %v402
        %v443 = vcvt.s32.f32 %v403
        %v444 = vcvt.s32.f32 %v404
        %v445 = vcvt.s32.f32 %v405
        %v446 = vcvt.s32.f32 %v406
        %v447 = vcvt.s32.f32 %v407
        %v448 = vcvt.s32.f32 %v408
        %v449 = vcvt.s32.f32 %v409
        %v450 = vcvt.s32.f32 %v410
        %v451 = vcvt.s32.f32 %v411
        %v452 = vcvt.s32.f32 %v412
        %v453 = vcvt.s32.f32 %v413
        %v454 = vcvt.s32.f32 %v414
        %v455 = vcvt.s32.f32 %v415
        %v456 = vcvt.s32.f32 %v416
        %v457 = vcvt.s32.f32 %v417
        %v458 = vcvt.s32.f32 %v418
        %v459 = vcvt.s32.f32 %v419
        %v460 = vcvt.s32.f32 %v420
        %v461 = vld [vmem:[%s2] sm:$0xff]
        %v462 = vld [vmem:[%s2 + $0x8] sm:$0xff]
        %v463 = vld [vmem:[%s2 + $0x10] sm:$0xff]
        %v464 = vld [vmem:[%s2 + $0x18] sm:$0xff]
        %v465 = vld [vmem:[%s2 + $0x20] sm:$0xff]
        %v466 = vld [vmem:[%s2 + $0x28] sm:$0xff]
        %v467 = vld [vmem:[%s2 + $0x30] sm:$0xff]
        %v468 = vld [vmem:[%s2 + $0x38] sm:$0xff]
        %v469 = vld [vmem:[%s2 + $0x40] sm:$0xff]
        %v470 = vld [vmem:[%s2 + $0x48] sm:$0xff]
        %v471 = vld [vmem:[%s2 + $0x50] sm:$0xff]
        %v472 = vld [vmem:[%s2 + $0x58] sm:$0xff]
        %v473 = vld [vmem:[%s2 + $0x60] sm:$0xff]
        %v474 = vld [vmem:[%s2 + $0x68] sm:$0xff]
        %v475 = vld [vmem:[%s2 + $0x70] sm:$0xff]
        %v476 = vld [vmem:[%s2 + $0x78] sm:$0xff]
        %v477 = vld [vmem:[%s2 + $0x80] sm:$0xff]
        %v478 = vld [vmem:[%s2 + $0x88] sm:$0xff]
        %v479 = vld [vmem:[%s2 + $0x90] sm:$0xff]
        %v480 = vld [vmem:[%s2 + $0x98] sm:$0xff]
        %v481 = vld [vmem:[%s2 + $0xa0] sm:$0xff]
        %v482 = vld [vmem:[%s2 + $0xa8] sm:$0xff]
        %v483 = vld [vmem:[%s2 + $0xb0] sm:$0xff]
        %v484 = vld [vmem:[%s2 + $0xb8] sm:$0xff]
        %vm485 = vcmask 523264
        %v487 = vsel %vm485, %v422, 0
        %v490 = vsel %vm485, %v424, 0
        %v493 = vsel %vm485, %v426, 0
        %v496 = vsel %vm485, %v428, 0
        %v499 = vsel %vm485, %v430, 0
        %v502 = vsel %vm485, %v432, 0
        %v505 = vsel %vm485, %v434, 0
        %v508 = vsel %vm485, %v436, 0
        %v511 = vsel %vm485, %v438, 0
        %v514 = vsel %vm485, %v440, 0
        %v517 = vsel %vm485, %v442, 0
        %v520 = vsel %vm485, %v444, 0
        %v523 = vsel %vm485, %v446, 0
        %v526 = vsel %vm485, %v448, 0
        %v529 = vsel %vm485, %v450, 0
        %v532 = vsel %vm485, %v452, 0
        %v535 = vsel %vm485, %v454, 0
        %v538 = vsel %vm485, %v456, 0
        %v541 = vsel %vm485, %v458, 0
        %v544 = vsel %vm485, %v460, 0
        %546 = vmatprep.subr.mxu0 0.0
        %v547 = vand.u32 %v476, 4294901760
        %548 = vmatpush1.msra.mxu0 %v547
        %549 = vmatprep.subr.mxu0 0.0
        %v550 = vand.u32 %v475, 4294901760
        %551 = vmatpush1.msra.mxu0 %v550
        %552 = vmatprep.subr.mxu0 0.0
        %v553 = vand.u32 %v474, 4294901760
        %554 = vmatpush1.msra.mxu0 %v553
        %555 = vmatprep.subr.mxu0 0.0
        %v556 = vand.u32 %v473, 4294901760
        %557 = vmatpush1.msra.mxu0 %v556
        %558 = vmatprep.subr.mxu0 0.0
        %v559 = vand.u32 %v472, 4294901760
        %560 = vmatpush1.msra.mxu0 %v559
        %561 = vmatprep.subr.mxu0 0.0
        %v562 = vand.u32 %v471, 4294901760
        %563 = vmatpush1.msra.mxu0 %v562
        %564 = vmatprep.subr.mxu0 0.0
        %v565 = vand.u32 %v470, 4294901760
        %566 = vmatpush1.msra.mxu0 %v565
        %567 = vmatprep.subr.mxu0 0.0
        %v568 = vand.u32 %v469, 4294901760
        %569 = vmatpush1.msra.mxu0 %v568
        %570 = vmatprep.subr.mxu0 0.0
        %v571 = vand.u32 %v468, 4294901760
        %572 = vmatpush1.msra.mxu0 %v571
        %573 = vmatprep.subr.mxu0 0.0
        %v574 = vand.u32 %v467, 4294901760
        %575 = vmatpush1.msra.mxu0 %v574
        %576 = vmatprep.subr.mxu0 0.0
        %v577 = vand.u32 %v466, 4294901760
        %578 = vmatpush1.msra.mxu0 %v577
        %579 = vmatprep.subr.mxu0 0.0
        %v580 = vand.u32 %v465, 4294901760
        %581 = vmatpush1.msra.mxu0 %v580
        %582 = vmatprep.subr.mxu0 0.0
        %v583 = vand.u32 %v464, 4294901760
        %584 = vmatpush1.msra.mxu0 %v583
        %585 = vmatprep.subr.mxu0 0.0
        %v586 = vand.u32 %v463, 4294901760
        %587 = vmatpush1.msra.mxu0 %v586
        %588 = vmatprep.subr.mxu0 0.0
        %v589 = vand.u32 %v462, 4294901760
        %590 = vmatpush1.msra.mxu0 %v589
        %591 = vmatprep.subr.mxu0 0.0
        %v592 = vand.u32 %v461, 4294901760
        %593 = vmatpush1.msra.mxu0 %v592
        %594 = vmatprep.subr.mxu0 0.0
        %595 = vmatpush2.msra.mxu0 0.0
        %596 = vmatprep.subr.mxu0 0.0
        %597 = vmatpush2.msra.mxu0 0.0
        %598 = vmatprep.subr.mxu0 0.0
        %599 = vmatpush2.msra.mxu0 0.0
        %600 = vmatprep.subr.mxu0 0.0
        %601 = vmatpush2.msra.mxu0 0.0
        %602 = vmatprep.subr.mxu0 0.0
        %603 = vmatpush2.msra.mxu0 0.0
        %604 = vmatprep.subr.mxu0 0.0
        %605 = vmatpush2.msra.mxu0 0.0
        %606 = vmatprep.subr.mxu0 0.0
        %607 = vmatpush2.msra.mxu0 0.0
        %608 = vmatprep.subr.mxu0 0.0
        %609 = vmatpush2.msra.mxu0 0.0
        %610 = vmatprep.subr.mxu0 0.0
        %v611 = vand.u32 %v484, 4294901760
        %612 = vmatpush2.msra.mxu0 %v611
        %613 = vmatprep.subr.mxu0 0.0
        %v614 = vand.u32 %v483, 4294901760
        %615 = vmatpush2.msra.mxu0 %v614
        %616 = vmatprep.subr.mxu0 0.0
        %v617 = vand.u32 %v482, 4294901760
        %618 = vmatpush2.msra.mxu0 %v617
        %619 = vmatprep.subr.mxu0 0.0
        %v620 = vand.u32 %v481, 4294901760
        %621 = vmatpush2.msra.mxu0 %v620
        %622 = vmatprep.subr.mxu0 0.0
        %v623 = vand.u32 %v480, 4294901760
        %624 = vmatpush2.msra.mxu0 %v623
        %625 = vmatprep.subr.mxu0 0.0
        %v626 = vand.u32 %v479, 4294901760
        %627 = vmatpush2.msra.mxu0 %v626
        %628 = vmatprep.subr.mxu0 0.0
        %v629 = vand.u32 %v478, 4294901760
        %630 = vmatpush2.msra.mxu0 %v629
        %631 = vmatprep.subr.mxu0 0.0
        %v632 = vand.u32 %v477, 4294901760
        %633 = vmatpush2.msra.mxu0 %v632
        %v634 = vand.u32 %v487, 4294901760
        %v635 = vsub.f32 %v487, %v634
        %v636 = vand.u32 %v635, 4294901760
        %v637 = vsub.f32 %v635, %v636
        %v638 = vand.u32 %v637, 4294901760
        %639 = vmatprep.mubr.f32.mxu0 %v638
        %v640 = vand.u32 %v421, 4294901760
        %v641 = vsub.f32 %v421, %v640
        %v642 = vand.u32 %v641, 4294901760
        %v643 = vsub.f32 %v641, %v642
        %v644 = vand.u32 %v643, 4294901760
        %645 = vmatmul.mubr.f32.gmra.mxu0 %v644
        %v646 = vpop.f32.mrf.mxu0
        %v647 = vadd.f32 0.0, %v646
        %v648 = vpop.f32.mrf.mxu0
        %v649 = vand.u32 %v490, 4294901760
        %v650 = vsub.f32 %v490, %v649
        %v651 = vand.u32 %v650, 4294901760
        %v652 = vsub.f32 %v650, %v651
        %v653 = vand.u32 %v652, 4294901760
        %654 = vmatprep.mubr.f32.mxu0 %v653
        %v655 = vand.u32 %v423, 4294901760
        %v656 = vsub.f32 %v423, %v655
        %v657 = vand.u32 %v656, 4294901760
        %v658 = vsub.f32 %v656, %v657
        %v659 = vand.u32 %v658, 4294901760
        %660 = vmatmul.mubr.f32.gmra.mxu0 %v659
        %v661 = vpop.f32.mrf.mxu0
        %v662 = vadd.f32 0.0, %v661
        %v663 = vpop.f32.mrf.mxu0
        %v664 = vand.u32 %v493, 4294901760
        %v665 = vsub.f32 %v493, %v664
        %v666 = vand.u32 %v665, 4294901760
        %v667 = vsub.f32 %v665, %v666
        %v668 = vand.u32 %v667, 4294901760
        %669 = vmatprep.mubr.f32.mxu0 %v668
        %v670 = vand.u32 %v425, 4294901760
        %v671 = vsub.f32 %v425, %v670
        %v672 = vand.u32 %v671, 4294901760
        %v673 = vsub.f32 %v671, %v672
        %v674 = vand.u32 %v673, 4294901760
        %675 = vmatmul.mubr.f32.gmra.mxu0 %v674
        %v676 = vpop.f32.mrf.mxu0
        %v677 = vadd.f32 0.0, %v676
        %v678 = vpop.f32.mrf.mxu0
        %v679 = vand.u32 %v496, 4294901760
        %v680 = vsub.f32 %v496, %v679
        %v681 = vand.u32 %v680, 4294901760
        %v682 = vsub.f32 %v680, %v681
        %v683 = vand.u32 %v682, 4294901760
        %684 = vmatprep.mubr.f32.mxu0 %v683
        %v685 = vand.u32 %v427, 4294901760
        %v686 = vsub.f32 %v427, %v685
        %v687 = vand.u32 %v686, 4294901760
        %v688 = vsub.f32 %v686, %v687
        %v689 = vand.u32 %v688, 4294901760
        %690 = vmatmul.mubr.f32.gmra.mxu0 %v689
        %v691 = vpop.f32.mrf.mxu0
        %v692 = vadd.f32 0.0, %v691
        %v693 = vpop.f32.mrf.mxu0
        %v694 = vand.u32 %v499, 4294901760
        %v695 = vsub.f32 %v499, %v694
        %v696 = vand.u32 %v695, 4294901760
        %v697 = vsub.f32 %v695, %v696
        %v698 = vand.u32 %v697, 4294901760
        %699 = vmatprep.mubr.f32.mxu0 %v698
        %v700 = vand.u32 %v429, 4294901760
        %v701 = vsub.f32 %v429, %v700
        %v702 = vand.u32 %v701, 4294901760
        %v703 = vsub.f32 %v701, %v702
        %v704 = vand.u32 %v703, 4294901760
        %705 = vmatmul.mubr.f32.gmra.mxu0 %v704
        %v706 = vpop.f32.mrf.mxu0
        %v707 = vadd.f32 0.0, %v706
        %v708 = vpop.f32.mrf.mxu0
        %v709 = vand.u32 %v502, 4294901760
        %v710 = vsub.f32 %v502, %v709
        %v711 = vand.u32 %v710, 4294901760
        %v712 = vsub.f32 %v710, %v711
        %v713 = vand.u32 %v712, 4294901760
        %714 = vmatprep.mubr.f32.mxu0 %v713
        %v715 = vand.u32 %v431, 4294901760
        %v716 = vsub.f32 %v431, %v715
        %v717 = vand.u32 %v716, 4294901760
        %v718 = vsub.f32 %v716, %v717
        %v719 = vand.u32 %v718, 4294901760
        %720 = vmatmul.mubr.f32.gmra.mxu0 %v719
        %v721 = vpop.f32.mrf.mxu0
        %v722 = vadd.f32 0.0, %v721
        %v723 = vpop.f32.mrf.mxu0
        %v724 = vand.u32 %v505, 4294901760
        %v725 = vsub.f32 %v505, %v724
        %v726 = vand.u32 %v725, 4294901760
        %v727 = vsub.f32 %v725, %v726
        %v728 = vand.u32 %v727, 4294901760
        %729 = vmatprep.mubr.f32.mxu0 %v728
        %v730 = vand.u32 %v433, 4294901760
        %v731 = vsub.f32 %v433, %v730
        %v732 = vand.u32 %v731, 4294901760
        %v733 = vsub.f32 %v731, %v732
        %v734 = vand.u32 %v733, 4294901760
        %735 = vmatmul.mubr.f32.gmra.mxu0 %v734
        %v736 = vpop.f32.mrf.mxu0
        %v737 = vadd.f32 0.0, %v736
        %v738 = vpop.f32.mrf.mxu0
        %v739 = vand.u32 %v508, 4294901760
        %v740 = vsub.f32 %v508, %v739
        %v741 = vand.u32 %v740, 4294901760
        %v742 = vsub.f32 %v740, %v741
        %v743 = vand.u32 %v742, 4294901760
        %744 = vmatprep.mubr.f32.mxu0 %v743
        %v745 = vand.u32 %v435, 4294901760
        %v746 = vsub.f32 %v435, %v745
        %v747 = vand.u32 %v746, 4294901760
        %v748 = vsub.f32 %v746, %v747
        %v749 = vand.u32 %v748, 4294901760
        %750 = vmatmul.mubr.f32.gmra.mxu0 %v749
        %v751 = vpop.f32.mrf.mxu0
        %v752 = vadd.f32 0.0, %v751
        %v753 = vpop.f32.mrf.mxu0
        %v754 = vand.u32 %v511, 4294901760
        %v755 = vsub.f32 %v511, %v754
        %v756 = vand.u32 %v755, 4294901760
        %v757 = vsub.f32 %v755, %v756
        %v758 = vand.u32 %v757, 4294901760
        %759 = vmatprep.mubr.f32.mxu0 %v758
        %v760 = vand.u32 %v437, 4294901760
        %v761 = vsub.f32 %v437, %v760
        %v762 = vand.u32 %v761, 4294901760
        %v763 = vsub.f32 %v761, %v762
        %v764 = vand.u32 %v763, 4294901760
        %765 = vmatmul.mubr.f32.gmra.mxu0 %v764
        %v766 = vpop.f32.mrf.mxu0
        %v767 = vadd.f32 0.0, %v766
        %v768 = vpop.f32.mrf.mxu0
        %v769 = vand.u32 %v514, 4294901760
        %v770 = vsub.f32 %v514, %v769
        %v771 = vand.u32 %v770, 4294901760
        %v772 = vsub.f32 %v770, %v771
        %v773 = vand.u32 %v772, 4294901760
        %774 = vmatprep.mubr.f32.mxu0 %v773
        %v775 = vand.u32 %v439, 4294901760
        %v776 = vsub.f32 %v439, %v775
        %v777 = vand.u32 %v776, 4294901760
        %v778 = vsub.f32 %v776, %v777
        %v779 = vand.u32 %v778, 4294901760
        %780 = vmatmul.mubr.f32.gmra.mxu0 %v779
        %v781 = vpop.f32.mrf.mxu0
        %v782 = vadd.f32 0.0, %v781
        %v783 = vpop.f32.mrf.mxu0
        %v784 = vand.u32 %v517, 4294901760
        %v785 = vsub.f32 %v517, %v784
        %v786 = vand.u32 %v785, 4294901760
        %v787 = vsub.f32 %v785, %v786
        %v788 = vand.u32 %v787, 4294901760
        %789 = vmatprep.mubr.f32.mxu0 %v788
        %v790 = vand.u32 %v441, 4294901760
        %v791 = vsub.f32 %v441, %v790
        %v792 = vand.u32 %v791, 4294901760
        %v793 = vsub.f32 %v791, %v792
        %v794 = vand.u32 %v793, 4294901760
        %795 = vmatmul.mubr.f32.gmra.mxu0 %v794
        %v796 = vpop.f32.mrf.mxu0
        %v797 = vadd.f32 0.0, %v796
        %v798 = vpop.f32.mrf.mxu0
        %v799 = vand.u32 %v520, 4294901760
        %v800 = vsub.f32 %v520, %v799
        %v801 = vand.u32 %v800, 4294901760
        %v802 = vsub.f32 %v800, %v801
        %v803 = vand.u32 %v802, 4294901760
        %804 = vmatprep.mubr.f32.mxu0 %v803
        %v805 = vand.u32 %v443, 4294901760
        %v806 = vsub.f32 %v443, %v805
        %v807 = vand.u32 %v806, 4294901760
        %v808 = vsub.f32 %v806, %v807
        %v809 = vand.u32 %v808, 4294901760
        %810 = vmatmul.mubr.f32.gmra.mxu0 %v809
        %v811 = vpop.f32.mrf.mxu0
        %v812 = vadd.f32 0.0, %v811
        %v813 = vpop.f32.mrf.mxu0
        %v814 = vand.u32 %v523, 4294901760
        %v815 = vsub.f32 %v523, %v814
        %v816 = vand.u32 %v815, 4294901760
        %v817 = vsub.f32 %v815, %v816
        %v818 = vand.u32 %v817, 4294901760
        %819 = vmatprep.mubr.f32.mxu0 %v818
        %v820 = vand.u32 %v445, 4294901760
        %v821 = vsub.f32 %v445, %v820
        %v822 = vand.u32 %v821, 4294901760
        %v823 = vsub.f32 %v821, %v822
        %v824 = vand.u32 %v823, 4294901760
        %825 = vmatmul.mubr.f32.gmra.mxu0 %v824
        %v826 = vpop.f32.mrf.mxu0
        %v827 = vadd.f32 0.0, %v826
        %v828 = vpop.f32.mrf.mxu0
        %v829 = vand.u32 %v526, 4294901760
        %v830 = vsub.f32 %v526, %v829
        %v831 = vand.u32 %v830, 4294901760
        %v832 = vsub.f32 %v830, %v831
        %v833 = vand.u32 %v832, 4294901760
        %834 = vmatprep.mubr.f32.mxu0 %v833
        %v835 = vand.u32 %v447, 4294901760
        %v836 = vsub.f32 %v447, %v835
        %v837 = vand.u32 %v836, 4294901760
        %v838 = vsub.f32 %v836, %v837
        %v839 = vand.u32 %v838, 4294901760
        %840 = vmatmul.mubr.f32.gmra.mxu0 %v839
        %v841 = vpop.f32.mrf.mxu0
        %v842 = vadd.f32 0.0, %v841
        %v843 = vpop.f32.mrf.mxu0
        %v844 = vand.u32 %v529, 4294901760
        %v845 = vsub.f32 %v529, %v844
        %v846 = vand.u32 %v845, 4294901760
        %v847 = vsub.f32 %v845, %v846
        %v848 = vand.u32 %v847, 4294901760
        %849 = vmatprep.mubr.f32.mxu0 %v848
        %v850 = vand.u32 %v449, 4294901760
        %v851 = vsub.f32 %v449, %v850
        %v852 = vand.u32 %v851, 4294901760
        %v853 = vsub.f32 %v851, %v852
        %v854 = vand.u32 %v853, 4294901760
        %855 = vmatmul.mubr.f32.gmra.mxu0 %v854
        %v856 = vpop.f32.mrf.mxu0
        %v857 = vadd.f32 0.0, %v856
        %v858 = vpop.f32.mrf.mxu0
        %v859 = vand.u32 %v532, 4294901760
        %v860 = vsub.f32 %v532, %v859
        %v861 = vand.u32 %v860, 4294901760
        %v862 = vsub.f32 %v860, %v861
        %v863 = vand.u32 %v862, 4294901760
        %864 = vmatprep.mubr.f32.mxu0 %v863
        %v865 = vand.u32 %v451, 4294901760
        %v866 = vsub.f32 %v451, %v865
        %v867 = vand.u32 %v866, 4294901760
        %v868 = vsub.f32 %v866, %v867
        %v869 = vand.u32 %v868, 4294901760
        %870 = vmatmul.mubr.f32.gmra.mxu0 %v869
        %v871 = vpop.f32.mrf.mxu0
        %v872 = vadd.f32 0.0, %v871
        %v873 = vpop.f32.mrf.mxu0
        %v874 = vand.u32 %v535, 4294901760
        %v875 = vsub.f32 %v535, %v874
        %v876 = vand.u32 %v875, 4294901760
        %v877 = vsub.f32 %v875, %v876
        %v878 = vand.u32 %v877, 4294901760
        %879 = vmatprep.mubr.f32.mxu0 %v878
        %v880 = vand.u32 %v453, 4294901760
        %v881 = vsub.f32 %v453, %v880
        %v882 = vand.u32 %v881, 4294901760
        %v883 = vsub.f32 %v881, %v882
        %v884 = vand.u32 %v883, 4294901760
        %885 = vmatmul.mubr.f32.gmra.mxu0 %v884
        %v886 = vpop.f32.mrf.mxu0
        %v887 = vadd.f32 0.0, %v886
        %v888 = vpop.f32.mrf.mxu0
        %v889 = vand.u32 %v538, 4294901760
        %v890 = vsub.f32 %v538, %v889
        %v891 = vand.u32 %v890, 4294901760
        %v892 = vsub.f32 %v890, %v891
        %v893 = vand.u32 %v892, 4294901760
        %894 = vmatprep.mubr.f32.mxu0 %v893
        %v895 = vand.u32 %v455, 4294901760
        %v896 = vsub.f32 %v455, %v895
        %v897 = vand.u32 %v896, 4294901760
        %v898 = vsub.f32 %v896, %v897
        %v899 = vand.u32 %v898, 4294901760
        %900 = vmatmul.mubr.f32.gmra.mxu0 %v899
        %v901 = vpop.f32.mrf.mxu0
        %v902 = vadd.f32 0.0, %v901
        %v903 = vpop.f32.mrf.mxu0
        %v904 = vand.u32 %v541, 4294901760
        %v905 = vsub.f32 %v541, %v904
        %v906 = vand.u32 %v905, 4294901760
        %v907 = vsub.f32 %v905, %v906
        %v908 = vand.u32 %v907, 4294901760
        %909 = vmatprep.mubr.f32.mxu0 %v908
        %v910 = vand.u32 %v457, 4294901760
        %v911 = vsub.f32 %v457, %v910
        %v912 = vand.u32 %v911, 4294901760
        %v913 = vsub.f32 %v911, %v912
        %v914 = vand.u32 %v913, 4294901760
        %915 = vmatmul.mubr.f32.gmra.mxu0 %v914
        %v916 = vpop.f32.mrf.mxu0
        %v917 = vadd.f32 0.0, %v916
        %v918 = vpop.f32.mrf.mxu0
        %v919 = vand.u32 %v544, 4294901760
        %v920 = vsub.f32 %v544, %v919
        %v921 = vand.u32 %v920, 4294901760
        %v922 = vsub.f32 %v920, %v921
        %v923 = vand.u32 %v922, 4294901760
        %924 = vmatprep.mubr.f32.mxu0 %v923
        %v925 = vand.u32 %v459, 4294901760
        %v926 = vsub.f32 %v459, %v925
        %v927 = vand.u32 %v926, 4294901760
        %v928 = vsub.f32 %v926, %v927
        %v929 = vand.u32 %v928, 4294901760
        %930 = vmatmul.mubr.f32.gmra.mxu0 %v929
        %v931 = vpop.f32.mrf.mxu0
        %v932 = vadd.f32 0.0, %v931
        %v933 = vpop.f32.mrf.mxu0
        %934 = vdwg.mxu0
        %935 = vmatprep.subr.mxu0 0.0
        %v936 = vand.u32 %v476, 4294901760
        %v937 = vsub.f32 %v476, %v936
        %v938 = vand.u32 %v937, 4294901760
        %v939 = vsub.f32 %v937, %v938
        %v940 = vand.u32 %v939, 4294901760
        %941 = vmatpush1.msra.mxu0 %v940
        %942 = vmatprep.subr.mxu0 0.0
        %v943 = vand.u32 %v475, 4294901760
        %v944 = vsub.f32 %v475, %v943
        %v945 = vand.u32 %v944, 4294901760
        %v946 = vsub.f32 %v944, %v945
        %v947 = vand.u32 %v946, 4294901760
        %948 = vmatpush1.msra.mxu0 %v947
        %949 = vmatprep.subr.mxu0 0.0
        %v950 = vand.u32 %v474, 4294901760
        %v951 = vsub.f32 %v474, %v950
        %v952 = vand.u32 %v951, 4294901760
        %v953 = vsub.f32 %v951, %v952
        %v954 = vand.u32 %v953, 4294901760
        %955 = vmatpush1.msra.mxu0 %v954
        %956 = vmatprep.subr.mxu0 0.0
        %v957 = vand.u32 %v473, 4294901760
        %v958 = vsub.f32 %v473, %v957
        %v959 = vand.u32 %v958, 4294901760
        %v960 = vsub.f32 %v958, %v959
        %v961 = vand.u32 %v960, 4294901760
        %962 = vmatpush1.msra.mxu0 %v961
        %963 = vmatprep.subr.mxu0 0.0
        %v964 = vand.u32 %v472, 4294901760
        %v965 = vsub.f32 %v472, %v964
        %v966 = vand.u32 %v965, 4294901760
        %v967 = vsub.f32 %v965, %v966
        %v968 = vand.u32 %v967, 4294901760
        %969 = vmatpush1.msra.mxu0 %v968
        %970 = vmatprep.subr.mxu0 0.0
        %v971 = vand.u32 %v471, 4294901760
        %v972 = vsub.f32 %v471, %v971
        %v973 = vand.u32 %v972, 4294901760
        %v974 = vsub.f32 %v972, %v973
        %v975 = vand.u32 %v974, 4294901760
        %976 = vmatpush1.msra.mxu0 %v975
        %977 = vmatprep.subr.mxu0 0.0
        %v978 = vand.u32 %v470, 4294901760
        %v979 = vsub.f32 %v470, %v978
        %v980 = vand.u32 %v979, 4294901760
        %v981 = vsub.f32 %v979, %v980
        %v982 = vand.u32 %v981, 4294901760
        %983 = vmatpush1.msra.mxu0 %v982
        %984 = vmatprep.subr.mxu0 0.0
        %v985 = vand.u32 %v469, 4294901760
        %v986 = vsub.f32 %v469, %v985
        %v987 = vand.u32 %v986, 4294901760
        %v988 = vsub.f32 %v986, %v987
        %v989 = vand.u32 %v988, 4294901760
        %990 = vmatpush1.msra.mxu0 %v989
        %991 = vmatprep.subr.mxu0 0.0
        %v992 = vand.u32 %v468, 4294901760
        %v993 = vsub.f32 %v468, %v992
        %v994 = vand.u32 %v993, 4294901760
        %v995 = vsub.f32 %v993, %v994
        %v996 = vand.u32 %v995, 4294901760
        %997 = vmatpush1.msra.mxu0 %v996
        %998 = vmatprep.subr.mxu0 0.0
        %v999 = vand.u32 %v467, 4294901760
        %v1000 = vsub.f32 %v467, %v999
        %v1001 = vand.u32 %v1000, 4294901760
        %v1002 = vsub.f32 %v1000, %v1001
        %v1003 = vand.u32 %v1002, 4294901760
        %1004 = vmatpush1.msra.mxu0 %v1003
        %1005 = vmatprep.subr.mxu0 0.0
        %v1006 = vand.u32 %v466, 4294901760
        %v1007 = vsub.f32 %v466, %v1006
        %v1008 = vand.u32 %v1007, 4294901760
        %v1009 = vsub.f32 %v1007, %v1008
        %v1010 = vand.u32 %v1009, 4294901760
        %1011 = vmatpush1.msra.mxu0 %v1010
        %1012 = vmatprep.subr.mxu0 0.0
        %v1013 = vand.u32 %v465, 4294901760
        %v1014 = vsub.f32 %v465, %v1013
        %v1015 = vand.u32 %v1014, 4294901760
        %v1016 = vsub.f32 %v1014, %v1015
        %v1017 = vand.u32 %v1016, 4294901760
        %1018 = vmatpush1.msra.mxu0 %v1017
        %1019 = vmatprep.subr.mxu0 0.0
        %v1020 = vand.u32 %v464, 4294901760
        %v1021 = vsub.f32 %v464, %v1020
        %v1022 = vand.u32 %v1021, 4294901760
        %v1023 = vsub.f32 %v1021, %v1022
        %v1024 = vand.u32 %v1023, 4294901760
        %1025 = vmatpush1.msra.mxu0 %v1024
        %1026 = vmatprep.subr.mxu0 0.0
        %v1027 = vand.u32 %v463, 4294901760
        %v1028 = vsub.f32 %v463, %v1027
        %v1029 = vand.u32 %v1028, 4294901760
        %v1030 = vsub.f32 %v1028, %v1029
        %v1031 = vand.u32 %v1030, 4294901760
        %1032 = vmatpush1.msra.mxu0 %v1031
        %1033 = vmatprep.subr.mxu0 0.0
        %v1034 = vand.u32 %v462, 4294901760
        %v1035 = vsub.f32 %v462, %v1034
        %v1036 = vand.u32 %v1035, 4294901760
        %v1037 = vsub.f32 %v1035, %v1036
        %v1038 = vand.u32 %v1037, 4294901760
        %1039 = vmatpush1.msra.mxu0 %v1038
        %1040 = vmatprep.subr.mxu0 0.0
        %v1041 = vand.u32 %v461, 4294901760
        %v1042 = vsub.f32 %v461, %v1041
        %v1043 = vand.u32 %v1042, 4294901760
        %v1044 = vsub.f32 %v1042, %v1043
        %v1045 = vand.u32 %v1044, 4294901760
        %1046 = vmatpush1.msra.mxu0 %v1045
        %1047 = vmatprep.subr.mxu0 0.0
        %1048 = vmatpush2.msra.mxu0 0.0
        %1049 = vmatprep.subr.mxu0 0.0
        %1050 = vmatpush2.msra.mxu0 0.0
        %1051 = vmatprep.subr.mxu0 0.0
        %1052 = vmatpush2.msra.mxu0 0.0
        %1053 = vmatprep.subr.mxu0 0.0
        %1054 = vmatpush2.msra.mxu0 0.0
        %1055 = vmatprep.subr.mxu0 0.0
        %1056 = vmatpush2.msra.mxu0 0.0
        %1057 = vmatprep.subr.mxu0 0.0
        %1058 = vmatpush2.msra.mxu0 0.0
        %1059 = vmatprep.subr.mxu0 0.0
        %1060 = vmatpush2.msra.mxu0 0.0
        %1061 = vmatprep.subr.mxu0 0.0
        %1062 = vmatpush2.msra.mxu0 0.0
        %1063 = vmatprep.subr.mxu0 0.0
        %v1064 = vand.u32 %v484, 4294901760
        %v1065 = vsub.f32 %v484, %v1064
        %v1066 = vand.u32 %v1065, 4294901760
        %v1067 = vsub.f32 %v1065, %v1066
        %v1068 = vand.u32 %v1067, 4294901760
        %1069 = vmatpush2.msra.mxu0 %v1068
        %1070 = vmatprep.subr.mxu0 0.0
        %v1071 = vand.u32 %v483, 4294901760
        %v1072 = vsub.f32 %v483, %v1071
        %v1073 = vand.u32 %v1072, 4294901760
        %v1074 = vsub.f32 %v1072, %v1073
        %v1075 = vand.u32 %v1074, 4294901760
        %1076 = vmatpush2.msra.mxu0 %v1075
        %1077 = vmatprep.subr.mxu0 0.0
        %v1078 = vand.u32 %v482, 4294901760
        %v1079 = vsub.f32 %v482, %v1078
        %v1080 = vand.u32 %v1079, 4294901760
        %v1081 = vsub.f32 %v1079, %v1080
        %v1082 = vand.u32 %v1081, 4294901760
        %1083 = vmatpush2.msra.mxu0 %v1082
        %1084 = vmatprep.subr.mxu0 0.0
        %v1085 = vand.u32 %v481, 4294901760
        %v1086 = vsub.f32 %v481, %v1085
        %v1087 = vand.u32 %v1086, 4294901760
        %v1088 = vsub.f32 %v1086, %v1087
        %v1089 = vand.u32 %v1088, 4294901760
        %1090 = vmatpush2.msra.mxu0 %v1089
        %1091 = vmatprep.subr.mxu0 0.0
        %v1092 = vand.u32 %v480, 4294901760
        %v1093 = vsub.f32 %v480, %v1092
        %v1094 = vand.u32 %v1093, 4294901760
        %v1095 = vsub.f32 %v1093, %v1094
        %v1096 = vand.u32 %v1095, 4294901760
        %1097 = vmatpush2.msra.mxu0 %v1096
        %1098 = vmatprep.subr.mxu0 0.0
        %v1099 = vand.u32 %v479, 4294901760
        %v1100 = vsub.f32 %v479, %v1099
        %v1101 = vand.u32 %v1100, 4294901760
        %v1102 = vsub.f32 %v1100, %v1101
        %v1103 = vand.u32 %v1102, 4294901760
        %1104 = vmatpush2.msra.mxu0 %v1103
        %1105 = vmatprep.subr.mxu0 0.0
        %v1106 = vand.u32 %v478, 4294901760
        %v1107 = vsub.f32 %v478, %v1106
        %v1108 = vand.u32 %v1107, 4294901760
        %v1109 = vsub.f32 %v1107, %v1108
        %v1110 = vand.u32 %v1109, 4294901760
        %1111 = vmatpush2.msra.mxu0 %v1110
        %1112 = vmatprep.subr.mxu0 0.0
        %v1113 = vand.u32 %v477, 4294901760
        %v1114 = vsub.f32 %v477, %v1113
        %v1115 = vand.u32 %v1114, 4294901760
        %v1116 = vsub.f32 %v1114, %v1115
        %v1117 = vand.u32 %v1116, 4294901760
        %1118 = vmatpush2.msra.mxu0 %v1117
        %v1119 = vand.u32 %v487, 4294901760
        %1120 = vmatprep.mubr.f32.mxu0 %v1119
        %v1121 = vand.u32 %v421, 4294901760
        %1122 = vmatmul.mubr.f32.gmra.mxu0 %v1121
        %v1123 = vpop.f32.mrf.mxu0
        %v1124 = vadd.f32 %v647, %v1123
        %v1125 = vpop.f32.mrf.mxu0
        %v1126 = vand.u32 %v490, 4294901760
        %1127 = vmatprep.mubr.f32.mxu0 %v1126
        %v1128 = vand.u32 %v423, 4294901760
        %1129 = vmatmul.mubr.f32.gmra.mxu0 %v1128
        %v1130 = vpop.f32.mrf.mxu0
        %v1131 = vadd.f32 %v662, %v1130
        %v1132 = vpop.f32.mrf.mxu0
        %v1133 = vand.u32 %v493, 4294901760
        %1134 = vmatprep.mubr.f32.mxu0 %v1133
        %v1135 = vand.u32 %v425, 4294901760
        %1136 = vmatmul.mubr.f32.gmra.mxu0 %v1135
        %v1137 = vpop.f32.mrf.mxu0
        %v1138 = vadd.f32 %v677, %v1137
        %v1139 = vpop.f32.mrf.mxu0
        %v1140 = vand.u32 %v496, 4294901760
        %1141 = vmatprep.mubr.f32.mxu0 %v1140
        %v1142 = vand.u32 %v427, 4294901760
        %1143 = vmatmul.mubr.f32.gmra.mxu0 %v1142
        %v1144 = vpop.f32.mrf.mxu0
        %v1145 = vadd.f32 %v692, %v1144
        %v1146 = vpop.f32.mrf.mxu0
        %v1147 = vand.u32 %v499, 4294901760
        %1148 = vmatprep.mubr.f32.mxu0 %v1147
        %v1149 = vand.u32 %v429, 4294901760
        %1150 = vmatmul.mubr.f32.gmra.mxu0 %v1149
        %v1151 = vpop.f32.mrf.mxu0
        %v1152 = vadd.f32 %v707, %v1151
        %v1153 = vpop.f32.mrf.mxu0
        %v1154 = vand.u32 %v502, 4294901760
        %1155 = vmatprep.mubr.f32.mxu0 %v1154
        %v1156 = vand.u32 %v431, 4294901760
        %1157 = vmatmul.mubr.f32.gmra.mxu0 %v1156
        %v1158 = vpop.f32.mrf.mxu0
        %v1159 = vadd.f32 %v722, %v1158
        %v1160 = vpop.f32.mrf.mxu0
        %v1161 = vand.u32 %v505, 4294901760
        %1162 = vmatprep.mubr.f32.mxu0 %v1161
        %v1163 = vand.u32 %v433, 4294901760
        %1164 = vmatmul.mubr.f32.gmra.mxu0 %v1163
        %v1165 = vpop.f32.mrf.mxu0
        %v1166 = vadd.f32 %v737, %v1165
        %v1167 = vpop.f32.mrf.mxu0
        %v1168 = vand.u32 %v508, 4294901760
        %1169 = vmatprep.mubr.f32.mxu0 %v1168
        %v1170 = vand.u32 %v435, 4294901760
        %1171 = vmatmul.mubr.f32.gmra.mxu0 %v1170
        %v1172 = vpop.f32.mrf.mxu0
        %v1173 = vadd.f32 %v752, %v1172
        %v1174 = vpop.f32.mrf.mxu0
        %v1175 = vand.u32 %v511, 4294901760
        %1176 = vmatprep.mubr.f32.mxu0 %v1175
        %v1177 = vand.u32 %v437, 4294901760
        %1178 = vmatmul.mubr.f32.gmra.mxu0 %v1177
        %v1179 = vpop.f32.mrf.mxu0
        %v1180 = vadd.f32 %v767, %v1179
        %v1181 = vpop.f32.mrf.mxu0
        %v1182 = vand.u32 %v514, 4294901760
        %1183 = vmatprep.mubr.f32.mxu0 %v1182
        %v1184 = vand.u32 %v439, 4294901760
        %1185 = vmatmul.mubr.f32.gmra.mxu0 %v1184
        %v1186 = vpop.f32.mrf.mxu0
        %v1187 = vadd.f32 %v782, %v1186
        %v1188 = vpop.f32.mrf.mxu0
        %v1189 = vand.u32 %v517, 4294901760
        %1190 = vmatprep.mubr.f32.mxu0 %v1189
        %v1191 = vand.u32 %v441, 4294901760
        %1192 = vmatmul.mubr.f32.gmra.mxu0 %v1191
        %v1193 = vpop.f32.mrf.mxu0
        %v1194 = vadd.f32 %v797, %v1193
        %v1195 = vpop.f32.mrf.mxu0
        %v1196 = vand.u32 %v520, 4294901760
        %1197 = vmatprep.mubr.f32.mxu0 %v1196
        %v1198 = vand.u32 %v443, 4294901760
        %1199 = vmatmul.mubr.f32.gmra.mxu0 %v1198
        %v1200 = vpop.f32.mrf.mxu0
        %v1201 = vadd.f32 %v812, %v1200
        %v1202 = vpop.f32.mrf.mxu0
        %v1203 = vand.u32 %v523, 4294901760
        %1204 = vmatprep.mubr.f32.mxu0 %v1203
        %v1205 = vand.u32 %v445, 4294901760
        %1206 = vmatmul.mubr.f32.gmra.mxu0 %v1205
        %v1207 = vpop.f32.mrf.mxu0
        %v1208 = vadd.f32 %v827, %v1207
        %v1209 = vpop.f32.mrf.mxu0
        %v1210 = vand.u32 %v526, 4294901760
        %1211 = vmatprep.mubr.f32.mxu0 %v1210
        %v1212 = vand.u32 %v447, 4294901760
        %1213 = vmatmul.mubr.f32.gmra.mxu0 %v1212
        %v1214 = vpop.f32.mrf.mxu0
        %v1215 = vadd.f32 %v842, %v1214
        %v1216 = vpop.f32.mrf.mxu0
        %v1217 = vand.u32 %v529, 4294901760
        %1218 = vmatprep.mubr.f32.mxu0 %v1217
        %v1219 = vand.u32 %v449, 4294901760
        %1220 = vmatmul.mubr.f32.gmra.mxu0 %v1219
        %v1221 = vpop.f32.mrf.mxu0
        %v1222 = vadd.f32 %v857, %v1221
        %v1223 = vpop.f32.mrf.mxu0
        %v1224 = vand.u32 %v532, 4294901760
        %1225 = vmatprep.mubr.f32.mxu0 %v1224
        %v1226 = vand.u32 %v451, 4294901760
        %1227 = vmatmul.mubr.f32.gmra.mxu0 %v1226
        %v1228 = vpop.f32.mrf.mxu0
        %v1229 = vadd.f32 %v872, %v1228
        %v1230 = vpop.f32.mrf.mxu0
        %v1231 = vand.u32 %v535, 4294901760
        %1232 = vmatprep.mubr.f32.mxu0 %v1231
        %v1233 = vand.u32 %v453, 4294901760
        %1234 = vmatmul.mubr.f32.gmra.mxu0 %v1233
        %v1235 = vpop.f32.mrf.mxu0
        %v1236 = vadd.f32 %v887, %v1235
        %v1237 = vpop.f32.mrf.mxu0
        %v1238 = vand.u32 %v538, 4294901760
        %1239 = vmatprep.mubr.f32.mxu0 %v1238
        %v1240 = vand.u32 %v455, 4294901760
        %1241 = vmatmul.mubr.f32.gmra.mxu0 %v1240
        %v1242 = vpop.f32.mrf.mxu0
        %v1243 = vadd.f32 %v902, %v1242
        %v1244 = vpop.f32.mrf.mxu0
        %v1245 = vand.u32 %v541, 4294901760
        %1246 = vmatprep.mubr.f32.mxu0 %v1245
        %v1247 = vand.u32 %v457, 4294901760
        %1248 = vmatmul.mubr.f32.gmra.mxu0 %v1247
        %v1249 = vpop.f32.mrf.mxu0
        %v1250 = vadd.f32 %v917, %v1249
        %v1251 = vpop.f32.mrf.mxu0
        %v1252 = vand.u32 %v544, 4294901760
        %1253 = vmatprep.mubr.f32.mxu0 %v1252
        %v1254 = vand.u32 %v459, 4294901760
        %1255 = vmatmul.mubr.f32.gmra.mxu0 %v1254
        %v1256 = vpop.f32.mrf.mxu0
        %v1257 = vadd.f32 %v932, %v1256
        %v1258 = vpop.f32.mrf.mxu0
        %1259 = vdwg.mxu0
        %1260 = vmatprep.subr.mxu0 0.0
        %v1261 = vand.u32 %v476, 4294901760
        %v1262 = vsub.f32 %v476, %v1261
        %1263 = vmatpush1.msra.mxu0 %v1262
        %1264 = vmatprep.subr.mxu0 0.0
        %v1265 = vand.u32 %v475, 4294901760
        %v1266 = vsub.f32 %v475, %v1265
        %1267 = vmatpush1.msra.mxu0 %v1266
        %1268 = vmatprep.subr.mxu0 0.0
        %v1269 = vand.u32 %v474, 4294901760
        %v1270 = vsub.f32 %v474, %v1269
        %1271 = vmatpush1.msra.mxu0 %v1270
        %1272 = vmatprep.subr.mxu0 0.0
        %v1273 = vand.u32 %v473, 4294901760
        %v1274 = vsub.f32 %v473, %v1273
        %1275 = vmatpush1.msra.mxu0 %v1274
        %1276 = vmatprep.subr.mxu0 0.0
        %v1277 = vand.u32 %v472, 4294901760
        %v1278 = vsub.f32 %v472, %v1277
        %1279 = vmatpush1.msra.mxu0 %v1278
        %1280 = vmatprep.subr.mxu0 0.0
        %v1281 = vand.u32 %v471, 4294901760
        %v1282 = vsub.f32 %v471, %v1281
        %1283 = vmatpush1.msra.mxu0 %v1282
        %1284 = vmatprep.subr.mxu0 0.0
        %v1285 = vand.u32 %v470, 4294901760
        %v1286 = vsub.f32 %v470, %v1285
        %1287 = vmatpush1.msra.mxu0 %v1286
        %1288 = vmatprep.subr.mxu0 0.0
        %v1289 = vand.u32 %v469, 4294901760
        %v1290 = vsub.f32 %v469, %v1289
        %1291 = vmatpush1.msra.mxu0 %v1290
        %1292 = vmatprep.subr.mxu0 0.0
        %v1293 = vand.u32 %v468, 4294901760
        %v1294 = vsub.f32 %v468, %v1293
        %1295 = vmatpush1.msra.mxu0 %v1294
        %1296 = vmatprep.subr.mxu0 0.0
        %v1297 = vand.u32 %v467, 4294901760
        %v1298 = vsub.f32 %v467, %v1297
        %1299 = vmatpush1.msra.mxu0 %v1298
        %1300 = vmatprep.subr.mxu0 0.0
        %v1301 = vand.u32 %v466, 4294901760
        %v1302 = vsub.f32 %v466, %v1301
        %1303 = vmatpush1.msra.mxu0 %v1302
        %1304 = vmatprep.subr.mxu0 0.0
        %v1305 = vand.u32 %v465, 4294901760
        %v1306 = vsub.f32 %v465, %v1305
        %1307 = vmatpush1.msra.mxu0 %v1306
        %1308 = vmatprep.subr.mxu0 0.0
        %v1309 = vand.u32 %v464, 4294901760
        %v1310 = vsub.f32 %v464, %v1309
        %1311 = vmatpush1.msra.mxu0 %v1310
        %1312 = vmatprep.subr.mxu0 0.0
        %v1313 = vand.u32 %v463, 4294901760
        %v1314 = vsub.f32 %v463, %v1313
        %1315 = vmatpush1.msra.mxu0 %v1314
        %1316 = vmatprep.subr.mxu0 0.0
        %v1317 = vand.u32 %v462, 4294901760
        %v1318 = vsub.f32 %v462, %v1317
        %1319 = vmatpush1.msra.mxu0 %v1318
        %1320 = vmatprep.subr.mxu0 0.0
        %v1321 = vand.u32 %v461, 4294901760
        %v1322 = vsub.f32 %v461, %v1321
        %1323 = vmatpush1.msra.mxu0 %v1322
        %1324 = vmatprep.subr.mxu0 0.0
        %1325 = vmatpush2.msra.mxu0 0.0
        %1326 = vmatprep.subr.mxu0 0.0
        %1327 = vmatpush2.msra.mxu0 0.0
        %1328 = vmatprep.subr.mxu0 0.0
        %1329 = vmatpush2.msra.mxu0 0.0
        %1330 = vmatprep.subr.mxu0 0.0
        %1331 = vmatpush2.msra.mxu0 0.0
        %1332 = vmatprep.subr.mxu0 0.0
        %1333 = vmatpush2.msra.mxu0 0.0
        %1334 = vmatprep.subr.mxu0 0.0
        %1335 = vmatpush2.msra.mxu0 0.0
        %1336 = vmatprep.subr.mxu0 0.0
        %1337 = vmatpush2.msra.mxu0 0.0
        %1338 = vmatprep.subr.mxu0 0.0
        %1339 = vmatpush2.msra.mxu0 0.0
        %1340 = vmatprep.subr.mxu0 0.0
        %v1341 = vand.u32 %v484, 4294901760
        %v1342 = vsub.f32 %v484, %v1341
        %1343 = vmatpush2.msra.mxu0 %v1342
        %1344 = vmatprep.subr.mxu0 0.0
        %v1345 = vand.u32 %v483, 4294901760
        %v1346 = vsub.f32 %v483, %v1345
        %1347 = vmatpush2.msra.mxu0 %v1346
        %1348 = vmatprep.subr.mxu0 0.0
        %v1349 = vand.u32 %v482, 4294901760
        %v1350 = vsub.f32 %v482, %v1349
        %1351 = vmatpush2.msra.mxu0 %v1350
        %1352 = vmatprep.subr.mxu0 0.0
        %v1353 = vand.u32 %v481, 4294901760
        %v1354 = vsub.f32 %v481, %v1353
        %1355 = vmatpush2.msra.mxu0 %v1354
        %1356 = vmatprep.subr.mxu0 0.0
        %v1357 = vand.u32 %v480, 4294901760
        %v1358 = vsub.f32 %v480, %v1357
        %1359 = vmatpush2.msra.mxu0 %v1358
        %1360 = vmatprep.subr.mxu0 0.0
        %v1361 = vand.u32 %v479, 4294901760
        %v1362 = vsub.f32 %v479, %v1361
        %1363 = vmatpush2.msra.mxu0 %v1362
        %1364 = vmatprep.subr.mxu0 0.0
        %v1365 = vand.u32 %v478, 4294901760
        %v1366 = vsub.f32 %v478, %v1365
        %1367 = vmatpush2.msra.mxu0 %v1366
        %1368 = vmatprep.subr.mxu0 0.0
        %v1369 = vand.u32 %v477, 4294901760
        %v1370 = vsub.f32 %v477, %v1369
        %1371 = vmatpush2.msra.mxu0 %v1370
        %v1372 = vand.u32 %v487, 4294901760
        %v1373 = vsub.f32 %v487, %v1372
        %1374 = vmatprep.mubr.f32.mxu0 %v1373
        %v1375 = vand.u32 %v421, 4294901760
        %v1376 = vsub.f32 %v421, %v1375
        %1377 = vmatmul.mubr.f32.gmra.mxu0 %v1376
        %v1378 = vpop.f32.mrf.mxu0
        %v1379 = vadd.f32 %v1124, %v1378
        %v1380 = vpop.f32.mrf.mxu0
        %v1381 = vand.u32 %v490, 4294901760
        %v1382 = vsub.f32 %v490, %v1381
        %1383 = vmatprep.mubr.f32.mxu0 %v1382
        %v1384 = vand.u32 %v423, 4294901760
        %v1385 = vsub.f32 %v423, %v1384
        %1386 = vmatmul.mubr.f32.gmra.mxu0 %v1385
        %v1387 = vpop.f32.mrf.mxu0
        %v1388 = vadd.f32 %v1131, %v1387
        %v1389 = vpop.f32.mrf.mxu0
        %v1390 = vand.u32 %v493, 4294901760
        %v1391 = vsub.f32 %v493, %v1390
        %1392 = vmatprep.mubr.f32.mxu0 %v1391
        %v1393 = vand.u32 %v425, 4294901760
        %v1394 = vsub.f32 %v425, %v1393
        %1395 = vmatmul.mubr.f32.gmra.mxu0 %v1394
        %v1396 = vpop.f32.mrf.mxu0
        %v1397 = vadd.f32 %v1138, %v1396
        %v1398 = vpop.f32.mrf.mxu0
        %v1399 = vand.u32 %v496, 4294901760
        %v1400 = vsub.f32 %v496, %v1399
        %1401 = vmatprep.mubr.f32.mxu0 %v1400
        %v1402 = vand.u32 %v427, 4294901760
        %v1403 = vsub.f32 %v427, %v1402
        %1404 = vmatmul.mubr.f32.gmra.mxu0 %v1403
        %v1405 = vpop.f32.mrf.mxu0
        %v1406 = vadd.f32 %v1145, %v1405
        %v1407 = vpop.f32.mrf.mxu0
        %v1408 = vand.u32 %v499, 4294901760
        %v1409 = vsub.f32 %v499, %v1408
        %1410 = vmatprep.mubr.f32.mxu0 %v1409
        %v1411 = vand.u32 %v429, 4294901760
        %v1412 = vsub.f32 %v429, %v1411
        %1413 = vmatmul.mubr.f32.gmra.mxu0 %v1412
        %v1414 = vpop.f32.mrf.mxu0
        %v1415 = vadd.f32 %v1152, %v1414
        %v1416 = vpop.f32.mrf.mxu0
        %v1417 = vand.u32 %v502, 4294901760
        %v1418 = vsub.f32 %v502, %v1417
        %1419 = vmatprep.mubr.f32.mxu0 %v1418
        %v1420 = vand.u32 %v431, 4294901760
        %v1421 = vsub.f32 %v431, %v1420
        %1422 = vmatmul.mubr.f32.gmra.mxu0 %v1421
        %v1423 = vpop.f32.mrf.mxu0
        %v1424 = vadd.f32 %v1159, %v1423
        %v1425 = vpop.f32.mrf.mxu0
        %v1426 = vand.u32 %v505, 4294901760
        %v1427 = vsub.f32 %v505, %v1426
        %1428 = vmatprep.mubr.f32.mxu0 %v1427
        %v1429 = vand.u32 %v433, 4294901760
        %v1430 = vsub.f32 %v433, %v1429
        %1431 = vmatmul.mubr.f32.gmra.mxu0 %v1430
        %v1432 = vpop.f32.mrf.mxu0
        %v1433 = vadd.f32 %v1166, %v1432
        %v1434 = vpop.f32.mrf.mxu0
        %v1435 = vand.u32 %v508, 4294901760
        %v1436 = vsub.f32 %v508, %v1435
        %1437 = vmatprep.mubr.f32.mxu0 %v1436
        %v1438 = vand.u32 %v435, 4294901760
        %v1439 = vsub.f32 %v435, %v1438
        %1440 = vmatmul.mubr.f32.gmra.mxu0 %v1439
        %v1441 = vpop.f32.mrf.mxu0
        %v1442 = vadd.f32 %v1173, %v1441
        %v1443 = vpop.f32.mrf.mxu0
        %v1444 = vand.u32 %v511, 4294901760
        %v1445 = vsub.f32 %v511, %v1444
        %1446 = vmatprep.mubr.f32.mxu0 %v1445
        %v1447 = vand.u32 %v437, 4294901760
        %v1448 = vsub.f32 %v437, %v1447
        %1449 = vmatmul.mubr.f32.gmra.mxu0 %v1448
        %v1450 = vpop.f32.mrf.mxu0
        %v1451 = vadd.f32 %v1180, %v1450
        %v1452 = vpop.f32.mrf.mxu0
        %v1453 = vand.u32 %v514, 4294901760
        %v1454 = vsub.f32 %v514, %v1453
        %1455 = vmatprep.mubr.f32.mxu0 %v1454
        %v1456 = vand.u32 %v439, 4294901760
        %v1457 = vsub.f32 %v439, %v1456
        %1458 = vmatmul.mubr.f32.gmra.mxu0 %v1457
        %v1459 = vpop.f32.mrf.mxu0
        %v1460 = vadd.f32 %v1187, %v1459
        %v1461 = vpop.f32.mrf.mxu0
        %v1462 = vand.u32 %v517, 4294901760
        %v1463 = vsub.f32 %v517, %v1462
        %1464 = vmatprep.mubr.f32.mxu0 %v1463
        %v1465 = vand.u32 %v441, 4294901760
        %v1466 = vsub.f32 %v441, %v1465
        %1467 = vmatmul.mubr.f32.gmra.mxu0 %v1466
        %v1468 = vpop.f32.mrf.mxu0
        %v1469 = vadd.f32 %v1194, %v1468
        %v1470 = vpop.f32.mrf.mxu0
        %v1471 = vand.u32 %v520, 4294901760
        %v1472 = vsub.f32 %v520, %v1471
        %1473 = vmatprep.mubr.f32.mxu0 %v1472
        %v1474 = vand.u32 %v443, 4294901760
        %v1475 = vsub.f32 %v443, %v1474
        %1476 = vmatmul.mubr.f32.gmra.mxu0 %v1475
        %v1477 = vpop.f32.mrf.mxu0
        %v1478 = vadd.f32 %v1201, %v1477
        %v1479 = vpop.f32.mrf.mxu0
        %v1480 = vand.u32 %v523, 4294901760
        %v1481 = vsub.f32 %v523, %v1480
        %1482 = vmatprep.mubr.f32.mxu0 %v1481
        %v1483 = vand.u32 %v445, 4294901760
        %v1484 = vsub.f32 %v445, %v1483
        %1485 = vmatmul.mubr.f32.gmra.mxu0 %v1484
        %v1486 = vpop.f32.mrf.mxu0
        %v1487 = vadd.f32 %v1208, %v1486
        %v1488 = vpop.f32.mrf.mxu0
        %v1489 = vand.u32 %v526, 4294901760
        %v1490 = vsub.f32 %v526, %v1489
        %1491 = vmatprep.mubr.f32.mxu0 %v1490
        %v1492 = vand.u32 %v447, 4294901760
        %v1493 = vsub.f32 %v447, %v1492
        %1494 = vmatmul.mubr.f32.gmra.mxu0 %v1493
        %v1495 = vpop.f32.mrf.mxu0
        %v1496 = vadd.f32 %v1215, %v1495
        %v1497 = vpop.f32.mrf.mxu0
        %v1498 = vand.u32 %v529, 4294901760
        %v1499 = vsub.f32 %v529, %v1498
        %1500 = vmatprep.mubr.f32.mxu0 %v1499
        %v1501 = vand.u32 %v449, 4294901760
        %v1502 = vsub.f32 %v449, %v1501
        %1503 = vmatmul.mubr.f32.gmra.mxu0 %v1502
        %v1504 = vpop.f32.mrf.mxu0
        %v1505 = vadd.f32 %v1222, %v1504
        %v1506 = vpop.f32.mrf.mxu0
        %v1507 = vand.u32 %v532, 4294901760
        %v1508 = vsub.f32 %v532, %v1507
        %1509 = vmatprep.mubr.f32.mxu0 %v1508
        %v1510 = vand.u32 %v451, 4294901760
        %v1511 = vsub.f32 %v451, %v1510
        %1512 = vmatmul.mubr.f32.gmra.mxu0 %v1511
        %v1513 = vpop.f32.mrf.mxu0
        %v1514 = vadd.f32 %v1229, %v1513
        %v1515 = vpop.f32.mrf.mxu0
        %v1516 = vand.u32 %v535, 4294901760
        %v1517 = vsub.f32 %v535, %v1516
        %1518 = vmatprep.mubr.f32.mxu0 %v1517
        %v1519 = vand.u32 %v453, 4294901760
        %v1520 = vsub.f32 %v453, %v1519
        %1521 = vmatmul.mubr.f32.gmra.mxu0 %v1520
        %v1522 = vpop.f32.mrf.mxu0
        %v1523 = vadd.f32 %v1236, %v1522
        %v1524 = vpop.f32.mrf.mxu0
        %v1525 = vand.u32 %v538, 4294901760
        %v1526 = vsub.f32 %v538, %v1525
        %1527 = vmatprep.mubr.f32.mxu0 %v1526
        %v1528 = vand.u32 %v455, 4294901760
        %v1529 = vsub.f32 %v455, %v1528
        %1530 = vmatmul.mubr.f32.gmra.mxu0 %v1529
        %v1531 = vpop.f32.mrf.mxu0
        %v1532 = vadd.f32 %v1243, %v1531
        %v1533 = vpop.f32.mrf.mxu0
        %v1534 = vand.u32 %v541, 4294901760
        %v1535 = vsub.f32 %v541, %v1534
        %1536 = vmatprep.mubr.f32.mxu0 %v1535
        %v1537 = vand.u32 %v457, 4294901760
        %v1538 = vsub.f32 %v457, %v1537
        %1539 = vmatmul.mubr.f32.gmra.mxu0 %v1538
        %v1540 = vpop.f32.mrf.mxu0
        %v1541 = vadd.f32 %v1250, %v1540
        %v1542 = vpop.f32.mrf.mxu0
        %v1543 = vand.u32 %v544, 4294901760
        %v1544 = vsub.f32 %v544, %v1543
        %1545 = vmatprep.mubr.f32.mxu0 %v1544
        %v1546 = vand.u32 %v459, 4294901760
        %v1547 = vsub.f32 %v459, %v1546
        %1548 = vmatmul.mubr.f32.gmra.mxu0 %v1547
        %v1549 = vpop.f32.mrf.mxu0
        %v1550 = vadd.f32 %v1257, %v1549
        %v1551 = vpop.f32.mrf.mxu0
        %1552 = vdwg.mxu0
        %1553 = vmatprep.subr.mxu0 0.0
        %v1554 = vand.u32 %v476, 4294901760
        %1555 = vmatpush1.msra.mxu0 %v1554
        %1556 = vmatprep.subr.mxu0 0.0
        %v1557 = vand.u32 %v475, 4294901760
        %1558 = vmatpush1.msra.mxu0 %v1557
        %1559 = vmatprep.subr.mxu0 0.0
        %v1560 = vand.u32 %v474, 4294901760
        %1561 = vmatpush1.msra.mxu0 %v1560
        %1562 = vmatprep.subr.mxu0 0.0
        %v1563 = vand.u32 %v473, 4294901760
        %1564 = vmatpush1.msra.mxu0 %v1563
        %1565 = vmatprep.subr.mxu0 0.0
        %v1566 = vand.u32 %v472, 4294901760
        %1567 = vmatpush1.msra.mxu0 %v1566
        %1568 = vmatprep.subr.mxu0 0.0
        %v1569 = vand.u32 %v471, 4294901760
        %1570 = vmatpush1.msra.mxu0 %v1569
        %1571 = vmatprep.subr.mxu0 0.0
        %v1572 = vand.u32 %v470, 4294901760
        %1573 = vmatpush1.msra.mxu0 %v1572
        %1574 = vmatprep.subr.mxu0 0.0
        %v1575 = vand.u32 %v469, 4294901760
        %1576 = vmatpush1.msra.mxu0 %v1575
        %1577 = vmatprep.subr.mxu0 0.0
        %v1578 = vand.u32 %v468, 4294901760
        %1579 = vmatpush1.msra.mxu0 %v1578
        %1580 = vmatprep.subr.mxu0 0.0
        %v1581 = vand.u32 %v467, 4294901760
        %1582 = vmatpush1.msra.mxu0 %v1581
        %1583 = vmatprep.subr.mxu0 0.0
        %v1584 = vand.u32 %v466, 4294901760
        %1585 = vmatpush1.msra.mxu0 %v1584
        %1586 = vmatprep.subr.mxu0 0.0
        %v1587 = vand.u32 %v465, 4294901760
        %1588 = vmatpush1.msra.mxu0 %v1587
        %1589 = vmatprep.subr.mxu0 0.0
        %v1590 = vand.u32 %v464, 4294901760
        %1591 = vmatpush1.msra.mxu0 %v1590
        %1592 = vmatprep.subr.mxu0 0.0
        %v1593 = vand.u32 %v463, 4294901760
        %1594 = vmatpush1.msra.mxu0 %v1593
        %1595 = vmatprep.subr.mxu0 0.0
        %v1596 = vand.u32 %v462, 4294901760
        %1597 = vmatpush1.msra.mxu0 %v1596
        %1598 = vmatprep.subr.mxu0 0.0
        %v1599 = vand.u32 %v461, 4294901760
        %1600 = vmatpush1.msra.mxu0 %v1599
        %1601 = vmatprep.subr.mxu0 0.0
        %1602 = vmatpush2.msra.mxu0 0.0
        %1603 = vmatprep.subr.mxu0 0.0
        %1604 = vmatpush2.msra.mxu0 0.0
        %1605 = vmatprep.subr.mxu0 0.0
        %1606 = vmatpush2.msra.mxu0 0.0
        %1607 = vmatprep.subr.mxu0 0.0
        %1608 = vmatpush2.msra.mxu0 0.0
        %1609 = vmatprep.subr.mxu0 0.0
        %1610 = vmatpush2.msra.mxu0 0.0
        %1611 = vmatprep.subr.mxu0 0.0
        %1612 = vmatpush2.msra.mxu0 0.0
        %1613 = vmatprep.subr.mxu0 0.0
        %1614 = vmatpush2.msra.mxu0 0.0
        %1615 = vmatprep.subr.mxu0 0.0
        %1616 = vmatpush2.msra.mxu0 0.0
        %1617 = vmatprep.subr.mxu0 0.0
        %v1618 = vand.u32 %v484, 4294901760
        %1619 = vmatpush2.msra.mxu0 %v1618
        %1620 = vmatprep.subr.mxu0 0.0
        %v1621 = vand.u32 %v483, 4294901760
        %1622 = vmatpush2.msra.mxu0 %v1621
        %1623 = vmatprep.subr.mxu0 0.0
        %v1624 = vand.u32 %v482, 4294901760
        %1625 = vmatpush2.msra.mxu0 %v1624
        %1626 = vmatprep.subr.mxu0 0.0
        %v1627 = vand.u32 %v481, 4294901760
        %1628 = vmatpush2.msra.mxu0 %v1627
        %1629 = vmatprep.subr.mxu0 0.0
        %v1630 = vand.u32 %v480, 4294901760
        %1631 = vmatpush2.msra.mxu0 %v1630
        %1632 = vmatprep.subr.mxu0 0.0
        %v1633 = vand.u32 %v479, 4294901760
        %1634 = vmatpush2.msra.mxu0 %v1633
        %1635 = vmatprep.subr.mxu0 0.0
        %v1636 = vand.u32 %v478, 4294901760
        %1637 = vmatpush2.msra.mxu0 %v1636
        %1638 = vmatprep.subr.mxu0 0.0
        %v1639 = vand.u32 %v477, 4294901760
        %1640 = vmatpush2.msra.mxu0 %v1639
        %v1641 = vand.u32 %v487, 4294901760
        %v1642 = vsub.f32 %v487, %v1641
        %v1643 = vand.u32 %v1642, 4294901760
        %1644 = vmatprep.mubr.f32.mxu0 %v1643
        %v1645 = vand.u32 %v421, 4294901760
        %v1646 = vsub.f32 %v421, %v1645
        %v1647 = vand.u32 %v1646, 4294901760
        %1648 = vmatmul.mubr.f32.gmra.mxu0 %v1647
        %v1649 = vpop.f32.mrf.mxu0
        %v1650 = vadd.f32 %v1379, %v1649
        %v1651 = vpop.f32.mrf.mxu0
        %v1652 = vand.u32 %v490, 4294901760
        %v1653 = vsub.f32 %v490, %v1652
        %v1654 = vand.u32 %v1653, 4294901760
        %1655 = vmatprep.mubr.f32.mxu0 %v1654
        %v1656 = vand.u32 %v423, 4294901760
        %v1657 = vsub.f32 %v423, %v1656
        %v1658 = vand.u32 %v1657, 4294901760
        %1659 = vmatmul.mubr.f32.gmra.mxu0 %v1658
        %v1660 = vpop.f32.mrf.mxu0
        %v1661 = vadd.f32 %v1388, %v1660
        %v1662 = vpop.f32.mrf.mxu0
        %v1663 = vand.u32 %v493, 4294901760
        %v1664 = vsub.f32 %v493, %v1663
        %v1665 = vand.u32 %v1664, 4294901760
        %1666 = vmatprep.mubr.f32.mxu0 %v1665
        %v1667 = vand.u32 %v425, 4294901760
        %v1668 = vsub.f32 %v425, %v1667
        %v1669 = vand.u32 %v1668, 4294901760
        %1670 = vmatmul.mubr.f32.gmra.mxu0 %v1669
        %v1671 = vpop.f32.mrf.mxu0
        %v1672 = vadd.f32 %v1397, %v1671
        %v1673 = vpop.f32.mrf.mxu0
        %v1674 = vand.u32 %v496, 4294901760
        %v1675 = vsub.f32 %v496, %v1674
        %v1676 = vand.u32 %v1675, 4294901760
        %1677 = vmatprep.mubr.f32.mxu0 %v1676
        %v1678 = vand.u32 %v427, 4294901760
        %v1679 = vsub.f32 %v427, %v1678
        %v1680 = vand.u32 %v1679, 4294901760
        %1681 = vmatmul.mubr.f32.gmra.mxu0 %v1680
        %v1682 = vpop.f32.mrf.mxu0
        %v1683 = vadd.f32 %v1406, %v1682
        %v1684 = vpop.f32.mrf.mxu0
        %v1685 = vand.u32 %v499, 4294901760
        %v1686 = vsub.f32 %v499, %v1685
        %v1687 = vand.u32 %v1686, 4294901760
        %1688 = vmatprep.mubr.f32.mxu0 %v1687
        %v1689 = vand.u32 %v429, 4294901760
        %v1690 = vsub.f32 %v429, %v1689
        %v1691 = vand.u32 %v1690, 4294901760
        %1692 = vmatmul.mubr.f32.gmra.mxu0 %v1691
        %v1693 = vpop.f32.mrf.mxu0
        %v1694 = vadd.f32 %v1415, %v1693
        %v1695 = vpop.f32.mrf.mxu0
        %v1696 = vand.u32 %v502, 4294901760
        %v1697 = vsub.f32 %v502, %v1696
        %v1698 = vand.u32 %v1697, 4294901760
        %1699 = vmatprep.mubr.f32.mxu0 %v1698
        %v1700 = vand.u32 %v431, 4294901760
        %v1701 = vsub.f32 %v431, %v1700
        %v1702 = vand.u32 %v1701, 4294901760
        %1703 = vmatmul.mubr.f32.gmra.mxu0 %v1702
        %v1704 = vpop.f32.mrf.mxu0
        %v1705 = vadd.f32 %v1424, %v1704
        %v1706 = vpop.f32.mrf.mxu0
        %v1707 = vand.u32 %v505, 4294901760
        %v1708 = vsub.f32 %v505, %v1707
        %v1709 = vand.u32 %v1708, 4294901760
        %1710 = vmatprep.mubr.f32.mxu0 %v1709
        %v1711 = vand.u32 %v433, 4294901760
        %v1712 = vsub.f32 %v433, %v1711
        %v1713 = vand.u32 %v1712, 4294901760
        %1714 = vmatmul.mubr.f32.gmra.mxu0 %v1713
        %v1715 = vpop.f32.mrf.mxu0
        %v1716 = vadd.f32 %v1433, %v1715
        %v1717 = vpop.f32.mrf.mxu0
        %v1718 = vand.u32 %v508, 4294901760
        %v1719 = vsub.f32 %v508, %v1718
        %v1720 = vand.u32 %v1719, 4294901760
        %1721 = vmatprep.mubr.f32.mxu0 %v1720
        %v1722 = vand.u32 %v435, 4294901760
        %v1723 = vsub.f32 %v435, %v1722
        %v1724 = vand.u32 %v1723, 4294901760
        %1725 = vmatmul.mubr.f32.gmra.mxu0 %v1724
        %v1726 = vpop.f32.mrf.mxu0
        %v1727 = vadd.f32 %v1442, %v1726
        %v1728 = vpop.f32.mrf.mxu0
        %v1729 = vand.u32 %v511, 4294901760
        %v1730 = vsub.f32 %v511, %v1729
        %v1731 = vand.u32 %v1730, 4294901760
        %1732 = vmatprep.mubr.f32.mxu0 %v1731
        %v1733 = vand.u32 %v437, 4294901760
        %v1734 = vsub.f32 %v437, %v1733
        %v1735 = vand.u32 %v1734, 4294901760
        %1736 = vmatmul.mubr.f32.gmra.mxu0 %v1735
        %v1737 = vpop.f32.mrf.mxu0
        %v1738 = vadd.f32 %v1451, %v1737
        %v1739 = vpop.f32.mrf.mxu0
        %v1740 = vand.u32 %v514, 4294901760
        %v1741 = vsub.f32 %v514, %v1740
        %v1742 = vand.u32 %v1741, 4294901760
        %1743 = vmatprep.mubr.f32.mxu0 %v1742
        %v1744 = vand.u32 %v439, 4294901760
        %v1745 = vsub.f32 %v439, %v1744
        %v1746 = vand.u32 %v1745, 4294901760
        %1747 = vmatmul.mubr.f32.gmra.mxu0 %v1746
        %v1748 = vpop.f32.mrf.mxu0
        %v1749 = vadd.f32 %v1460, %v1748
        %v1750 = vpop.f32.mrf.mxu0
        %v1751 = vand.u32 %v517, 4294901760
        %v1752 = vsub.f32 %v517, %v1751
        %v1753 = vand.u32 %v1752, 4294901760
        %1754 = vmatprep.mubr.f32.mxu0 %v1753
        %v1755 = vand.u32 %v441, 4294901760
        %v1756 = vsub.f32 %v441, %v1755
        %v1757 = vand.u32 %v1756, 4294901760
        %1758 = vmatmul.mubr.f32.gmra.mxu0 %v1757
        %v1759 = vpop.f32.mrf.mxu0
        %v1760 = vadd.f32 %v1469, %v1759
        %v1761 = vpop.f32.mrf.mxu0
        %v1762 = vand.u32 %v520, 4294901760
        %v1763 = vsub.f32 %v520, %v1762
        %v1764 = vand.u32 %v1763, 4294901760
        %1765 = vmatprep.mubr.f32.mxu0 %v1764
        %v1766 = vand.u32 %v443, 4294901760
        %v1767 = vsub.f32 %v443, %v1766
        %v1768 = vand.u32 %v1767, 4294901760
        %1769 = vmatmul.mubr.f32.gmra.mxu0 %v1768
        %v1770 = vpop.f32.mrf.mxu0
        %v1771 = vadd.f32 %v1478, %v1770
        %v1772 = vpop.f32.mrf.mxu0
        %v1773 = vand.u32 %v523, 4294901760
        %v1774 = vsub.f32 %v523, %v1773
        %v1775 = vand.u32 %v1774, 4294901760
        %1776 = vmatprep.mubr.f32.mxu0 %v1775
        %v1777 = vand.u32 %v445, 4294901760
        %v1778 = vsub.f32 %v445, %v1777
        %v1779 = vand.u32 %v1778, 4294901760
        %1780 = vmatmul.mubr.f32.gmra.mxu0 %v1779
        %v1781 = vpop.f32.mrf.mxu0
        %v1782 = vadd.f32 %v1487, %v1781
        %v1783 = vpop.f32.mrf.mxu0
        %v1784 = vand.u32 %v526, 4294901760
        %v1785 = vsub.f32 %v526, %v1784
        %v1786 = vand.u32 %v1785, 4294901760
        %1787 = vmatprep.mubr.f32.mxu0 %v1786
        %v1788 = vand.u32 %v447, 4294901760
        %v1789 = vsub.f32 %v447, %v1788
        %v1790 = vand.u32 %v1789, 4294901760
        %1791 = vmatmul.mubr.f32.gmra.mxu0 %v1790
        %v1792 = vpop.f32.mrf.mxu0
        %v1793 = vadd.f32 %v1496, %v1792
        %v1794 = vpop.f32.mrf.mxu0
        %v1795 = vand.u32 %v529, 4294901760
        %v1796 = vsub.f32 %v529, %v1795
        %v1797 = vand.u32 %v1796, 4294901760
        %1798 = vmatprep.mubr.f32.mxu0 %v1797
        %v1799 = vand.u32 %v449, 4294901760
        %v1800 = vsub.f32 %v449, %v1799
        %v1801 = vand.u32 %v1800, 4294901760
        %1802 = vmatmul.mubr.f32.gmra.mxu0 %v1801
        %v1803 = vpop.f32.mrf.mxu0
        %v1804 = vadd.f32 %v1505, %v1803
        %v1805 = vpop.f32.mrf.mxu0
        %v1806 = vand.u32 %v532, 4294901760
        %v1807 = vsub.f32 %v532, %v1806
        %v1808 = vand.u32 %v1807, 4294901760
        %1809 = vmatprep.mubr.f32.mxu0 %v1808
        %v1810 = vand.u32 %v451, 4294901760
        %v1811 = vsub.f32 %v451, %v1810
        %v1812 = vand.u32 %v1811, 4294901760
        %1813 = vmatmul.mubr.f32.gmra.mxu0 %v1812
        %v1814 = vpop.f32.mrf.mxu0
        %v1815 = vadd.f32 %v1514, %v1814
        %v1816 = vpop.f32.mrf.mxu0
        %v1817 = vand.u32 %v535, 4294901760
        %v1818 = vsub.f32 %v535, %v1817
        %v1819 = vand.u32 %v1818, 4294901760
        %1820 = vmatprep.mubr.f32.mxu0 %v1819
        %v1821 = vand.u32 %v453, 4294901760
        %v1822 = vsub.f32 %v453, %v1821
        %v1823 = vand.u32 %v1822, 4294901760
        %1824 = vmatmul.mubr.f32.gmra.mxu0 %v1823
        %v1825 = vpop.f32.mrf.mxu0
        %v1826 = vadd.f32 %v1523, %v1825
        %v1827 = vpop.f32.mrf.mxu0
        %v1828 = vand.u32 %v538, 4294901760
        %v1829 = vsub.f32 %v538, %v1828
        %v1830 = vand.u32 %v1829, 4294901760
        %1831 = vmatprep.mubr.f32.mxu0 %v1830
        %v1832 = vand.u32 %v455, 4294901760
        %v1833 = vsub.f32 %v455, %v1832
        %v1834 = vand.u32 %v1833, 4294901760
        %1835 = vmatmul.mubr.f32.gmra.mxu0 %v1834
        %v1836 = vpop.f32.mrf.mxu0
        %v1837 = vadd.f32 %v1532, %v1836
        %v1838 = vpop.f32.mrf.mxu0
        %v1839 = vand.u32 %v541, 4294901760
        %v1840 = vsub.f32 %v541, %v1839
        %v1841 = vand.u32 %v1840, 4294901760
        %1842 = vmatprep.mubr.f32.mxu0 %v1841
        %v1843 = vand.u32 %v457, 4294901760
        %v1844 = vsub.f32 %v457, %v1843
        %v1845 = vand.u32 %v1844, 4294901760
        %1846 = vmatmul.mubr.f32.gmra.mxu0 %v1845
        %v1847 = vpop.f32.mrf.mxu0
        %v1848 = vadd.f32 %v1541, %v1847
        %v1849 = vpop.f32.mrf.mxu0
        %v1850 = vand.u32 %v544, 4294901760
        %v1851 = vsub.f32 %v544, %v1850
        %v1852 = vand.u32 %v1851, 4294901760
        %1853 = vmatprep.mubr.f32.mxu0 %v1852
        %v1854 = vand.u32 %v459, 4294901760
        %v1855 = vsub.f32 %v459, %v1854
        %v1856 = vand.u32 %v1855, 4294901760
        %1857 = vmatmul.mubr.f32.gmra.mxu0 %v1856
        %v1858 = vpop.f32.mrf.mxu0
        %v1859 = vadd.f32 %v1550, %v1858
        %v1860 = vpop.f32.mrf.mxu0
        %1861 = vdwg.mxu0
        %1862 = vmatprep.subr.mxu0 0.0
        %v1863 = vand.u32 %v476, 4294901760
        %v1864 = vsub.f32 %v476, %v1863
        %v1865 = vand.u32 %v1864, 4294901760
        %1866 = vmatpush1.msra.mxu0 %v1865
        %1867 = vmatprep.subr.mxu0 0.0
        %v1868 = vand.u32 %v475, 4294901760
        %v1869 = vsub.f32 %v475, %v1868
        %v1870 = vand.u32 %v1869, 4294901760
        %1871 = vmatpush1.msra.mxu0 %v1870
        %1872 = vmatprep.subr.mxu0 0.0
        %v1873 = vand.u32 %v474, 4294901760
        %v1874 = vsub.f32 %v474, %v1873
        %v1875 = vand.u32 %v1874, 4294901760
        %1876 = vmatpush1.msra.mxu0 %v1875
        %1877 = vmatprep.subr.mxu0 0.0
        %v1878 = vand.u32 %v473, 4294901760
        %v1879 = vsub.f32 %v473, %v1878
        %v1880 = vand.u32 %v1879, 4294901760
        %1881 = vmatpush1.msra.mxu0 %v1880
        %1882 = vmatprep.subr.mxu0 0.0
        %v1883 = vand.u32 %v472, 4294901760
        %v1884 = vsub.f32 %v472, %v1883
        %v1885 = vand.u32 %v1884, 4294901760
        %1886 = vmatpush1.msra.mxu0 %v1885
        %1887 = vmatprep.subr.mxu0 0.0
        %v1888 = vand.u32 %v471, 4294901760
        %v1889 = vsub.f32 %v471, %v1888
        %v1890 = vand.u32 %v1889, 4294901760
        %1891 = vmatpush1.msra.mxu0 %v1890
        %1892 = vmatprep.subr.mxu0 0.0
        %v1893 = vand.u32 %v470, 4294901760
        %v1894 = vsub.f32 %v470, %v1893
        %v1895 = vand.u32 %v1894, 4294901760
        %1896 = vmatpush1.msra.mxu0 %v1895
        %1897 = vmatprep.subr.mxu0 0.0
        %v1898 = vand.u32 %v469, 4294901760
        %v1899 = vsub.f32 %v469, %v1898
        %v1900 = vand.u32 %v1899, 4294901760
        %1901 = vmatpush1.msra.mxu0 %v1900
        %1902 = vmatprep.subr.mxu0 0.0
        %v1903 = vand.u32 %v468, 4294901760
        %v1904 = vsub.f32 %v468, %v1903
        %v1905 = vand.u32 %v1904, 4294901760
        %1906 = vmatpush1.msra.mxu0 %v1905
        %1907 = vmatprep.subr.mxu0 0.0
        %v1908 = vand.u32 %v467, 4294901760
        %v1909 = vsub.f32 %v467, %v1908
        %v1910 = vand.u32 %v1909, 4294901760
        %1911 = vmatpush1.msra.mxu0 %v1910
        %1912 = vmatprep.subr.mxu0 0.0
        %v1913 = vand.u32 %v466, 4294901760
        %v1914 = vsub.f32 %v466, %v1913
        %v1915 = vand.u32 %v1914, 4294901760
        %1916 = vmatpush1.msra.mxu0 %v1915
        %1917 = vmatprep.subr.mxu0 0.0
        %v1918 = vand.u32 %v465, 4294901760
        %v1919 = vsub.f32 %v465, %v1918
        %v1920 = vand.u32 %v1919, 4294901760
        %1921 = vmatpush1.msra.mxu0 %v1920
        %1922 = vmatprep.subr.mxu0 0.0
        %v1923 = vand.u32 %v464, 4294901760
        %v1924 = vsub.f32 %v464, %v1923
        %v1925 = vand.u32 %v1924, 4294901760
        %1926 = vmatpush1.msra.mxu0 %v1925
        %1927 = vmatprep.subr.mxu0 0.0
        %v1928 = vand.u32 %v463, 4294901760
        %v1929 = vsub.f32 %v463, %v1928
        %v1930 = vand.u32 %v1929, 4294901760
        %1931 = vmatpush1.msra.mxu0 %v1930
        %1932 = vmatprep.subr.mxu0 0.0
        %v1933 = vand.u32 %v462, 4294901760
        %v1934 = vsub.f32 %v462, %v1933
        %v1935 = vand.u32 %v1934, 4294901760
        %1936 = vmatpush1.msra.mxu0 %v1935
        %1937 = vmatprep.subr.mxu0 0.0
        %v1938 = vand.u32 %v461, 4294901760
        %v1939 = vsub.f32 %v461, %v1938
        %v1940 = vand.u32 %v1939, 4294901760
        %1941 = vmatpush1.msra.mxu0 %v1940
        %1942 = vmatprep.subr.mxu0 0.0
        %1943 = vmatpush2.msra.mxu0 0.0
        %1944 = vmatprep.subr.mxu0 0.0
        %1945 = vmatpush2.msra.mxu0 0.0
        %1946 = vmatprep.subr.mxu0 0.0
        %1947 = vmatpush2.msra.mxu0 0.0
        %1948 = vmatprep.subr.mxu0 0.0
        %1949 = vmatpush2.msra.mxu0 0.0
        %1950 = vmatprep.subr.mxu0 0.0
        %1951 = vmatpush2.msra.mxu0 0.0
        %1952 = vmatprep.subr.mxu0 0.0
        %1953 = vmatpush2.msra.mxu0 0.0
        %1954 = vmatprep.subr.mxu0 0.0
        %1955 = vmatpush2.msra.mxu0 0.0
        %1956 = vmatprep.subr.mxu0 0.0
        %1957 = vmatpush2.msra.mxu0 0.0
        %1958 = vmatprep.subr.mxu0 0.0
        %v1959 = vand.u32 %v484, 4294901760
        %v1960 = vsub.f32 %v484, %v1959
        %v1961 = vand.u32 %v1960, 4294901760
        %1962 = vmatpush2.msra.mxu0 %v1961
        %1963 = vmatprep.subr.mxu0 0.0
        %v1964 = vand.u32 %v483, 4294901760
        %v1965 = vsub.f32 %v483, %v1964
        %v1966 = vand.u32 %v1965, 4294901760
        %1967 = vmatpush2.msra.mxu0 %v1966
        %1968 = vmatprep.subr.mxu0 0.0
        %v1969 = vand.u32 %v482, 4294901760
        %v1970 = vsub.f32 %v482, %v1969
        %v1971 = vand.u32 %v1970, 4294901760
        %1972 = vmatpush2.msra.mxu0 %v1971
        %1973 = vmatprep.subr.mxu0 0.0
        %v1974 = vand.u32 %v481, 4294901760
        %v1975 = vsub.f32 %v481, %v1974
        %v1976 = vand.u32 %v1975, 4294901760
        %1977 = vmatpush2.msra.mxu0 %v1976
        %1978 = vmatprep.subr.mxu0 0.0
        %v1979 = vand.u32 %v480, 4294901760
        %v1980 = vsub.f32 %v480, %v1979
        %v1981 = vand.u32 %v1980, 4294901760
        %1982 = vmatpush2.msra.mxu0 %v1981
        %1983 = vmatprep.subr.mxu0 0.0
        %v1984 = vand.u32 %v479, 4294901760
        %v1985 = vsub.f32 %v479, %v1984
        %v1986 = vand.u32 %v1985, 4294901760
        %1987 = vmatpush2.msra.mxu0 %v1986
        %1988 = vmatprep.subr.mxu0 0.0
        %v1989 = vand.u32 %v478, 4294901760
        %v1990 = vsub.f32 %v478, %v1989
        %v1991 = vand.u32 %v1990, 4294901760
        %1992 = vmatpush2.msra.mxu0 %v1991
        %1993 = vmatprep.subr.mxu0 0.0
        %v1994 = vand.u32 %v477, 4294901760
        %v1995 = vsub.f32 %v477, %v1994
        %v1996 = vand.u32 %v1995, 4294901760
        %1997 = vmatpush2.msra.mxu0 %v1996
        %v1998 = vand.u32 %v487, 4294901760
        %1999 = vmatprep.mubr.f32.mxu0 %v1998
        %v2000 = vand.u32 %v421, 4294901760
        %2001 = vmatmul.mubr.f32.gmra.mxu0 %v2000
        %v2002 = vpop.f32.mrf.mxu0
        %v2003 = vadd.f32 %v1650, %v2002
        %v2004 = vpop.f32.mrf.mxu0
        %v2005 = vand.u32 %v490, 4294901760
        %2006 = vmatprep.mubr.f32.mxu0 %v2005
        %v2007 = vand.u32 %v423, 4294901760
        %2008 = vmatmul.mubr.f32.gmra.mxu0 %v2007
        %v2009 = vpop.f32.mrf.mxu0
        %v2010 = vadd.f32 %v1661, %v2009
        %v2011 = vpop.f32.mrf.mxu0
        %v2012 = vand.u32 %v493, 4294901760
        %2013 = vmatprep.mubr.f32.mxu0 %v2012
        %v2014 = vand.u32 %v425, 4294901760
        %2015 = vmatmul.mubr.f32.gmra.mxu0 %v2014
        %v2016 = vpop.f32.mrf.mxu0
        %v2017 = vadd.f32 %v1672, %v2016
        %v2018 = vpop.f32.mrf.mxu0
        %v2019 = vand.u32 %v496, 4294901760
        %2020 = vmatprep.mubr.f32.mxu0 %v2019
        %v2021 = vand.u32 %v427, 4294901760
        %2022 = vmatmul.mubr.f32.gmra.mxu0 %v2021
        %v2023 = vpop.f32.mrf.mxu0
        %v2024 = vadd.f32 %v1683, %v2023
        %v2025 = vpop.f32.mrf.mxu0
        %v2026 = vand.u32 %v499, 4294901760
        %2027 = vmatprep.mubr.f32.mxu0 %v2026
        %v2028 = vand.u32 %v429, 4294901760
        %2029 = vmatmul.mubr.f32.gmra.mxu0 %v2028
        %v2030 = vpop.f32.mrf.mxu0
        %v2031 = vadd.f32 %v1694, %v2030
        %v2032 = vpop.f32.mrf.mxu0
        %v2033 = vand.u32 %v502, 4294901760
        %2034 = vmatprep.mubr.f32.mxu0 %v2033
        %v2035 = vand.u32 %v431, 4294901760
        %2036 = vmatmul.mubr.f32.gmra.mxu0 %v2035
        %v2037 = vpop.f32.mrf.mxu0
        %v2038 = vadd.f32 %v1705, %v2037
        %v2039 = vpop.f32.mrf.mxu0
        %v2040 = vand.u32 %v505, 4294901760
        %2041 = vmatprep.mubr.f32.mxu0 %v2040
        %v2042 = vand.u32 %v433, 4294901760
        %2043 = vmatmul.mubr.f32.gmra.mxu0 %v2042
        %v2044 = vpop.f32.mrf.mxu0
        %v2045 = vadd.f32 %v1716, %v2044
        %v2046 = vpop.f32.mrf.mxu0
        %v2047 = vand.u32 %v508, 4294901760
        %2048 = vmatprep.mubr.f32.mxu0 %v2047
        %v2049 = vand.u32 %v435, 4294901760
        %2050 = vmatmul.mubr.f32.gmra.mxu0 %v2049
        %v2051 = vpop.f32.mrf.mxu0
        %v2052 = vadd.f32 %v1727, %v2051
        %v2053 = vpop.f32.mrf.mxu0
        %v2054 = vand.u32 %v511, 4294901760
        %2055 = vmatprep.mubr.f32.mxu0 %v2054
        %v2056 = vand.u32 %v437, 4294901760
        %2057 = vmatmul.mubr.f32.gmra.mxu0 %v2056
        %v2058 = vpop.f32.mrf.mxu0
        %v2059 = vadd.f32 %v1738, %v2058
        %v2060 = vpop.f32.mrf.mxu0
        %v2061 = vand.u32 %v514, 4294901760
        %2062 = vmatprep.mubr.f32.mxu0 %v2061
        %v2063 = vand.u32 %v439, 4294901760
        %2064 = vmatmul.mubr.f32.gmra.mxu0 %v2063
        %v2065 = vpop.f32.mrf.mxu0
        %v2066 = vadd.f32 %v1749, %v2065
        %v2067 = vpop.f32.mrf.mxu0
        %v2068 = vand.u32 %v517, 4294901760
        %2069 = vmatprep.mubr.f32.mxu0 %v2068
        %v2070 = vand.u32 %v441, 4294901760
        %2071 = vmatmul.mubr.f32.gmra.mxu0 %v2070
        %v2072 = vpop.f32.mrf.mxu0
        %v2073 = vadd.f32 %v1760, %v2072
        %v2074 = vpop.f32.mrf.mxu0
        %v2075 = vand.u32 %v520, 4294901760
        %2076 = vmatprep.mubr.f32.mxu0 %v2075
        %v2077 = vand.u32 %v443, 4294901760
        %2078 = vmatmul.mubr.f32.gmra.mxu0 %v2077
        %v2079 = vpop.f32.mrf.mxu0
        %v2080 = vadd.f32 %v1771, %v2079
        %v2081 = vpop.f32.mrf.mxu0
        %v2082 = vand.u32 %v523, 4294901760
        %2083 = vmatprep.mubr.f32.mxu0 %v2082
        %v2084 = vand.u32 %v445, 4294901760
        %2085 = vmatmul.mubr.f32.gmra.mxu0 %v2084
        %v2086 = vpop.f32.mrf.mxu0
        %v2087 = vadd.f32 %v1782, %v2086
        %v2088 = vpop.f32.mrf.mxu0
        %v2089 = vand.u32 %v526, 4294901760
        %2090 = vmatprep.mubr.f32.mxu0 %v2089
        %v2091 = vand.u32 %v447, 4294901760
        %2092 = vmatmul.mubr.f32.gmra.mxu0 %v2091
        %v2093 = vpop.f32.mrf.mxu0
        %v2094 = vadd.f32 %v1793, %v2093
        %v2095 = vpop.f32.mrf.mxu0
        %v2096 = vand.u32 %v529, 4294901760
        %2097 = vmatprep.mubr.f32.mxu0 %v2096
        %v2098 = vand.u32 %v449, 4294901760
        %2099 = vmatmul.mubr.f32.gmra.mxu0 %v2098
        %v2100 = vpop.f32.mrf.mxu0
        %v2101 = vadd.f32 %v1804, %v2100
        %v2102 = vpop.f32.mrf.mxu0
        %v2103 = vand.u32 %v532, 4294901760
        %2104 = vmatprep.mubr.f32.mxu0 %v2103
        %v2105 = vand.u32 %v451, 4294901760
        %2106 = vmatmul.mubr.f32.gmra.mxu0 %v2105
        %v2107 = vpop.f32.mrf.mxu0
        %v2108 = vadd.f32 %v1815, %v2107
        %v2109 = vpop.f32.mrf.mxu0
        %v2110 = vand.u32 %v535, 4294901760
        %2111 = vmatprep.mubr.f32.mxu0 %v2110
        %v2112 = vand.u32 %v453, 4294901760
        %2113 = vmatmul.mubr.f32.gmra.mxu0 %v2112
        %v2114 = vpop.f32.mrf.mxu0
        %v2115 = vadd.f32 %v1826, %v2114
        %v2116 = vpop.f32.mrf.mxu0
        %v2117 = vand.u32 %v538, 4294901760
        %2118 = vmatprep.mubr.f32.mxu0 %v2117
        %v2119 = vand.u32 %v455, 4294901760
        %2120 = vmatmul.mubr.f32.gmra.mxu0 %v2119
        %v2121 = vpop.f32.mrf.mxu0
        %v2122 = vadd.f32 %v1837, %v2121
        %v2123 = vpop.f32.mrf.mxu0
        %v2124 = vand.u32 %v541, 4294901760
        %2125 = vmatprep.mubr.f32.mxu0 %v2124
        %v2126 = vand.u32 %v457, 4294901760
        %2127 = vmatmul.mubr.f32.gmra.mxu0 %v2126
        %v2128 = vpop.f32.mrf.mxu0
        %v2129 = vadd.f32 %v1848, %v2128
        %v2130 = vpop.f32.mrf.mxu0
        %v2131 = vand.u32 %v544, 4294901760
        %2132 = vmatprep.mubr.f32.mxu0 %v2131
        %v2133 = vand.u32 %v459, 4294901760
        %2134 = vmatmul.mubr.f32.gmra.mxu0 %v2133
        %v2135 = vpop.f32.mrf.mxu0
        %v2136 = vadd.f32 %v1859, %v2135
        %v2137 = vpop.f32.mrf.mxu0
        %2138 = vdwg.mxu0
        %2139 = vmatprep.subr.mxu0 0.0
        %v2140 = vand.u32 %v476, 4294901760
        %2141 = vmatpush1.msra.mxu0 %v2140
        %2142 = vmatprep.subr.mxu0 0.0
        %v2143 = vand.u32 %v475, 4294901760
        %2144 = vmatpush1.msra.mxu0 %v2143
        %2145 = vmatprep.subr.mxu0 0.0
        %v2146 = vand.u32 %v474, 4294901760
        %2147 = vmatpush1.msra.mxu0 %v2146
        %2148 = vmatprep.subr.mxu0 0.0
        %v2149 = vand.u32 %v473, 4294901760
        %2150 = vmatpush1.msra.mxu0 %v2149
        %2151 = vmatprep.subr.mxu0 0.0
        %v2152 = vand.u32 %v472, 4294901760
        %2153 = vmatpush1.msra.mxu0 %v2152
        %2154 = vmatprep.subr.mxu0 0.0
        %v2155 = vand.u32 %v471, 4294901760
        %2156 = vmatpush1.msra.mxu0 %v2155
        %2157 = vmatprep.subr.mxu0 0.0
        %v2158 = vand.u32 %v470, 4294901760
        %2159 = vmatpush1.msra.mxu0 %v2158
        %2160 = vmatprep.subr.mxu0 0.0
        %v2161 = vand.u32 %v469, 4294901760
        %2162 = vmatpush1.msra.mxu0 %v2161
        %2163 = vmatprep.subr.mxu0 0.0
        %v2164 = vand.u32 %v468, 4294901760
        %2165 = vmatpush1.msra.mxu0 %v2164
        %2166 = vmatprep.subr.mxu0 0.0
        %v2167 = vand.u32 %v467, 4294901760
        %2168 = vmatpush1.msra.mxu0 %v2167
        %2169 = vmatprep.subr.mxu0 0.0
        %v2170 = vand.u32 %v466, 4294901760
        %2171 = vmatpush1.msra.mxu0 %v2170
        %2172 = vmatprep.subr.mxu0 0.0
        %v2173 = vand.u32 %v465, 4294901760
        %2174 = vmatpush1.msra.mxu0 %v2173
        %2175 = vmatprep.subr.mxu0 0.0
        %v2176 = vand.u32 %v464, 4294901760
        %2177 = vmatpush1.msra.mxu0 %v2176
        %2178 = vmatprep.subr.mxu0 0.0
        %v2179 = vand.u32 %v463, 4294901760
        %2180 = vmatpush1.msra.mxu0 %v2179
        %2181 = vmatprep.subr.mxu0 0.0
        %v2182 = vand.u32 %v462, 4294901760
        %2183 = vmatpush1.msra.mxu0 %v2182
        %2184 = vmatprep.subr.mxu0 0.0
        %v2185 = vand.u32 %v461, 4294901760
        %2186 = vmatpush1.msra.mxu0 %v2185
        %2187 = vmatprep.subr.mxu0 0.0
        %2188 = vmatpush2.msra.mxu0 0.0
        %2189 = vmatprep.subr.mxu0 0.0
        %2190 = vmatpush2.msra.mxu0 0.0
        %2191 = vmatprep.subr.mxu0 0.0
        %2192 = vmatpush2.msra.mxu0 0.0
        %2193 = vmatprep.subr.mxu0 0.0
        %2194 = vmatpush2.msra.mxu0 0.0
        %2195 = vmatprep.subr.mxu0 0.0
        %2196 = vmatpush2.msra.mxu0 0.0
        %2197 = vmatprep.subr.mxu0 0.0
        %2198 = vmatpush2.msra.mxu0 0.0
        %2199 = vmatprep.subr.mxu0 0.0
        %2200 = vmatpush2.msra.mxu0 0.0
        %2201 = vmatprep.subr.mxu0 0.0
        %2202 = vmatpush2.msra.mxu0 0.0
        %2203 = vmatprep.subr.mxu0 0.0
        %v2204 = vand.u32 %v484, 4294901760
        %2205 = vmatpush2.msra.mxu0 %v2204
        %2206 = vmatprep.subr.mxu0 0.0
        %v2207 = vand.u32 %v483, 4294901760
        %2208 = vmatpush2.msra.mxu0 %v2207
        %2209 = vmatprep.subr.mxu0 0.0
        %v2210 = vand.u32 %v482, 4294901760
        %2211 = vmatpush2.msra.mxu0 %v2210
        %2212 = vmatprep.subr.mxu0 0.0
        %v2213 = vand.u32 %v481, 4294901760
        %2214 = vmatpush2.msra.mxu0 %v2213
        %2215 = vmatprep.subr.mxu0 0.0
        %v2216 = vand.u32 %v480, 4294901760
        %2217 = vmatpush2.msra.mxu0 %v2216
        %2218 = vmatprep.subr.mxu0 0.0
        %v2219 = vand.u32 %v479, 4294901760
        %2220 = vmatpush2.msra.mxu0 %v2219
        %2221 = vmatprep.subr.mxu0 0.0
        %v2222 = vand.u32 %v478, 4294901760
        %2223 = vmatpush2.msra.mxu0 %v2222
        %2224 = vmatprep.subr.mxu0 0.0
        %v2225 = vand.u32 %v477, 4294901760
        %2226 = vmatpush2.msra.mxu0 %v2225
        %v2227 = vand.u32 %v487, 4294901760
        %2228 = vmatprep.mubr.f32.mxu0 %v2227
        %v2229 = vand.u32 %v421, 4294901760
        %2230 = vmatmul.mubr.f32.gmra.mxu0 %v2229
        %v2231 = vpop.f32.mrf.mxu0
        %v2232 = vadd.f32 %v2003, %v2231
        %v2233 = vpop.f32.mrf.mxu0
        %v2234 = vand.u32 %v490, 4294901760
        %2235 = vmatprep.mubr.f32.mxu0 %v2234
        %v2236 = vand.u32 %v423, 4294901760
        %2237 = vmatmul.mubr.f32.gmra.mxu0 %v2236
        %v2238 = vpop.f32.mrf.mxu0
        %v2239 = vadd.f32 %v2010, %v2238
        %v2240 = vpop.f32.mrf.mxu0
        %v2241 = vand.u32 %v493, 4294901760
        %2242 = vmatprep.mubr.f32.mxu0 %v2241
        %v2243 = vand.u32 %v425, 4294901760
        %2244 = vmatmul.mubr.f32.gmra.mxu0 %v2243
        %v2245 = vpop.f32.mrf.mxu0
        %v2246 = vadd.f32 %v2017, %v2245
        %v2247 = vpop.f32.mrf.mxu0
        %v2248 = vand.u32 %v496, 4294901760
        %2249 = vmatprep.mubr.f32.mxu0 %v2248
        %v2250 = vand.u32 %v427, 4294901760
        %2251 = vmatmul.mubr.f32.gmra.mxu0 %v2250
        %v2252 = vpop.f32.mrf.mxu0
        %v2253 = vadd.f32 %v2024, %v2252
        %v2254 = vpop.f32.mrf.mxu0
        %v2255 = vand.u32 %v499, 4294901760
        %2256 = vmatprep.mubr.f32.mxu0 %v2255
        %v2257 = vand.u32 %v429, 4294901760
        %2258 = vmatmul.mubr.f32.gmra.mxu0 %v2257
        %v2259 = vpop.f32.mrf.mxu0
        %v2260 = vadd.f32 %v2031, %v2259
        %v2261 = vpop.f32.mrf.mxu0
        %v2262 = vand.u32 %v502, 4294901760
        %2263 = vmatprep.mubr.f32.mxu0 %v2262
        %v2264 = vand.u32 %v431, 4294901760
        %2265 = vmatmul.mubr.f32.gmra.mxu0 %v2264
        %v2266 = vpop.f32.mrf.mxu0
        %v2267 = vadd.f32 %v2038, %v2266
        %v2268 = vpop.f32.mrf.mxu0
        %v2269 = vand.u32 %v505, 4294901760
        %2270 = vmatprep.mubr.f32.mxu0 %v2269
        %v2271 = vand.u32 %v433, 4294901760
        %2272 = vmatmul.mubr.f32.gmra.mxu0 %v2271
        %v2273 = vpop.f32.mrf.mxu0
        %v2274 = vadd.f32 %v2045, %v2273
        %v2275 = vpop.f32.mrf.mxu0
        %v2276 = vand.u32 %v508, 4294901760
        %2277 = vmatprep.mubr.f32.mxu0 %v2276
        %v2278 = vand.u32 %v435, 4294901760
        %2279 = vmatmul.mubr.f32.gmra.mxu0 %v2278
        %v2280 = vpop.f32.mrf.mxu0
        %v2281 = vadd.f32 %v2052, %v2280
        %v2282 = vpop.f32.mrf.mxu0
        %v2283 = vand.u32 %v511, 4294901760
        %2284 = vmatprep.mubr.f32.mxu0 %v2283
        %v2285 = vand.u32 %v437, 4294901760
        %2286 = vmatmul.mubr.f32.gmra.mxu0 %v2285
        %v2287 = vpop.f32.mrf.mxu0
        %v2288 = vadd.f32 %v2059, %v2287
        %v2289 = vpop.f32.mrf.mxu0
        %v2290 = vand.u32 %v514, 4294901760
        %2291 = vmatprep.mubr.f32.mxu0 %v2290
        %v2292 = vand.u32 %v439, 4294901760
        %2293 = vmatmul.mubr.f32.gmra.mxu0 %v2292
        %v2294 = vpop.f32.mrf.mxu0
        %v2295 = vadd.f32 %v2066, %v2294
        %v2296 = vpop.f32.mrf.mxu0
        %v2297 = vand.u32 %v517, 4294901760
        %2298 = vmatprep.mubr.f32.mxu0 %v2297
        %v2299 = vand.u32 %v441, 4294901760
        %2300 = vmatmul.mubr.f32.gmra.mxu0 %v2299
        %v2301 = vpop.f32.mrf.mxu0
        %v2302 = vadd.f32 %v2073, %v2301
        %v2303 = vpop.f32.mrf.mxu0
        %v2304 = vand.u32 %v520, 4294901760
        %2305 = vmatprep.mubr.f32.mxu0 %v2304
        %v2306 = vand.u32 %v443, 4294901760
        %2307 = vmatmul.mubr.f32.gmra.mxu0 %v2306
        %v2308 = vpop.f32.mrf.mxu0
        %v2309 = vadd.f32 %v2080, %v2308
        %v2310 = vpop.f32.mrf.mxu0
        %v2311 = vand.u32 %v523, 4294901760
        %2312 = vmatprep.mubr.f32.mxu0 %v2311
        %v2313 = vand.u32 %v445, 4294901760
        %2314 = vmatmul.mubr.f32.gmra.mxu0 %v2313
        %v2315 = vpop.f32.mrf.mxu0
        %v2316 = vadd.f32 %v2087, %v2315
        %v2317 = vpop.f32.mrf.mxu0
        %v2318 = vand.u32 %v526, 4294901760
        %2319 = vmatprep.mubr.f32.mxu0 %v2318
        %v2320 = vand.u32 %v447, 4294901760
        %2321 = vmatmul.mubr.f32.gmra.mxu0 %v2320
        %v2322 = vpop.f32.mrf.mxu0
        %v2323 = vadd.f32 %v2094, %v2322
        %v2324 = vpop.f32.mrf.mxu0
        %v2325 = vand.u32 %v529, 4294901760
        %2326 = vmatprep.mubr.f32.mxu0 %v2325
        %v2327 = vand.u32 %v449, 4294901760
        %2328 = vmatmul.mubr.f32.gmra.mxu0 %v2327
        %v2329 = vpop.f32.mrf.mxu0
        %v2330 = vadd.f32 %v2101, %v2329
        %v2331 = vpop.f32.mrf.mxu0
        %v2332 = vand.u32 %v532, 4294901760
        %2333 = vmatprep.mubr.f32.mxu0 %v2332
        %v2334 = vand.u32 %v451, 4294901760
        %2335 = vmatmul.mubr.f32.gmra.mxu0 %v2334
        %v2336 = vpop.f32.mrf.mxu0
        %v2337 = vadd.f32 %v2108, %v2336
        %v2338 = vpop.f32.mrf.mxu0
        %v2339 = vand.u32 %v535, 4294901760
        %2340 = vmatprep.mubr.f32.mxu0 %v2339
        %v2341 = vand.u32 %v453, 4294901760
        %2342 = vmatmul.mubr.f32.gmra.mxu0 %v2341
        %v2343 = vpop.f32.mrf.mxu0
        %v2344 = vadd.f32 %v2115, %v2343
        %v2345 = vpop.f32.mrf.mxu0
        %v2346 = vand.u32 %v538, 4294901760
        %2347 = vmatprep.mubr.f32.mxu0 %v2346
        %v2348 = vand.u32 %v455, 4294901760
        %2349 = vmatmul.mubr.f32.gmra.mxu0 %v2348
        %v2350 = vpop.f32.mrf.mxu0
        %v2351 = vadd.f32 %v2122, %v2350
        %v2352 = vpop.f32.mrf.mxu0
        %v2353 = vand.u32 %v541, 4294901760
        %2354 = vmatprep.mubr.f32.mxu0 %v2353
        %v2355 = vand.u32 %v457, 4294901760
        %2356 = vmatmul.mubr.f32.gmra.mxu0 %v2355
        %v2357 = vpop.f32.mrf.mxu0
        %v2358 = vadd.f32 %v2129, %v2357
        %v2359 = vpop.f32.mrf.mxu0
        %v2360 = vand.u32 %v544, 4294901760
        %2361 = vmatprep.mubr.f32.mxu0 %v2360
        %v2362 = vand.u32 %v459, 4294901760
        %2363 = vmatmul.mubr.f32.gmra.mxu0 %v2362
        %v2364 = vpop.f32.mrf.mxu0
        %v2365 = vadd.f32 %v2136, %v2364
        %v2366 = vpop.f32.mrf.mxu0
        %2367 = vdwg.mxu0
        %v2368 = vld [vmem:[#allocation2] sm:$0xff]
        %v2369 = vld [vmem:[#allocation2 + $0x8] sm:$0xff]
        %v2370 = vld [vmem:[#allocation2 + $0x10] sm:$0xff]
        %v2371 = vld [vmem:[#allocation2 + $0x18] sm:$0xff]
        %v2372 = vld [vmem:[#allocation2 + $0x20] sm:$0xff]
        %v2373 = vld [vmem:[#allocation2 + $0x28] sm:$0xff]
        %v2374 = vld [vmem:[#allocation2 + $0x30] sm:$0xff]
        %v2375 = vld [vmem:[#allocation2 + $0x38] sm:$0xff]
        %v2376 = vld [vmem:[%s303] sm:$0xff]
        %v2377 = vld [vmem:[%s303 + $0x8] sm:$0xff]
        %v2378 = vld [vmem:[%s303 + $0x10] sm:$0xff]
        %v2379 = vld [vmem:[%s303 + $0x18] sm:$0xff]
        %v2380 = vld [vmem:[%s303 + $0x20] sm:$0xff]
        %v2381 = vld [vmem:[%s303 + $0x28] sm:$0xff]
        %v2382 = vld [vmem:[%s303 + $0x30] sm:$0xff]
        %v2383 = vld [vmem:[%s303 + $0x38] sm:$0xff]
        %v2384 = vld [vmem:[%s303 + $0x40] sm:$0xff]
        %v2385 = vld [vmem:[%s303 + $0x48] sm:$0xff]
        %v2386 = vld [vmem:[%s303 + $0x50] sm:$0xff]
        %v2387 = vld [vmem:[%s303 + $0x58] sm:$0xff]
        %v2388 = vld [vmem:[%s303 + $0x60] sm:$0xff]
        %v2389 = vld [vmem:[%s303 + $0x68] sm:$0xff]
        %v2390 = vld [vmem:[%s303 + $0x70] sm:$0xff]
        %v2391 = vld [vmem:[%s303 + $0x78] sm:$0xff]
        %vm2392 = vcmask 261120
        %v2394 = vsel %vm2392, %v2377, 0
        %v2397 = vsel %vm2392, %v2379, 0
        %v2400 = vsel %vm2392, %v2381, 0
        %v2403 = vsel %vm2392, %v2383, 0
        %v2406 = vsel %vm2392, %v2385, 0
        %v2409 = vsel %vm2392, %v2387, 0
        %v2412 = vsel %vm2392, %v2389, 0
        %v2415 = vsel %vm2392, %v2391, 0
        %2417 = vmatprep.subr.mxu0 0.0
        %v2418 = vand.u32 %v2337, 4294901760
        %2419 = vmatpush1.msra.mxu0 %v2418
        %2420 = vmatprep.subr.mxu0 0.0
        %v2421 = vand.u32 %v2330, 4294901760
        %2422 = vmatpush1.msra.mxu0 %v2421
        %2423 = vmatprep.subr.mxu0 0.0
        %v2424 = vand.u32 %v2323, 4294901760
        %2425 = vmatpush1.msra.mxu0 %v2424
        %2426 = vmatprep.subr.mxu0 0.0
        %v2427 = vand.u32 %v2316, 4294901760
        %2428 = vmatpush1.msra.mxu0 %v2427
        %2429 = vmatprep.subr.mxu0 0.0
        %v2430 = vand.u32 %v2309, 4294901760
        %2431 = vmatpush1.msra.mxu0 %v2430
        %2432 = vmatprep.subr.mxu0 0.0
        %v2433 = vand.u32 %v2302, 4294901760
        %2434 = vmatpush1.msra.mxu0 %v2433
        %2435 = vmatprep.subr.mxu0 0.0
        %v2436 = vand.u32 %v2295, 4294901760
        %2437 = vmatpush1.msra.mxu0 %v2436
        %2438 = vmatprep.subr.mxu0 0.0
        %v2439 = vand.u32 %v2288, 4294901760
        %2440 = vmatpush1.msra.mxu0 %v2439
        %2441 = vmatprep.subr.mxu0 0.0
        %v2442 = vand.u32 %v2281, 4294901760
        %2443 = vmatpush1.msra.mxu0 %v2442
        %2444 = vmatprep.subr.mxu0 0.0
        %v2445 = vand.u32 %v2274, 4294901760
        %2446 = vmatpush1.msra.mxu0 %v2445
        %2447 = vmatprep.subr.mxu0 0.0
        %v2448 = vand.u32 %v2267, 4294901760
        %2449 = vmatpush1.msra.mxu0 %v2448
        %2450 = vmatprep.subr.mxu0 0.0
        %v2451 = vand.u32 %v2260, 4294901760
        %2452 = vmatpush1.msra.mxu0 %v2451
        %2453 = vmatprep.subr.mxu0 0.0
        %v2454 = vand.u32 %v2253, 4294901760
        %2455 = vmatpush1.msra.mxu0 %v2454
        %2456 = vmatprep.subr.mxu0 0.0
        %v2457 = vand.u32 %v2246, 4294901760
        %2458 = vmatpush1.msra.mxu0 %v2457
        %2459 = vmatprep.subr.mxu0 0.0
        %v2460 = vand.u32 %v2239, 4294901760
        %2461 = vmatpush1.msra.mxu0 %v2460
        %2462 = vmatprep.subr.mxu0 0.0
        %v2463 = vand.u32 %v2232, 4294901760
        %2464 = vmatpush1.msra.mxu0 %v2463
        %2465 = vmatprep.subr.mxu0 0.0
        %2466 = vmatpush2.msra.mxu0 0.0
        %2467 = vmatprep.subr.mxu0 0.0
        %2468 = vmatpush2.msra.mxu0 0.0
        %2469 = vmatprep.subr.mxu0 0.0
        %2470 = vmatpush2.msra.mxu0 0.0
        %2471 = vmatprep.subr.mxu0 0.0
        %2472 = vmatpush2.msra.mxu0 0.0
        %2473 = vmatprep.subr.mxu0 0.0
        %2474 = vmatpush2.msra.mxu0 0.0
        %2475 = vmatprep.subr.mxu0 0.0
        %2476 = vmatpush2.msra.mxu0 0.0
        %2477 = vmatprep.subr.mxu0 0.0
        %2478 = vmatpush2.msra.mxu0 0.0
        %2479 = vmatprep.subr.mxu0 0.0
        %2480 = vmatpush2.msra.mxu0 0.0
        %2481 = vmatprep.subr.mxu0 0.0
        %2482 = vmatpush2.msra.mxu0 0.0
        %2483 = vmatprep.subr.mxu0 0.0
        %2484 = vmatpush2.msra.mxu0 0.0
        %2485 = vmatprep.subr.mxu0 0.0
        %2486 = vmatpush2.msra.mxu0 0.0
        %2487 = vmatprep.subr.mxu0 0.0
        %2488 = vmatpush2.msra.mxu0 0.0
        %2489 = vmatprep.subr.mxu0 0.0
        %v2490 = vand.u32 %v2365, 4294901760
        %2491 = vmatpush2.msra.mxu0 %v2490
        %2492 = vmatprep.subr.mxu0 0.0
        %v2493 = vand.u32 %v2358, 4294901760
        %2494 = vmatpush2.msra.mxu0 %v2493
        %2495 = vmatprep.subr.mxu0 0.0
        %v2496 = vand.u32 %v2351, 4294901760
        %2497 = vmatpush2.msra.mxu0 %v2496
        %2498 = vmatprep.subr.mxu0 0.0
        %v2499 = vand.u32 %v2344, 4294901760
        %2500 = vmatpush2.msra.mxu0 %v2499
        %v2501 = vand.u32 %v2394, 4294901760
        %v2502 = vsub.f32 %v2394, %v2501
        %v2503 = vand.u32 %v2502, 4294901760
        %v2504 = vsub.f32 %v2502, %v2503
        %v2505 = vand.u32 %v2504, 4294901760
        %2506 = vmatprep.mubr.f32.mxu0 %v2505
        %v2507 = vand.u32 %v2376, 4294901760
        %v2508 = vsub.f32 %v2376, %v2507
        %v2509 = vand.u32 %v2508, 4294901760
        %v2510 = vsub.f32 %v2508, %v2509
        %v2511 = vand.u32 %v2510, 4294901760
        %2512 = vmatmul.mubr.f32.gmra.mxu0 %v2511
        %v2513 = vpop.f32.mrf.mxu0
        %v2514 = vadd.f32 0.0, %v2513
        %v2515 = vpop.f32.mrf.mxu0
        %v2516 = vand.u32 %v2397, 4294901760
        %v2517 = vsub.f32 %v2397, %v2516
        %v2518 = vand.u32 %v2517, 4294901760
        %v2519 = vsub.f32 %v2517, %v2518
        %v2520 = vand.u32 %v2519, 4294901760
        %2521 = vmatprep.mubr.f32.mxu0 %v2520
        %v2522 = vand.u32 %v2378, 4294901760
        %v2523 = vsub.f32 %v2378, %v2522
        %v2524 = vand.u32 %v2523, 4294901760
        %v2525 = vsub.f32 %v2523, %v2524
        %v2526 = vand.u32 %v2525, 4294901760
        %2527 = vmatmul.mubr.f32.gmra.mxu0 %v2526
        %v2528 = vpop.f32.mrf.mxu0
        %v2529 = vadd.f32 0.0, %v2528
        %v2530 = vpop.f32.mrf.mxu0
        %v2531 = vand.u32 %v2400, 4294901760
        %v2532 = vsub.f32 %v2400, %v2531
        %v2533 = vand.u32 %v2532, 4294901760
        %v2534 = vsub.f32 %v2532, %v2533
        %v2535 = vand.u32 %v2534, 4294901760
        %2536 = vmatprep.mubr.f32.mxu0 %v2535
        %v2537 = vand.u32 %v2380, 4294901760
        %v2538 = vsub.f32 %v2380, %v2537
        %v2539 = vand.u32 %v2538, 4294901760
        %v2540 = vsub.f32 %v2538, %v2539
        %v2541 = vand.u32 %v2540, 4294901760
        %2542 = vmatmul.mubr.f32.gmra.mxu0 %v2541
        %v2543 = vpop.f32.mrf.mxu0
        %v2544 = vadd.f32 0.0, %v2543
        %v2545 = vpop.f32.mrf.mxu0
        %v2546 = vand.u32 %v2403, 4294901760
        %v2547 = vsub.f32 %v2403, %v2546
        %v2548 = vand.u32 %v2547, 4294901760
        %v2549 = vsub.f32 %v2547, %v2548
        %v2550 = vand.u32 %v2549, 4294901760
        %2551 = vmatprep.mubr.f32.mxu0 %v2550
        %v2552 = vand.u32 %v2382, 4294901760
        %v2553 = vsub.f32 %v2382, %v2552
        %v2554 = vand.u32 %v2553, 4294901760
        %v2555 = vsub.f32 %v2553, %v2554
        %v2556 = vand.u32 %v2555, 4294901760
        %2557 = vmatmul.mubr.f32.gmra.mxu0 %v2556
        %v2558 = vpop.f32.mrf.mxu0
        %v2559 = vadd.f32 0.0, %v2558
        %v2560 = vpop.f32.mrf.mxu0
        %v2561 = vand.u32 %v2406, 4294901760
        %v2562 = vsub.f32 %v2406, %v2561
        %v2563 = vand.u32 %v2562, 4294901760
        %v2564 = vsub.f32 %v2562, %v2563
        %v2565 = vand.u32 %v2564, 4294901760
        %2566 = vmatprep.mubr.f32.mxu0 %v2565
        %v2567 = vand.u32 %v2384, 4294901760
        %v2568 = vsub.f32 %v2384, %v2567
        %v2569 = vand.u32 %v2568, 4294901760
        %v2570 = vsub.f32 %v2568, %v2569
        %v2571 = vand.u32 %v2570, 4294901760
        %2572 = vmatmul.mubr.f32.gmra.mxu0 %v2571
        %v2573 = vpop.f32.mrf.mxu0
        %v2574 = vadd.f32 0.0, %v2573
        %v2575 = vpop.f32.mrf.mxu0
        %v2576 = vand.u32 %v2409, 4294901760
        %v2577 = vsub.f32 %v2409, %v2576
        %v2578 = vand.u32 %v2577, 4294901760
        %v2579 = vsub.f32 %v2577, %v2578
        %v2580 = vand.u32 %v2579, 4294901760
        %2581 = vmatprep.mubr.f32.mxu0 %v2580
        %v2582 = vand.u32 %v2386, 4294901760
        %v2583 = vsub.f32 %v2386, %v2582
        %v2584 = vand.u32 %v2583, 4294901760
        %v2585 = vsub.f32 %v2583, %v2584
        %v2586 = vand.u32 %v2585, 4294901760
        %2587 = vmatmul.mubr.f32.gmra.mxu0 %v2586
        %v2588 = vpop.f32.mrf.mxu0
        %v2589 = vadd.f32 0.0, %v2588
        %v2590 = vpop.f32.mrf.mxu0
        %v2591 = vand.u32 %v2412, 4294901760
        %v2592 = vsub.f32 %v2412, %v2591
        %v2593 = vand.u32 %v2592, 4294901760
        %v2594 = vsub.f32 %v2592, %v2593
        %v2595 = vand.u32 %v2594, 4294901760
        %2596 = vmatprep.mubr.f32.mxu0 %v2595
        %v2597 = vand.u32 %v2388, 4294901760
        %v2598 = vsub.f32 %v2388, %v2597
        %v2599 = vand.u32 %v2598, 4294901760
        %v2600 = vsub.f32 %v2598, %v2599
        %v2601 = vand.u32 %v2600, 4294901760
        %2602 = vmatmul.mubr.f32.gmra.mxu0 %v2601
        %v2603 = vpop.f32.mrf.mxu0
        %v2604 = vadd.f32 0.0, %v2603
        %v2605 = vpop.f32.mrf.mxu0
        %v2606 = vand.u32 %v2415, 4294901760
        %v2607 = vsub.f32 %v2415, %v2606
        %v2608 = vand.u32 %v2607, 4294901760
        %v2609 = vsub.f32 %v2607, %v2608
        %v2610 = vand.u32 %v2609, 4294901760
        %2611 = vmatprep.mubr.f32.mxu0 %v2610
        %v2612 = vand.u32 %v2390, 4294901760
        %v2613 = vsub.f32 %v2390, %v2612
        %v2614 = vand.u32 %v2613, 4294901760
        %v2615 = vsub.f32 %v2613, %v2614
        %v2616 = vand.u32 %v2615, 4294901760
        %2617 = vmatmul.mubr.f32.gmra.mxu0 %v2616
        %v2618 = vpop.f32.mrf.mxu0
        %v2619 = vadd.f32 0.0, %v2618
        %v2620 = vpop.f32.mrf.mxu0
        %2621 = vdwg.mxu0
        %2622 = vmatprep.subr.mxu0 0.0
        %v2623 = vand.u32 %v2337, 4294901760
        %v2624 = vsub.f32 %v2337, %v2623
        %v2625 = vand.u32 %v2624, 4294901760
        %v2626 = vsub.f32 %v2624, %v2625
        %v2627 = vand.u32 %v2626, 4294901760
        %2628 = vmatpush1.msra.mxu0 %v2627
        %2629 = vmatprep.subr.mxu0 0.0
        %v2630 = vand.u32 %v2330, 4294901760
        %v2631 = vsub.f32 %v2330, %v2630
        %v2632 = vand.u32 %v2631, 4294901760
        %v2633 = vsub.f32 %v2631, %v2632
        %v2634 = vand.u32 %v2633, 4294901760
        %2635 = vmatpush1.msra.mxu0 %v2634
        %2636 = vmatprep.subr.mxu0 0.0
        %v2637 = vand.u32 %v2323, 4294901760
        %v2638 = vsub.f32 %v2323, %v2637
        %v2639 = vand.u32 %v2638, 4294901760
        %v2640 = vsub.f32 %v2638, %v2639
        %v2641 = vand.u32 %v2640, 4294901760
        %2642 = vmatpush1.msra.mxu0 %v2641
        %2643 = vmatprep.subr.mxu0 0.0
        %v2644 = vand.u32 %v2316, 4294901760
        %v2645 = vsub.f32 %v2316, %v2644
        %v2646 = vand.u32 %v2645, 4294901760
        %v2647 = vsub.f32 %v2645, %v2646
        %v2648 = vand.u32 %v2647, 4294901760
        %2649 = vmatpush1.msra.mxu0 %v2648
        %2650 = vmatprep.subr.mxu0 0.0
        %v2651 = vand.u32 %v2309, 4294901760
        %v2652 = vsub.f32 %v2309, %v2651
        %v2653 = vand.u32 %v2652, 4294901760
        %v2654 = vsub.f32 %v2652, %v2653
        %v2655 = vand.u32 %v2654, 4294901760
        %2656 = vmatpush1.msra.mxu0 %v2655
        %2657 = vmatprep.subr.mxu0 0.0
        %v2658 = vand.u32 %v2302, 4294901760
        %v2659 = vsub.f32 %v2302, %v2658
        %v2660 = vand.u32 %v2659, 4294901760
        %v2661 = vsub.f32 %v2659, %v2660
        %v2662 = vand.u32 %v2661, 4294901760
        %2663 = vmatpush1.msra.mxu0 %v2662
        %2664 = vmatprep.subr.mxu0 0.0
        %v2665 = vand.u32 %v2295, 4294901760
        %v2666 = vsub.f32 %v2295, %v2665
        %v2667 = vand.u32 %v2666, 4294901760
        %v2668 = vsub.f32 %v2666, %v2667
        %v2669 = vand.u32 %v2668, 4294901760
        %2670 = vmatpush1.msra.mxu0 %v2669
        %2671 = vmatprep.subr.mxu0 0.0
        %v2672 = vand.u32 %v2288, 4294901760
        %v2673 = vsub.f32 %v2288, %v2672
        %v2674 = vand.u32 %v2673, 4294901760
        %v2675 = vsub.f32 %v2673, %v2674
        %v2676 = vand.u32 %v2675, 4294901760
        %2677 = vmatpush1.msra.mxu0 %v2676
        %2678 = vmatprep.subr.mxu0 0.0
        %v2679 = vand.u32 %v2281, 4294901760
        %v2680 = vsub.f32 %v2281, %v2679
        %v2681 = vand.u32 %v2680, 4294901760
        %v2682 = vsub.f32 %v2680, %v2681
        %v2683 = vand.u32 %v2682, 4294901760
        %2684 = vmatpush1.msra.mxu0 %v2683
        %2685 = vmatprep.subr.mxu0 0.0
        %v2686 = vand.u32 %v2274, 4294901760
        %v2687 = vsub.f32 %v2274, %v2686
        %v2688 = vand.u32 %v2687, 4294901760
        %v2689 = vsub.f32 %v2687, %v2688
        %v2690 = vand.u32 %v2689, 4294901760
        %2691 = vmatpush1.msra.mxu0 %v2690
        %2692 = vmatprep.subr.mxu0 0.0
        %v2693 = vand.u32 %v2267, 4294901760
        %v2694 = vsub.f32 %v2267, %v2693
        %v2695 = vand.u32 %v2694, 4294901760
        %v2696 = vsub.f32 %v2694, %v2695
        %v2697 = vand.u32 %v2696, 4294901760
        %2698 = vmatpush1.msra.mxu0 %v2697
        %2699 = vmatprep.subr.mxu0 0.0
        %v2700 = vand.u32 %v2260, 4294901760
        %v2701 = vsub.f32 %v2260, %v2700
        %v2702 = vand.u32 %v2701, 4294901760
        %v2703 = vsub.f32 %v2701, %v2702
        %v2704 = vand.u32 %v2703, 4294901760
        %2705 = vmatpush1.msra.mxu0 %v2704
        %2706 = vmatprep.subr.mxu0 0.0
        %v2707 = vand.u32 %v2253, 4294901760
        %v2708 = vsub.f32 %v2253, %v2707
        %v2709 = vand.u32 %v2708, 4294901760
        %v2710 = vsub.f32 %v2708, %v2709
        %v2711 = vand.u32 %v2710, 4294901760
        %2712 = vmatpush1.msra.mxu0 %v2711
        %2713 = vmatprep.subr.mxu0 0.0
        %v2714 = vand.u32 %v2246, 4294901760
        %v2715 = vsub.f32 %v2246, %v2714
        %v2716 = vand.u32 %v2715, 4294901760
        %v2717 = vsub.f32 %v2715, %v2716
        %v2718 = vand.u32 %v2717, 4294901760
        %2719 = vmatpush1.msra.mxu0 %v2718
        %2720 = vmatprep.subr.mxu0 0.0
        %v2721 = vand.u32 %v2239, 4294901760
        %v2722 = vsub.f32 %v2239, %v2721
        %v2723 = vand.u32 %v2722, 4294901760
        %v2724 = vsub.f32 %v2722, %v2723
        %v2725 = vand.u32 %v2724, 4294901760
        %2726 = vmatpush1.msra.mxu0 %v2725
        %2727 = vmatprep.subr.mxu0 0.0
        %v2728 = vand.u32 %v2232, 4294901760
        %v2729 = vsub.f32 %v2232, %v2728
        %v2730 = vand.u32 %v2729, 4294901760
        %v2731 = vsub.f32 %v2729, %v2730
        %v2732 = vand.u32 %v2731, 4294901760
        %2733 = vmatpush1.msra.mxu0 %v2732
        %2734 = vmatprep.subr.mxu0 0.0
        %2735 = vmatpush2.msra.mxu0 0.0
        %2736 = vmatprep.subr.mxu0 0.0
        %2737 = vmatpush2.msra.mxu0 0.0
        %2738 = vmatprep.subr.mxu0 0.0
        %2739 = vmatpush2.msra.mxu0 0.0
        %2740 = vmatprep.subr.mxu0 0.0
        %2741 = vmatpush2.msra.mxu0 0.0
        %2742 = vmatprep.subr.mxu0 0.0
        %2743 = vmatpush2.msra.mxu0 0.0
        %2744 = vmatprep.subr.mxu0 0.0
        %2745 = vmatpush2.msra.mxu0 0.0
        %2746 = vmatprep.subr.mxu0 0.0
        %2747 = vmatpush2.msra.mxu0 0.0
        %2748 = vmatprep.subr.mxu0 0.0
        %2749 = vmatpush2.msra.mxu0 0.0
        %2750 = vmatprep.subr.mxu0 0.0
        %2751 = vmatpush2.msra.mxu0 0.0
        %2752 = vmatprep.subr.mxu0 0.0
        %2753 = vmatpush2.msra.mxu0 0.0
        %2754 = vmatprep.subr.mxu0 0.0
        %2755 = vmatpush2.msra.mxu0 0.0
        %2756 = vmatprep.subr.mxu0 0.0
        %2757 = vmatpush2.msra.mxu0 0.0
        %2758 = vmatprep.subr.mxu0 0.0
        %v2759 = vand.u32 %v2365, 4294901760
        %v2760 = vsub.f32 %v2365, %v2759
        %v2761 = vand.u32 %v2760, 4294901760
        %v2762 = vsub.f32 %v2760, %v2761
        %v2763 = vand.u32 %v2762, 4294901760
        %2764 = vmatpush2.msra.mxu0 %v2763
        %2765 = vmatprep.subr.mxu0 0.0
        %v2766 = vand.u32 %v2358, 4294901760
        %v2767 = vsub.f32 %v2358, %v2766
        %v2768 = vand.u32 %v2767, 4294901760
        %v2769 = vsub.f32 %v2767, %v2768
        %v2770 = vand.u32 %v2769, 4294901760
        %2771 = vmatpush2.msra.mxu0 %v2770
        %2772 = vmatprep.subr.mxu0 0.0
        %v2773 = vand.u32 %v2351, 4294901760
        %v2774 = vsub.f32 %v2351, %v2773
        %v2775 = vand.u32 %v2774, 4294901760
        %v2776 = vsub.f32 %v2774, %v2775
        %v2777 = vand.u32 %v2776, 4294901760
        %2778 = vmatpush2.msra.mxu0 %v2777
        %2779 = vmatprep.subr.mxu0 0.0
        %v2780 = vand.u32 %v2344, 4294901760
        %v2781 = vsub.f32 %v2344, %v2780
        %v2782 = vand.u32 %v2781, 4294901760
        %v2783 = vsub.f32 %v2781, %v2782
        %v2784 = vand.u32 %v2783, 4294901760
        %2785 = vmatpush2.msra.mxu0 %v2784
        %v2786 = vand.u32 %v2394, 4294901760
        %2787 = vmatprep.mubr.f32.mxu0 %v2786
        %v2788 = vand.u32 %v2376, 4294901760
        %2789 = vmatmul.mubr.f32.gmra.mxu0 %v2788
        %v2790 = vpop.f32.mrf.mxu0
        %v2791 = vadd.f32 %v2514, %v2790
        %v2792 = vpop.f32.mrf.mxu0
        %v2793 = vand.u32 %v2397, 4294901760
        %2794 = vmatprep.mubr.f32.mxu0 %v2793
        %v2795 = vand.u32 %v2378, 4294901760
        %2796 = vmatmul.mubr.f32.gmra.mxu0 %v2795
        %v2797 = vpop.f32.mrf.mxu0
        %v2798 = vadd.f32 %v2529, %v2797
        %v2799 = vpop.f32.mrf.mxu0
        %v2800 = vand.u32 %v2400, 4294901760
        %2801 = vmatprep.mubr.f32.mxu0 %v2800
        %v2802 = vand.u32 %v2380, 4294901760
        %2803 = vmatmul.mubr.f32.gmra.mxu0 %v2802
        %v2804 = vpop.f32.mrf.mxu0
        %v2805 = vadd.f32 %v2544, %v2804
        %v2806 = vpop.f32.mrf.mxu0
        %v2807 = vand.u32 %v2403, 4294901760
        %2808 = vmatprep.mubr.f32.mxu0 %v2807
        %v2809 = vand.u32 %v2382, 4294901760
        %2810 = vmatmul.mubr.f32.gmra.mxu0 %v2809
        %v2811 = vpop.f32.mrf.mxu0
        %v2812 = vadd.f32 %v2559, %v2811
        %v2813 = vpop.f32.mrf.mxu0
        %v2814 = vand.u32 %v2406, 4294901760
        %2815 = vmatprep.mubr.f32.mxu0 %v2814
        %v2816 = vand.u32 %v2384, 4294901760
        %2817 = vmatmul.mubr.f32.gmra.mxu0 %v2816
        %v2818 = vpop.f32.mrf.mxu0
        %v2819 = vadd.f32 %v2574, %v2818
        %v2820 = vpop.f32.mrf.mxu0
        %v2821 = vand.u32 %v2409, 4294901760
        %2822 = vmatprep.mubr.f32.mxu0 %v2821
        %v2823 = vand.u32 %v2386, 4294901760
        %2824 = vmatmul.mubr.f32.gmra.mxu0 %v2823
        %v2825 = vpop.f32.mrf.mxu0
        %v2826 = vadd.f32 %v2589, %v2825
        %v2827 = vpop.f32.mrf.mxu0
        %v2828 = vand.u32 %v2412, 4294901760
        %2829 = vmatprep.mubr.f32.mxu0 %v2828
        %v2830 = vand.u32 %v2388, 4294901760
        %2831 = vmatmul.mubr.f32.gmra.mxu0 %v2830
        %v2832 = vpop.f32.mrf.mxu0
        %v2833 = vadd.f32 %v2604, %v2832
        %v2834 = vpop.f32.mrf.mxu0
        %v2835 = vand.u32 %v2415, 4294901760
        %2836 = vmatprep.mubr.f32.mxu0 %v2835
        %v2837 = vand.u32 %v2390, 4294901760
        %2838 = vmatmul.mubr.f32.gmra.mxu0 %v2837
        %v2839 = vpop.f32.mrf.mxu0
        %v2840 = vadd.f32 %v2619, %v2839
        %v2841 = vpop.f32.mrf.mxu0
        %2842 = vdwg.mxu0
        %2843 = vmatprep.subr.mxu0 0.0
        %v2844 = vand.u32 %v2337, 4294901760
        %v2845 = vsub.f32 %v2337, %v2844
        %2846 = vmatpush1.msra.mxu0 %v2845
        %2847 = vmatprep.subr.mxu0 0.0
        %v2848 = vand.u32 %v2330, 4294901760
        %v2849 = vsub.f32 %v2330, %v2848
        %2850 = vmatpush1.msra.mxu0 %v2849
        %2851 = vmatprep.subr.mxu0 0.0
        %v2852 = vand.u32 %v2323, 4294901760
        %v2853 = vsub.f32 %v2323, %v2852
        %2854 = vmatpush1.msra.mxu0 %v2853
        %2855 = vmatprep.subr.mxu0 0.0
        %v2856 = vand.u32 %v2316, 4294901760
        %v2857 = vsub.f32 %v2316, %v2856
        %2858 = vmatpush1.msra.mxu0 %v2857
        %2859 = vmatprep.subr.mxu0 0.0
        %v2860 = vand.u32 %v2309, 4294901760
        %v2861 = vsub.f32 %v2309, %v2860
        %2862 = vmatpush1.msra.mxu0 %v2861
        %2863 = vmatprep.subr.mxu0 0.0
        %v2864 = vand.u32 %v2302, 4294901760
        %v2865 = vsub.f32 %v2302, %v2864
        %2866 = vmatpush1.msra.mxu0 %v2865
        %2867 = vmatprep.subr.mxu0 0.0
        %v2868 = vand.u32 %v2295, 4294901760
        %v2869 = vsub.f32 %v2295, %v2868
        %2870 = vmatpush1.msra.mxu0 %v2869
        %2871 = vmatprep.subr.mxu0 0.0
        %v2872 = vand.u32 %v2288, 4294901760
        %v2873 = vsub.f32 %v2288, %v2872
        %2874 = vmatpush1.msra.mxu0 %v2873
        %2875 = vmatprep.subr.mxu0 0.0
        %v2876 = vand.u32 %v2281, 4294901760
        %v2877 = vsub.f32 %v2281, %v2876
        %2878 = vmatpush1.msra.mxu0 %v2877
        %2879 = vmatprep.subr.mxu0 0.0
        %v2880 = vand.u32 %v2274, 4294901760
        %v2881 = vsub.f32 %v2274, %v2880
        %2882 = vmatpush1.msra.mxu0 %v2881
        %2883 = vmatprep.subr.mxu0 0.0
        %v2884 = vand.u32 %v2267, 4294901760
        %v2885 = vsub.f32 %v2267, %v2884
        %2886 = vmatpush1.msra.mxu0 %v2885
        %2887 = vmatprep.subr.mxu0 0.0
        %v2888 = vand.u32 %v2260, 4294901760
        %v2889 = vsub.f32 %v2260, %v2888
        %2890 = vmatpush1.msra.mxu0 %v2889
        %2891 = vmatprep.subr.mxu0 0.0
        %v2892 = vand.u32 %v2253, 4294901760
        %v2893 = vsub.f32 %v2253, %v2892
        %2894 = vmatpush1.msra.mxu0 %v2893
        %2895 = vmatprep.subr.mxu0 0.0
        %v2896 = vand.u32 %v2246, 4294901760
        %v2897 = vsub.f32 %v2246, %v2896
        %2898 = vmatpush1.msra.mxu0 %v2897
        %2899 = vmatprep.subr.mxu0 0.0
        %v2900 = vand.u32 %v2239, 4294901760
        %v2901 = vsub.f32 %v2239, %v2900
        %2902 = vmatpush1.msra.mxu0 %v2901
        %2903 = vmatprep.subr.mxu0 0.0
        %v2904 = vand.u32 %v2232, 4294901760
        %v2905 = vsub.f32 %v2232, %v2904
        %2906 = vmatpush1.msra.mxu0 %v2905
        %2907 = vmatprep.subr.mxu0 0.0
        %2908 = vmatpush2.msra.mxu0 0.0
        %2909 = vmatprep.subr.mxu0 0.0
        %2910 = vmatpush2.msra.mxu0 0.0
        %2911 = vmatprep.subr.mxu0 0.0
        %2912 = vmatpush2.msra.mxu0 0.0
        %2913 = vmatprep.subr.mxu0 0.0
        %2914 = vmatpush2.msra.mxu0 0.0
        %2915 = vmatprep.subr.mxu0 0.0
        %2916 = vmatpush2.msra.mxu0 0.0
        %2917 = vmatprep.subr.mxu0 0.0
        %2918 = vmatpush2.msra.mxu0 0.0
        %2919 = vmatprep.subr.mxu0 0.0
        %2920 = vmatpush2.msra.mxu0 0.0
        %2921 = vmatprep.subr.mxu0 0.0
        %2922 = vmatpush2.msra.mxu0 0.0
        %2923 = vmatprep.subr.mxu0 0.0
        %2924 = vmatpush2.msra.mxu0 0.0
        %2925 = vmatprep.subr.mxu0 0.0
        %2926 = vmatpush2.msra.mxu0 0.0
        %2927 = vmatprep.subr.mxu0 0.0
        %2928 = vmatpush2.msra.mxu0 0.0
        %2929 = vmatprep.subr.mxu0 0.0
        %2930 = vmatpush2.msra.mxu0 0.0
        %2931 = vmatprep.subr.mxu0 0.0
        %v2932 = vand.u32 %v2365, 4294901760
        %v2933 = vsub.f32 %v2365, %v2932
        %2934 = vmatpush2.msra.mxu0 %v2933
        %2935 = vmatprep.subr.mxu0 0.0
        %v2936 = vand.u32 %v2358, 4294901760
        %v2937 = vsub.f32 %v2358, %v2936
        %2938 = vmatpush2.msra.mxu0 %v2937
        %2939 = vmatprep.subr.mxu0 0.0
        %v2940 = vand.u32 %v2351, 4294901760
        %v2941 = vsub.f32 %v2351, %v2940
        %2942 = vmatpush2.msra.mxu0 %v2941
        %2943 = vmatprep.subr.mxu0 0.0
        %v2944 = vand.u32 %v2344, 4294901760
        %v2945 = vsub.f32 %v2344, %v2944
        %2946 = vmatpush2.msra.mxu0 %v2945
        %v2947 = vand.u32 %v2394, 4294901760
        %v2948 = vsub.f32 %v2394, %v2947
        %2949 = vmatprep.mubr.f32.mxu0 %v2948
        %v2950 = vand.u32 %v2376, 4294901760
        %v2951 = vsub.f32 %v2376, %v2950
        %2952 = vmatmul.mubr.f32.gmra.mxu0 %v2951
        %v2953 = vpop.f32.mrf.mxu0
        %v2954 = vadd.f32 %v2791, %v2953
        %v2955 = vpop.f32.mrf.mxu0
        %v2956 = vand.u32 %v2397, 4294901760
        %v2957 = vsub.f32 %v2397, %v2956
        %2958 = vmatprep.mubr.f32.mxu0 %v2957
        %v2959 = vand.u32 %v2378, 4294901760
        %v2960 = vsub.f32 %v2378, %v2959
        %2961 = vmatmul.mubr.f32.gmra.mxu0 %v2960
        %v2962 = vpop.f32.mrf.mxu0
        %v2963 = vadd.f32 %v2798, %v2962
        %v2964 = vpop.f32.mrf.mxu0
        %v2965 = vand.u32 %v2400, 4294901760
        %v2966 = vsub.f32 %v2400, %v2965
        %2967 = vmatprep.mubr.f32.mxu0 %v2966
        %v2968 = vand.u32 %v2380, 4294901760
        %v2969 = vsub.f32 %v2380, %v2968
        %2970 = vmatmul.mubr.f32.gmra.mxu0 %v2969
        %v2971 = vpop.f32.mrf.mxu0
        %v2972 = vadd.f32 %v2805, %v2971
        %v2973 = vpop.f32.mrf.mxu0
        %v2974 = vand.u32 %v2403, 4294901760
        %v2975 = vsub.f32 %v2403, %v2974
        %2976 = vmatprep.mubr.f32.mxu0 %v2975
        %v2977 = vand.u32 %v2382, 4294901760
        %v2978 = vsub.f32 %v2382, %v2977
        %2979 = vmatmul.mubr.f32.gmra.mxu0 %v2978
        %v2980 = vpop.f32.mrf.mxu0
        %v2981 = vadd.f32 %v2812, %v2980
        %v2982 = vpop.f32.mrf.mxu0
        %v2983 = vand.u32 %v2406, 4294901760
        %v2984 = vsub.f32 %v2406, %v2983
        %2985 = vmatprep.mubr.f32.mxu0 %v2984
        %v2986 = vand.u32 %v2384, 4294901760
        %v2987 = vsub.f32 %v2384, %v2986
        %2988 = vmatmul.mubr.f32.gmra.mxu0 %v2987
        %v2989 = vpop.f32.mrf.mxu0
        %v2990 = vadd.f32 %v2819, %v2989
        %v2991 = vpop.f32.mrf.mxu0
        %v2992 = vand.u32 %v2409, 4294901760
        %v2993 = vsub.f32 %v2409, %v2992
        %2994 = vmatprep.mubr.f32.mxu0 %v2993
        %v2995 = vand.u32 %v2386, 4294901760
        %v2996 = vsub.f32 %v2386, %v2995
        %2997 = vmatmul.mubr.f32.gmra.mxu0 %v2996
        %v2998 = vpop.f32.mrf.mxu0
        %v2999 = vadd.f32 %v2826, %v2998
        %v3000 = vpop.f32.mrf.mxu0
        %v3001 = vand.u32 %v2412, 4294901760
        %v3002 = vsub.f32 %v2412, %v3001
        %3003 = vmatprep.mubr.f32.mxu0 %v3002
        %v3004 = vand.u32 %v2388, 4294901760
        %v3005 = vsub.f32 %v2388, %v3004
        %3006 = vmatmul.mubr.f32.gmra.mxu0 %v3005
        %v3007 = vpop.f32.mrf.mxu0
        %v3008 = vadd.f32 %v2833, %v3007
        %v3009 = vpop.f32.mrf.mxu0
        %v3010 = vand.u32 %v2415, 4294901760
        %v3011 = vsub.f32 %v2415, %v3010
        %3012 = vmatprep.mubr.f32.mxu0 %v3011
        %v3013 = vand.u32 %v2390, 4294901760
        %v3014 = vsub.f32 %v2390, %v3013
        %3015 = vmatmul.mubr.f32.gmra.mxu0 %v3014
        %v3016 = vpop.f32.mrf.mxu0
        %v3017 = vadd.f32 %v2840, %v3016
        %v3018 = vpop.f32.mrf.mxu0
        %3019 = vdwg.mxu0
        %3020 = vmatprep.subr.mxu0 0.0
        %v3021 = vand.u32 %v2337, 4294901760
        %3022 = vmatpush1.msra.mxu0 %v3021
        %3023 = vmatprep.subr.mxu0 0.0
        %v3024 = vand.u32 %v2330, 4294901760
        %3025 = vmatpush1.msra.mxu0 %v3024
        %3026 = vmatprep.subr.mxu0 0.0
        %v3027 = vand.u32 %v2323, 4294901760
        %3028 = vmatpush1.msra.mxu0 %v3027
        %3029 = vmatprep.subr.mxu0 0.0
        %v3030 = vand.u32 %v2316, 4294901760
        %3031 = vmatpush1.msra.mxu0 %v3030
        %3032 = vmatprep.subr.mxu0 0.0
        %v3033 = vand.u32 %v2309, 4294901760
        %3034 = vmatpush1.msra.mxu0 %v3033
        %3035 = vmatprep.subr.mxu0 0.0
        %v3036 = vand.u32 %v2302, 4294901760
        %3037 = vmatpush1.msra.mxu0 %v3036
        %3038 = vmatprep.subr.mxu0 0.0
        %v3039 = vand.u32 %v2295, 4294901760
        %3040 = vmatpush1.msra.mxu0 %v3039
        %3041 = vmatprep.subr.mxu0 0.0
        %v3042 = vand.u32 %v2288, 4294901760
        %3043 = vmatpush1.msra.mxu0 %v3042
        %3044 = vmatprep.subr.mxu0 0.0
        %v3045 = vand.u32 %v2281, 4294901760
        %3046 = vmatpush1.msra.mxu0 %v3045
        %3047 = vmatprep.subr.mxu0 0.0
        %v3048 = vand.u32 %v2274, 4294901760
        %3049 = vmatpush1.msra.mxu0 %v3048
        %3050 = vmatprep.subr.mxu0 0.0
        %v3051 = vand.u32 %v2267, 4294901760
        %3052 = vmatpush1.msra.mxu0 %v3051
        %3053 = vmatprep.subr.mxu0 0.0
        %v3054 = vand.u32 %v2260, 4294901760
        %3055 = vmatpush1.msra.mxu0 %v3054
        %3056 = vmatprep.subr.mxu0 0.0
        %v3057 = vand.u32 %v2253, 4294901760
        %3058 = vmatpush1.msra.mxu0 %v3057
        %3059 = vmatprep.subr.mxu0 0.0
        %v3060 = vand.u32 %v2246, 4294901760
        %3061 = vmatpush1.msra.mxu0 %v3060
        %3062 = vmatprep.subr.mxu0 0.0
        %v3063 = vand.u32 %v2239, 4294901760
        %3064 = vmatpush1.msra.mxu0 %v3063
        %3065 = vmatprep.subr.mxu0 0.0
        %v3066 = vand.u32 %v2232, 4294901760
        %3067 = vmatpush1.msra.mxu0 %v3066
        %3068 = vmatprep.subr.mxu0 0.0
        %3069 = vmatpush2.msra.mxu0 0.0
        %3070 = vmatprep.subr.mxu0 0.0
        %3071 = vmatpush2.msra.mxu0 0.0
        %3072 = vmatprep.subr.mxu0 0.0
        %3073 = vmatpush2.msra.mxu0 0.0
        %3074 = vmatprep.subr.mxu0 0.0
        %3075 = vmatpush2.msra.mxu0 0.0
        %3076 = vmatprep.subr.mxu0 0.0
        %3077 = vmatpush2.msra.mxu0 0.0
        %3078 = vmatprep.subr.mxu0 0.0
        %3079 = vmatpush2.msra.mxu0 0.0
        %3080 = vmatprep.subr.mxu0 0.0
        %3081 = vmatpush2.msra.mxu0 0.0
        %3082 = vmatprep.subr.mxu0 0.0
        %3083 = vmatpush2.msra.mxu0 0.0
        %3084 = vmatprep.subr.mxu0 0.0
        %3085 = vmatpush2.msra.mxu0 0.0
        %3086 = vmatprep.subr.mxu0 0.0
        %3087 = vmatpush2.msra.mxu0 0.0
        %3088 = vmatprep.subr.mxu0 0.0
        %3089 = vmatpush2.msra.mxu0 0.0
        %3090 = vmatprep.subr.mxu0 0.0
        %3091 = vmatpush2.msra.mxu0 0.0
        %3092 = vmatprep.subr.mxu0 0.0
        %v3093 = vand.u32 %v2365, 4294901760
        %3094 = vmatpush2.msra.mxu0 %v3093
        %3095 = vmatprep.subr.mxu0 0.0
        %v3096 = vand.u32 %v2358, 4294901760
        %3097 = vmatpush2.msra.mxu0 %v3096
        %3098 = vmatprep.subr.mxu0 0.0
        %v3099 = vand.u32 %v2351, 4294901760
        %3100 = vmatpush2.msra.mxu0 %v3099
        %3101 = vmatprep.subr.mxu0 0.0
        %v3102 = vand.u32 %v2344, 4294901760
        %3103 = vmatpush2.msra.mxu0 %v3102
        %v3104 = vand.u32 %v2394, 4294901760
        %v3105 = vsub.f32 %v2394, %v3104
        %v3106 = vand.u32 %v3105, 4294901760
        %3107 = vmatprep.mubr.f32.mxu0 %v3106
        %v3108 = vand.u32 %v2376, 4294901760
        %v3109 = vsub.f32 %v2376, %v3108
        %v3110 = vand.u32 %v3109, 4294901760
        %3111 = vmatmul.mubr.f32.gmra.mxu0 %v3110
        %v3112 = vpop.f32.mrf.mxu0
        %v3113 = vadd.f32 %v2954, %v3112
        %v3114 = vpop.f32.mrf.mxu0
        %v3115 = vand.u32 %v2397, 4294901760
        %v3116 = vsub.f32 %v2397, %v3115
        %v3117 = vand.u32 %v3116, 4294901760
        %3118 = vmatprep.mubr.f32.mxu0 %v3117
        %v3119 = vand.u32 %v2378, 4294901760
        %v3120 = vsub.f32 %v2378, %v3119
        %v3121 = vand.u32 %v3120, 4294901760
        %3122 = vmatmul.mubr.f32.gmra.mxu0 %v3121
        %v3123 = vpop.f32.mrf.mxu0
        %v3124 = vadd.f32 %v2963, %v3123
        %v3125 = vpop.f32.mrf.mxu0
        %v3126 = vand.u32 %v2400, 4294901760
        %v3127 = vsub.f32 %v2400, %v3126
        %v3128 = vand.u32 %v3127, 4294901760
        %3129 = vmatprep.mubr.f32.mxu0 %v3128
        %v3130 = vand.u32 %v2380, 4294901760
        %v3131 = vsub.f32 %v2380, %v3130
        %v3132 = vand.u32 %v3131, 4294901760
        %3133 = vmatmul.mubr.f32.gmra.mxu0 %v3132
        %v3134 = vpop.f32.mrf.mxu0
        %v3135 = vadd.f32 %v2972, %v3134
        %v3136 = vpop.f32.mrf.mxu0
        %v3137 = vand.u32 %v2403, 4294901760
        %v3138 = vsub.f32 %v2403, %v3137
        %v3139 = vand.u32 %v3138, 4294901760
        %3140 = vmatprep.mubr.f32.mxu0 %v3139
        %v3141 = vand.u32 %v2382, 4294901760
        %v3142 = vsub.f32 %v2382, %v3141
        %v3143 = vand.u32 %v3142, 4294901760
        %3144 = vmatmul.mubr.f32.gmra.mxu0 %v3143
        %v3145 = vpop.f32.mrf.mxu0
        %v3146 = vadd.f32 %v2981, %v3145
        %v3147 = vpop.f32.mrf.mxu0
        %v3148 = vand.u32 %v2406, 4294901760
        %v3149 = vsub.f32 %v2406, %v3148
        %v3150 = vand.u32 %v3149, 4294901760
        %3151 = vmatprep.mubr.f32.mxu0 %v3150
        %v3152 = vand.u32 %v2384, 4294901760
        %v3153 = vsub.f32 %v2384, %v3152
        %v3154 = vand.u32 %v3153, 4294901760
        %3155 = vmatmul.mubr.f32.gmra.mxu0 %v3154
        %v3156 = vpop.f32.mrf.mxu0
        %v3157 = vadd.f32 %v2990, %v3156
        %v3158 = vpop.f32.mrf.mxu0
        %v3159 = vand.u32 %v2409, 4294901760
        %v3160 = vsub.f32 %v2409, %v3159
        %v3161 = vand.u32 %v3160, 4294901760
        %3162 = vmatprep.mubr.f32.mxu0 %v3161
        %v3163 = vand.u32 %v2386, 4294901760
        %v3164 = vsub.f32 %v2386, %v3163
        %v3165 = vand.u32 %v3164, 4294901760
        %3166 = vmatmul.mubr.f32.gmra.mxu0 %v3165
        %v3167 = vpop.f32.mrf.mxu0
        %v3168 = vadd.f32 %v2999, %v3167
        %v3169 = vpop.f32.mrf.mxu0
        %v3170 = vand.u32 %v2412, 4294901760
        %v3171 = vsub.f32 %v2412, %v3170
        %v3172 = vand.u32 %v3171, 4294901760
        %3173 = vmatprep.mubr.f32.mxu0 %v3172
        %v3174 = vand.u32 %v2388, 4294901760
        %v3175 = vsub.f32 %v2388, %v3174
        %v3176 = vand.u32 %v3175, 4294901760
        %3177 = vmatmul.mubr.f32.gmra.mxu0 %v3176
        %v3178 = vpop.f32.mrf.mxu0
        %v3179 = vadd.f32 %v3008, %v3178
        %v3180 = vpop.f32.mrf.mxu0
        %v3181 = vand.u32 %v2415, 4294901760
        %v3182 = vsub.f32 %v2415, %v3181
        %v3183 = vand.u32 %v3182, 4294901760
        %3184 = vmatprep.mubr.f32.mxu0 %v3183
        %v3185 = vand.u32 %v2390, 4294901760
        %v3186 = vsub.f32 %v2390, %v3185
        %v3187 = vand.u32 %v3186, 4294901760
        %3188 = vmatmul.mubr.f32.gmra.mxu0 %v3187
        %v3189 = vpop.f32.mrf.mxu0
        %v3190 = vadd.f32 %v3017, %v3189
        %v3191 = vpop.f32.mrf.mxu0
        %3192 = vdwg.mxu0
        %3193 = vmatprep.subr.mxu0 0.0
        %v3194 = vand.u32 %v2337, 4294901760
        %v3195 = vsub.f32 %v2337, %v3194
        %v3196 = vand.u32 %v3195, 4294901760
        %3197 = vmatpush1.msra.mxu0 %v3196
        %3198 = vmatprep.subr.mxu0 0.0
        %v3199 = vand.u32 %v2330, 4294901760
        %v3200 = vsub.f32 %v2330, %v3199
        %v3201 = vand.u32 %v3200, 4294901760
        %3202 = vmatpush1.msra.mxu0 %v3201
        %3203 = vmatprep.subr.mxu0 0.0
        %v3204 = vand.u32 %v2323, 4294901760
        %v3205 = vsub.f32 %v2323, %v3204
        %v3206 = vand.u32 %v3205, 4294901760
        %3207 = vmatpush1.msra.mxu0 %v3206
        %3208 = vmatprep.subr.mxu0 0.0
        %v3209 = vand.u32 %v2316, 4294901760
        %v3210 = vsub.f32 %v2316, %v3209
        %v3211 = vand.u32 %v3210, 4294901760
        %3212 = vmatpush1.msra.mxu0 %v3211
        %3213 = vmatprep.subr.mxu0 0.0
        %v3214 = vand.u32 %v2309, 4294901760
        %v3215 = vsub.f32 %v2309, %v3214
        %v3216 = vand.u32 %v3215, 4294901760
        %3217 = vmatpush1.msra.mxu0 %v3216
        %3218 = vmatprep.subr.mxu0 0.0
        %v3219 = vand.u32 %v2302, 4294901760
        %v3220 = vsub.f32 %v2302, %v3219
        %v3221 = vand.u32 %v3220, 4294901760
        %3222 = vmatpush1.msra.mxu0 %v3221
        %3223 = vmatprep.subr.mxu0 0.0
        %v3224 = vand.u32 %v2295, 4294901760
        %v3225 = vsub.f32 %v2295, %v3224
        %v3226 = vand.u32 %v3225, 4294901760
        %3227 = vmatpush1.msra.mxu0 %v3226
        %3228 = vmatprep.subr.mxu0 0.0
        %v3229 = vand.u32 %v2288, 4294901760
        %v3230 = vsub.f32 %v2288, %v3229
        %v3231 = vand.u32 %v3230, 4294901760
        %3232 = vmatpush1.msra.mxu0 %v3231
        %3233 = vmatprep.subr.mxu0 0.0
        %v3234 = vand.u32 %v2281, 4294901760
        %v3235 = vsub.f32 %v2281, %v3234
        %v3236 = vand.u32 %v3235, 4294901760
        %3237 = vmatpush1.msra.mxu0 %v3236
        %3238 = vmatprep.subr.mxu0 0.0
        %v3239 = vand.u32 %v2274, 4294901760
        %v3240 = vsub.f32 %v2274, %v3239
        %v3241 = vand.u32 %v3240, 4294901760
        %3242 = vmatpush1.msra.mxu0 %v3241
        %3243 = vmatprep.subr.mxu0 0.0
        %v3244 = vand.u32 %v2267, 4294901760
        %v3245 = vsub.f32 %v2267, %v3244
        %v3246 = vand.u32 %v3245, 4294901760
        %3247 = vmatpush1.msra.mxu0 %v3246
        %3248 = vmatprep.subr.mxu0 0.0
        %v3249 = vand.u32 %v2260, 4294901760
        %v3250 = vsub.f32 %v2260, %v3249
        %v3251 = vand.u32 %v3250, 4294901760
        %3252 = vmatpush1.msra.mxu0 %v3251
        %3253 = vmatprep.subr.mxu0 0.0
        %v3254 = vand.u32 %v2253, 4294901760
        %v3255 = vsub.f32 %v2253, %v3254
        %v3256 = vand.u32 %v3255, 4294901760
        %3257 = vmatpush1.msra.mxu0 %v3256
        %3258 = vmatprep.subr.mxu0 0.0
        %v3259 = vand.u32 %v2246, 4294901760
        %v3260 = vsub.f32 %v2246, %v3259
        %v3261 = vand.u32 %v3260, 4294901760
        %3262 = vmatpush1.msra.mxu0 %v3261
        %3263 = vmatprep.subr.mxu0 0.0
        %v3264 = vand.u32 %v2239, 4294901760
        %v3265 = vsub.f32 %v2239, %v3264
        %v3266 = vand.u32 %v3265, 4294901760
        %3267 = vmatpush1.msra.mxu0 %v3266
        %3268 = vmatprep.subr.mxu0 0.0
        %v3269 = vand.u32 %v2232, 4294901760
        %v3270 = vsub.f32 %v2232, %v3269
        %v3271 = vand.u32 %v3270, 4294901760
        %3272 = vmatpush1.msra.mxu0 %v3271
        %3273 = vmatprep.subr.mxu0 0.0
        %3274 = vmatpush2.msra.mxu0 0.0
        %3275 = vmatprep.subr.mxu0 0.0
        %3276 = vmatpush2.msra.mxu0 0.0
        %3277 = vmatprep.subr.mxu0 0.0
        %3278 = vmatpush2.msra.mxu0 0.0
        %3279 = vmatprep.subr.mxu0 0.0
        %3280 = vmatpush2.msra.mxu0 0.0
        %3281 = vmatprep.subr.mxu0 0.0
        %3282 = vmatpush2.msra.mxu0 0.0
        %3283 = vmatprep.subr.mxu0 0.0
        %3284 = vmatpush2.msra.mxu0 0.0
        %3285 = vmatprep.subr.mxu0 0.0
        %3286 = vmatpush2.msra.mxu0 0.0
        %3287 = vmatprep.subr.mxu0 0.0
        %3288 = vmatpush2.msra.mxu0 0.0
        %3289 = vmatprep.subr.mxu0 0.0
        %3290 = vmatpush2.msra.mxu0 0.0
        %3291 = vmatprep.subr.mxu0 0.0
        %3292 = vmatpush2.msra.mxu0 0.0
        %3293 = vmatprep.subr.mxu0 0.0
        %3294 = vmatpush2.msra.mxu0 0.0
        %3295 = vmatprep.subr.mxu0 0.0
        %3296 = vmatpush2.msra.mxu0 0.0
        %3297 = vmatprep.subr.mxu0 0.0
        %v3298 = vand.u32 %v2365, 4294901760
        %v3299 = vsub.f32 %v2365, %v3298
        %v3300 = vand.u32 %v3299, 4294901760
        %3301 = vmatpush2.msra.mxu0 %v3300
        %3302 = vmatprep.subr.mxu0 0.0
        %v3303 = vand.u32 %v2358, 4294901760
        %v3304 = vsub.f32 %v2358, %v3303
        %v3305 = vand.u32 %v3304, 4294901760
        %3306 = vmatpush2.msra.mxu0 %v3305
        %3307 = vmatprep.subr.mxu0 0.0
        %v3308 = vand.u32 %v2351, 4294901760
        %v3309 = vsub.f32 %v2351, %v3308
        %v3310 = vand.u32 %v3309, 4294901760
        %3311 = vmatpush2.msra.mxu0 %v3310
        %3312 = vmatprep.subr.mxu0 0.0
        %v3313 = vand.u32 %v2344, 4294901760
        %v3314 = vsub.f32 %v2344, %v3313
        %v3315 = vand.u32 %v3314, 4294901760
        %3316 = vmatpush2.msra.mxu0 %v3315
        %v3317 = vand.u32 %v2394, 4294901760
        %3318 = vmatprep.mubr.f32.mxu0 %v3317
        %v3319 = vand.u32 %v2376, 4294901760
        %3320 = vmatmul.mubr.f32.gmra.mxu0 %v3319
        %v3321 = vpop.f32.mrf.mxu0
        %v3322 = vadd.f32 %v3113, %v3321
        %v3323 = vpop.f32.mrf.mxu0
        %v3324 = vand.u32 %v2397, 4294901760
        %3325 = vmatprep.mubr.f32.mxu0 %v3324
        %v3326 = vand.u32 %v2378, 4294901760
        %3327 = vmatmul.mubr.f32.gmra.mxu0 %v3326
        %v3328 = vpop.f32.mrf.mxu0
        %v3329 = vadd.f32 %v3124, %v3328
        %v3330 = vpop.f32.mrf.mxu0
        %v3331 = vand.u32 %v2400, 4294901760
        %3332 = vmatprep.mubr.f32.mxu0 %v3331
        %v3333 = vand.u32 %v2380, 4294901760
        %3334 = vmatmul.mubr.f32.gmra.mxu0 %v3333
        %v3335 = vpop.f32.mrf.mxu0
        %v3336 = vadd.f32 %v3135, %v3335
        %v3337 = vpop.f32.mrf.mxu0
        %v3338 = vand.u32 %v2403, 4294901760
        %3339 = vmatprep.mubr.f32.mxu0 %v3338
        %v3340 = vand.u32 %v2382, 4294901760
        %3341 = vmatmul.mubr.f32.gmra.mxu0 %v3340
        %v3342 = vpop.f32.mrf.mxu0
        %v3343 = vadd.f32 %v3146, %v3342
        %v3344 = vpop.f32.mrf.mxu0
        %v3345 = vand.u32 %v2406, 4294901760
        %3346 = vmatprep.mubr.f32.mxu0 %v3345
        %v3347 = vand.u32 %v2384, 4294901760
        %3348 = vmatmul.mubr.f32.gmra.mxu0 %v3347
        %v3349 = vpop.f32.mrf.mxu0
        %v3350 = vadd.f32 %v3157, %v3349
        %v3351 = vpop.f32.mrf.mxu0
        %v3352 = vand.u32 %v2409, 4294901760
        %3353 = vmatprep.mubr.f32.mxu0 %v3352
        %v3354 = vand.u32 %v2386, 4294901760
        %3355 = vmatmul.mubr.f32.gmra.mxu0 %v3354
        %v3356 = vpop.f32.mrf.mxu0
        %v3357 = vadd.f32 %v3168, %v3356
        %v3358 = vpop.f32.mrf.mxu0
        %v3359 = vand.u32 %v2412, 4294901760
        %3360 = vmatprep.mubr.f32.mxu0 %v3359
        %v3361 = vand.u32 %v2388, 4294901760
        %3362 = vmatmul.mubr.f32.gmra.mxu0 %v3361
        %v3363 = vpop.f32.mrf.mxu0
        %v3364 = vadd.f32 %v3179, %v3363
        %v3365 = vpop.f32.mrf.mxu0
        %v3366 = vand.u32 %v2415, 4294901760
        %3367 = vmatprep.mubr.f32.mxu0 %v3366
        %v3368 = vand.u32 %v2390, 4294901760
        %3369 = vmatmul.mubr.f32.gmra.mxu0 %v3368
        %v3370 = vpop.f32.mrf.mxu0
        %v3371 = vadd.f32 %v3190, %v3370
        %v3372 = vpop.f32.mrf.mxu0
        %3373 = vdwg.mxu0
        %3374 = vmatprep.subr.mxu0 0.0
        %v3375 = vand.u32 %v2337, 4294901760
        %3376 = vmatpush1.msra.mxu0 %v3375
        %3377 = vmatprep.subr.mxu0 0.0
        %v3378 = vand.u32 %v2330, 4294901760
        %3379 = vmatpush1.msra.mxu0 %v3378
        %3380 = vmatprep.subr.mxu0 0.0
        %v3381 = vand.u32 %v2323, 4294901760
        %3382 = vmatpush1.msra.mxu0 %v3381
        %3383 = vmatprep.subr.mxu0 0.0
        %v3384 = vand.u32 %v2316, 4294901760
        %3385 = vmatpush1.msra.mxu0 %v3384
        %3386 = vmatprep.subr.mxu0 0.0
        %v3387 = vand.u32 %v2309, 4294901760
        %3388 = vmatpush1.msra.mxu0 %v3387
        %3389 = vmatprep.subr.mxu0 0.0
        %v3390 = vand.u32 %v2302, 4294901760
        %3391 = vmatpush1.msra.mxu0 %v3390
        %3392 = vmatprep.subr.mxu0 0.0
        %v3393 = vand.u32 %v2295, 4294901760
        %3394 = vmatpush1.msra.mxu0 %v3393
        %3395 = vmatprep.subr.mxu0 0.0
        %v3396 = vand.u32 %v2288, 4294901760
        %3397 = vmatpush1.msra.mxu0 %v3396
        %3398 = vmatprep.subr.mxu0 0.0
        %v3399 = vand.u32 %v2281, 4294901760
        %3400 = vmatpush1.msra.mxu0 %v3399
        %3401 = vmatprep.subr.mxu0 0.0
        %v3402 = vand.u32 %v2274, 4294901760
        %3403 = vmatpush1.msra.mxu0 %v3402
        %3404 = vmatprep.subr.mxu0 0.0
        %v3405 = vand.u32 %v2267, 4294901760
        %3406 = vmatpush1.msra.mxu0 %v3405
        %3407 = vmatprep.subr.mxu0 0.0
        %v3408 = vand.u32 %v2260, 4294901760
        %3409 = vmatpush1.msra.mxu0 %v3408
        %3410 = vmatprep.subr.mxu0 0.0
        %v3411 = vand.u32 %v2253, 4294901760
        %3412 = vmatpush1.msra.mxu0 %v3411
        %3413 = vmatprep.subr.mxu0 0.0
        %v3414 = vand.u32 %v2246, 4294901760
        %3415 = vmatpush1.msra.mxu0 %v3414
        %3416 = vmatprep.subr.mxu0 0.0
        %v3417 = vand.u32 %v2239, 4294901760
        %3418 = vmatpush1.msra.mxu0 %v3417
        %3419 = vmatprep.subr.mxu0 0.0
        %v3420 = vand.u32 %v2232, 4294901760
        %3421 = vmatpush1.msra.mxu0 %v3420
        %3422 = vmatprep.subr.mxu0 0.0
        %3423 = vmatpush2.msra.mxu0 0.0
        %3424 = vmatprep.subr.mxu0 0.0
        %3425 = vmatpush2.msra.mxu0 0.0
        %3426 = vmatprep.subr.mxu0 0.0
        %3427 = vmatpush2.msra.mxu0 0.0
        %3428 = vmatprep.subr.mxu0 0.0
        %3429 = vmatpush2.msra.mxu0 0.0
        %3430 = vmatprep.subr.mxu0 0.0
        %3431 = vmatpush2.msra.mxu0 0.0
        %3432 = vmatprep.subr.mxu0 0.0
        %3433 = vmatpush2.msra.mxu0 0.0
        %3434 = vmatprep.subr.mxu0 0.0
        %3435 = vmatpush2.msra.mxu0 0.0
        %3436 = vmatprep.subr.mxu0 0.0
        %3437 = vmatpush2.msra.mxu0 0.0
        %3438 = vmatprep.subr.mxu0 0.0
        %3439 = vmatpush2.msra.mxu0 0.0
        %3440 = vmatprep.subr.mxu0 0.0
        %3441 = vmatpush2.msra.mxu0 0.0
        %3442 = vmatprep.subr.mxu0 0.0
        %3443 = vmatpush2.msra.mxu0 0.0
        %3444 = vmatprep.subr.mxu0 0.0
        %3445 = vmatpush2.msra.mxu0 0.0
        %3446 = vmatprep.subr.mxu0 0.0
        %v3447 = vand.u32 %v2365, 4294901760
        %3448 = vmatpush2.msra.mxu0 %v3447
        %3449 = vmatprep.subr.mxu0 0.0
        %v3450 = vand.u32 %v2358, 4294901760
        %3451 = vmatpush2.msra.mxu0 %v3450
        %3452 = vmatprep.subr.mxu0 0.0
        %v3453 = vand.u32 %v2351, 4294901760
        %3454 = vmatpush2.msra.mxu0 %v3453
        %3455 = vmatprep.subr.mxu0 0.0
        %v3456 = vand.u32 %v2344, 4294901760
        %3457 = vmatpush2.msra.mxu0 %v3456
        %v3458 = vand.u32 %v2394, 4294901760
        %3459 = vmatprep.mubr.f32.mxu0 %v3458
        %v3460 = vand.u32 %v2376, 4294901760
        %3461 = vmatmul.mubr.f32.gmra.mxu0 %v3460
        %v3462 = vpop.f32.mrf.mxu0
        %v3463 = vadd.f32 %v3322, %v3462
        %v3464 = vpop.f32.mrf.mxu0
        %v3465 = vand.u32 %v2397, 4294901760
        %3466 = vmatprep.mubr.f32.mxu0 %v3465
        %v3467 = vand.u32 %v2378, 4294901760
        %3468 = vmatmul.mubr.f32.gmra.mxu0 %v3467
        %v3469 = vpop.f32.mrf.mxu0
        %v3470 = vadd.f32 %v3329, %v3469
        %v3471 = vpop.f32.mrf.mxu0
        %v3472 = vand.u32 %v2400, 4294901760
        %3473 = vmatprep.mubr.f32.mxu0 %v3472
        %v3474 = vand.u32 %v2380, 4294901760
        %3475 = vmatmul.mubr.f32.gmra.mxu0 %v3474
        %v3476 = vpop.f32.mrf.mxu0
        %v3477 = vadd.f32 %v3336, %v3476
        %v3478 = vpop.f32.mrf.mxu0
        %v3479 = vand.u32 %v2403, 4294901760
        %3480 = vmatprep.mubr.f32.mxu0 %v3479
        %v3481 = vand.u32 %v2382, 4294901760
        %3482 = vmatmul.mubr.f32.gmra.mxu0 %v3481
        %v3483 = vpop.f32.mrf.mxu0
        %v3484 = vadd.f32 %v3343, %v3483
        %v3485 = vpop.f32.mrf.mxu0
        %v3486 = vand.u32 %v2406, 4294901760
        %3487 = vmatprep.mubr.f32.mxu0 %v3486
        %v3488 = vand.u32 %v2384, 4294901760
        %3489 = vmatmul.mubr.f32.gmra.mxu0 %v3488
        %v3490 = vpop.f32.mrf.mxu0
        %v3491 = vadd.f32 %v3350, %v3490
        %v3492 = vpop.f32.mrf.mxu0
        %v3493 = vand.u32 %v2409, 4294901760
        %3494 = vmatprep.mubr.f32.mxu0 %v3493
        %v3495 = vand.u32 %v2386, 4294901760
        %3496 = vmatmul.mubr.f32.gmra.mxu0 %v3495
        %v3497 = vpop.f32.mrf.mxu0
        %v3498 = vadd.f32 %v3357, %v3497
        %v3499 = vpop.f32.mrf.mxu0
        %v3500 = vand.u32 %v2412, 4294901760
        %3501 = vmatprep.mubr.f32.mxu0 %v3500
        %v3502 = vand.u32 %v2388, 4294901760
        %3503 = vmatmul.mubr.f32.gmra.mxu0 %v3502
        %v3504 = vpop.f32.mrf.mxu0
        %v3505 = vadd.f32 %v3364, %v3504
        %v3506 = vpop.f32.mrf.mxu0
        %v3507 = vand.u32 %v2415, 4294901760
        %3508 = vmatprep.mubr.f32.mxu0 %v3507
        %v3509 = vand.u32 %v2390, 4294901760
        %3510 = vmatmul.mubr.f32.gmra.mxu0 %v3509
        %v3511 = vpop.f32.mrf.mxu0
        %v3512 = vadd.f32 %v3371, %v3511
        %v3513 = vpop.f32.mrf.mxu0
        %3514 = vdwg.mxu0
        %v3515 = vadd.f32 %v2368, %v3463
        %v3516 = vadd.f32 %v2369, %v3470
        %v3517 = vadd.f32 %v2370, %v3477
        %v3518 = vadd.f32 %v2371, %v3484
        %v3519 = vadd.f32 %v2372, %v3491
        %v3520 = vadd.f32 %v2373, %v3498
        %v3521 = vadd.f32 %v2374, %v3505
        %v3522 = vadd.f32 %v2375, %v3512
        %3523 = vst [vmem:[#allocation2] sm:$0xff] %v3515
        %3524 = vst [vmem:[#allocation2 + $0x8] sm:$0xff] %v3516
        %3525 = vst [vmem:[#allocation2 + $0x10] sm:$0xff] %v3517
        %3526 = vst [vmem:[#allocation2 + $0x18] sm:$0xff] %v3518
        %3527 = vst [vmem:[#allocation2 + $0x20] sm:$0xff] %v3519
        %3528 = vst [vmem:[#allocation2 + $0x28] sm:$0xff] %v3520
        %3529 = vst [vmem:[#allocation2 + $0x30] sm:$0xff] %v3521
        %3530 = vst [vmem:[#allocation2 + $0x38] sm:$0xff] %v3522
        // Predicated region
        $region45: #{_opencv_pad_resize_impl.1} parent=35 // pred_check
          %p3531 = pneg %p319
        $region46: #{_opencv_pad_resize_impl.1} parent=35 // pred_check_branch
          %3533 = sbr.rel (%p3531) target = $region48
        $region47: #{_opencv_pad_resize_impl.1} parent=35 // pred_region
          %v3534 = vld [vmem:[#allocation2] sm:$0xff]
          %v3535 = vld [vmem:[#allocation2 + $0x8] sm:$0xff]
          %v3536 = vld [vmem:[#allocation2 + $0x10] sm:$0xff]
          %v3537 = vld [vmem:[#allocation2 + $0x18] sm:$0xff]
          %v3538 = vld [vmem:[#allocation2 + $0x20] sm:$0xff]
          %v3539 = vld [vmem:[#allocation2 + $0x28] sm:$0xff]
          %v3540 = vld [vmem:[#allocation2 + $0x30] sm:$0xff]
          %v3541 = vld [vmem:[#allocation2 + $0x38] sm:$0xff]
          %v3542 = vld [vmem:[%s249] sm:$0xff]
          %v3543 = vld [vmem:[%s249 + $0x8] sm:$0xff]
          %v3544 = vld [vmem:[%s249 + $0x10] sm:$0xff]
          %v3545 = vld [vmem:[%s249 + $0x18] sm:$0xff]
          %v3546 = vld [vmem:[%s249 + $0x20] sm:$0xff]
          %v3547 = vld [vmem:[%s249 + $0x28] sm:$0xff]
          %v3548 = vld [vmem:[%s249 + $0x30] sm:$0xff]
          %v3549 = vld [vmem:[%s249 + $0x38] sm:$0xff]
          %v3550 = vadd.f32 %v3534, %v3542
          %v3551 = vadd.f32 %v3535, %v3543
          %v3552 = vadd.f32 %v3536, %v3544
          %v3553 = vadd.f32 %v3537, %v3545
          %v3554 = vadd.f32 %v3538, %v3546
          %v3555 = vadd.f32 %v3539, %v3547
          %v3556 = vadd.f32 %v3540, %v3548
          %v3557 = vadd.f32 %v3541, %v3549
          %3558 = vst [vmem:[%s293] sm:$0xff] %v3550
          %3559 = vst [vmem:[%s293 + $0x8] sm:$0xff] %v3551
          %3560 = vst [vmem:[%s293 + $0x10] sm:$0xff] %v3552
          %3561 = vst [vmem:[%s293 + $0x18] sm:$0xff] %v3553
          %3562 = vst [vmem:[%s293 + $0x20] sm:$0xff] %v3554
          %3563 = vst [vmem:[%s293 + $0x28] sm:$0xff] %v3555
          %3564 = vst [vmem:[%s293 + $0x30] sm:$0xff] %v3556
          %3565 = vst [vmem:[%s293 + $0x38] sm:$0xff] %v3557
        $region48: #{_opencv_pad_resize_impl.1} parent=35 // pred_fallthru
          _
        %s3566 = sand.u32 %s153, 1
        %s3567 = scalar_lea.sflag [#allocation5], %s3566
        %s3568 = sand.u32 %s153, 1
        %s3569 = smul.addr %s3568, 64
        %s3570 = scalar_lea.vmem [#allocation6], %s3569
        // Predicated region
        $region49: #{_opencv_pad_resize_impl.1} parent=35 // pred_check
          %p3571 = pneg %p163
        $region50: #{_opencv_pad_resize_impl.1} parent=35 // pred_check_branch
          %3573 = sbr.rel (%p3571) target = $region52
        $region51: #{_opencv_pad_resize_impl.1} parent=35 // pred_region
          %s3574 = smul.u32 8, %s27
          %s3576 = ssub.s32 1024, 1024
          %3577 = vsyncadd %s3567, %s3576
          %s3578 = smul.addr %s26, 16
          %s3579 = sadd.s32 %s3574, %s3578
          %s3580 = smul.addr %s3579, 128
          %s3581 = scalar_lea.hbm %s4, %s3580
          %s3582 = sshll.u32 %s3570, 4
          %s3583 = int_to_ptr.vmem [resolvable:$true] %s3582
          %3588 = dma.vmem_to_hbm [thread:$0]  %s3583, 1024, %s3581, %s3567, 128, 128, 8
        $region52: #{_opencv_pad_resize_impl.1} parent=35 // pred_fallthru
          _
      $region36: #{_opencv_pad_resize_impl.1} parent=5 // pred_fallthru
        _
      %p3589 = scmp.le.s32.totalorder 2, %s16
      // Predicated region
      $region53: #{_opencv_pad_resize_impl.1} parent=5 // pred_check
        %p3590 = pneg %p3589
      $region54: #{_opencv_pad_resize_impl.1} parent=5 // pred_check_branch
        %3592 = sbr.rel (%p3590) target = $region56
      $region55: #{_opencv_pad_resize_impl.1} parent=5 // pred_region
        %s3593 = ssub.s32 %s16, 2
        // Predicated region
        $region57: #{_opencv_pad_resize_impl.1} parent=55 // pred_check
          %p3594 = pneg %p169
        $region58: #{_opencv_pad_resize_impl.1} parent=55 // pred_check_branch
          %3596 = sbr.rel (%p3594) target = $region60
        $region59: #{_opencv_pad_resize_impl.1} parent=55 // pred_region
          %s3597 = sand.u32 %s154, 1
          %s3598 = scalar_lea.sflag [#allocation5], %s3597
          %s3599 = sand.u32 %s154, 1
          %s3600 = smul.addr %s3599, 64
          %s3601 = scalar_lea.vmem [#allocation6], %s3600
          %3602 = dma.done %s3598, 1024
        $region60: #{_opencv_pad_resize_impl.1} parent=55 // pred_fallthru
          _
      $region56: #{_opencv_pad_resize_impl.1} parent=5 // pred_fallthru
        _
    $region6: #{_opencv_pad_resize_impl.1} parent=1 // loop_footer
      %s20 = sadd.s32 1, %s16
    $region7: #{_opencv_pad_resize_impl.1} parent=1 // loop_footer_branch
      %15 = sbr.rel target = $region3
    $region8: #{_opencv_pad_resize_impl.1} parent=1 // loop_exit
      _
    %3603 = vsyncpa [#allocation4], 1
    %s3604 = scalar_lea.sflag [#allocation4], 1
    %3605 = vsyncpa %s3604, 1
    %3606 = vsyncpa [#allocation5], 1
    %s3607 = scalar_lea.sflag [#allocation5], 1
    %3608 = vsyncpa %s3607, 1

</llo_original>
